<compile_context>
chip_gen: v5e
topology: v5e:2x2
jax: 0.10.0
libtpu: 0.0.40
codegen_flags: <defaults>
</compile_context>

<pallas_src>
import functools

import numpy as np

import jax
import jax.numpy as jnp
from jax import lax
from jax.experimental import pallas as pl
from jax.experimental.pallas import tpu as pltpu


# ----------------------------- Pallas kernel ------------------------------

def _ae2d_fused_kernel(x_ref, a1_ref, b1_ref, a2_ref, b2_ref,
                       a3_ref, b3_ref, a4_ref, b4_ref, o_ref, *, blk1, blk2):
    x = x_ref[...]                                           # (rb, H*W) bf16

    # Conv2d(1,4,3,p=1) + bias; the four 2x2-pool window phases live on four
    # 128-lane-aligned column blocks -> fused max-pool + ReLU on the VPU.
    h1 = jnp.dot(x, a1_ref[...], preferred_element_type=jnp.float32) + b1_ref[...]
    p1 = jnp.maximum(
        jnp.maximum(h1[:, 0 * blk1:1 * blk1], h1[:, 1 * blk1:2 * blk1]),
        jnp.maximum(h1[:, 2 * blk1:3 * blk1], h1[:, 3 * blk1:4 * blk1]))
    p1 = jnp.maximum(p1, 0.0).astype(jnp.bfloat16)  # ReLU (commutes with max)

    # Conv2d(4,2,3,p=1) + bias + fused 2x2 max-pool + ReLU.
    h2 = jnp.dot(p1, a2_ref[...], preferred_element_type=jnp.float32) + b2_ref[...]
    p2 = jnp.maximum(
        jnp.maximum(h2[:, 0 * blk2:1 * blk2], h2[:, 1 * blk2:2 * blk2]),
        jnp.maximum(h2[:, 2 * blk2:3 * blk2], h2[:, 3 * blk2:4 * blk2]))
    p2 = jnp.maximum(p2, 0.0).astype(jnp.bfloat16)

    # ConvTranspose2d(2,1,4,s=2,p=1) + ReLU (dense operator, 128-lane padded).
    h3 = jnp.dot(p2, a3_ref[...], preferred_element_type=jnp.float32) + b3_ref[...]
    h3 = jnp.maximum(h3, 0.0).astype(jnp.bfloat16)

    # ConvTranspose2d(1,1,4,s=2,p=1) + Sigmoid (exp + approx-recip on the EUP).
    h4 = jnp.dot(h3, a4_ref[...], preferred_element_type=jnp.float32) + b4_ref[...]
    o_ref[...] = pl.reciprocal(1.0 + jnp.exp(-h4), approx=True).astype(o_ref.dtype)


# ----------------------- weight packing (one-time) -------------------------

def _round_up(x, m):
    return ((x + m - 1) // m) * m


def _pack_conv_pool(w, b, H, W):
    """Pack Conv2d(Ci,Co,3,padding=1,stride=1) [+ 2x2 max-pool decomposition]
    into a dense operator.

    Input vector layout : ci*H*W + i*W + j                     (channel-major)
    Output columns      : phase*blkp + co*(H/2)*(W/2) + qi*(W/2) + qj,
                          phase in {0..3} = the 2x2 pool-window offset,
                          blkp = Co*(H/2)*(W/2) rounded up to 128 (zero pad).
    Returns A (Ci*H*W, 4*blkp), bias (1, 4*blkp), blkp.
    """
    Co, Ci, KH, KW = w.shape
    Hp, Wp = H // 2, W // 2
    blk = Co * Hp * Wp
    blkp = _round_up(blk, 128)
    Pin = Ci * H * W

    ci, i, j = np.meshgrid(np.arange(Ci), np.arange(H), np.arange(W),
                           indexing="ij")
    ci = ci.reshape(Pin, 1); i = i.reshape(Pin, 1); j = j.reshape(Pin, 1)

    ph, co, qi, qj = np.meshgrid(np.arange(4), np.arange(Co),
                                 np.arange(Hp), np.arange(Wp), indexing="ij")
    ph = ph.reshape(1, -1); co = co.reshape(1, -1)
    qi = qi.reshape(1, -1); qj = qj.reshape(1, -1)

    oi = 2 * qi + ph // 2                    # conv-output pixel for this phase
    oj = 2 * qj + ph % 2
    ki = i - oi + 1                          # 3x3 tap hit by input pixel (i,j)
    kj = j - oj + 1
    valid = (ki >= 0) & (ki < KH) & (kj >= 0) & (kj < KW)
    flat = (((co * Ci + ci) * KH + np.clip(ki, 0, KH - 1)) * KW
            + np.clip(kj, 0, KW - 1)).astype(np.int32)

    A = jnp.where(jnp.asarray(valid), w.reshape(-1)[jnp.asarray(flat)], 0.0)
    A = A.reshape(Pin, 4, blk)
    A = jnp.pad(A, ((0, 0), (0, 0), (0, blkp - blk))).reshape(Pin, 4 * blkp)

    bias = jnp.pad(jnp.repeat(b, Hp * Wp), (0, blkp - blk))
    bias = jnp.tile(bias, 4)[None, :]
    return A.astype(jnp.float32), bias.astype(jnp.float32), blkp


def _pack_deconv(w, b, Hin, Win):
    """Pack ConvTranspose2d(Ci,Co,4,stride=2,padding=1) as a dense operator.

    Input layout : ci*Hin*Win + i*Win + j ; output: co*Hout*Wout + oi*Wout + oj,
    with the output column axis zero-padded up to a multiple of 128 lanes.
    Returns A (Ci*Hin*Win, Poutp), bias (1, Poutp), real Pout.
    """
    Ci, Co, KH, KW = w.shape
    Hout, Wout = 2 * Hin, 2 * Win
    Pin, Pout = Ci * Hin * Win, Co * Hout * Wout
    Poutp = _round_up(Pout, 128)

    ci, i, j = np.meshgrid(np.arange(Ci), np.arange(Hin), np.arange(Win),
                           indexing="ij")
    ci = ci.reshape(Pin, 1); i = i.reshape(Pin, 1); j = j.reshape(Pin, 1)
    co, oi, oj = np.meshgrid(np.arange(Co), np.arange(Hout), np.arange(Wout),
                             indexing="ij")
    co = co.reshape(1, -1); oi = oi.reshape(1, -1); oj = oj.reshape(1, -1)

    ki = oi - 2 * i + 1                      # oi = 2*i - pad + ki, pad = 1
    kj = oj - 2 * j + 1
    valid = (ki >= 0) & (ki < KH) & (kj >= 0) & (kj < KW)
    flat = (((ci * Co + co) * KH + np.clip(ki, 0, KH - 1)) * KW
            + np.clip(kj, 0, KW - 1)).astype(np.int32)

    A = jnp.where(jnp.asarray(valid), w.reshape(-1)[jnp.asarray(flat)], 0.0)
    A = jnp.pad(A, ((0, 0), (0, Poutp - Pout)))
    bias = jnp.pad(jnp.repeat(b, Hout * Wout), (0, Poutp - Pout))[None, :]
    return A.astype(jnp.float32), bias.astype(jnp.float32), Pout


def pack_params(params, H, W):
    """One-time weight packing into lane-aligned bf16 matmul operators.
    Touches only weights (never activations); done outside the hot path."""
    A1, bv1, blk1 = _pack_conv_pool(params["w1"], params["b1"], H, W)
    A2, bv2, blk2 = _pack_conv_pool(params["w2"], params["b2"], H // 2, W // 2)
    A2 = jnp.pad(A2, ((0, blk1 - A2.shape[0]), (0, 0)))  # rows match p1 lanes
    A3, bv3, _ = _pack_deconv(params["w3"], params["b3"], H // 4, W // 4)
    A3 = jnp.pad(A3, ((0, blk2 - A3.shape[0]), (0, 0)))  # rows match p2 lanes
    A4, bv4, out_real = _pack_deconv(params["w4"], params["b4"], H // 2, W // 2)
    A4 = jnp.pad(A4, ((0, A3.shape[1] - A4.shape[0]), (0, 0)))  # match h3 pad

    bf16 = lambda a: a.astype(jnp.bfloat16)   # MXU-native operands; f32 biases
    return dict(A1=bf16(A1), b1=bv1, A2=bf16(A2), b2=bv2,
                A3=bf16(A3), b3=bv3, A4=bf16(A4), b4=bv4,
                blk1=blk1, blk2=blk2, out_real=out_real)


# ------------------------------ forward -----------------------------------

def _pick_row_block(n, row_block, min_programs):
    # min_programs=2 keeps both v7x TensorCores busy for non-trivial N.
    if min_programs <= 1 or n <= 8:
        return n if n <= row_block else row_block
    rb = _round_up(-(-n // min_programs), 8)
    return max(8, min(rb, row_block))


def _vmem_estimate_bytes(packed, rb):
    """Rough resident-VMEM estimate (weights single-buffered, x/out double)."""
    weight_bytes = 0
    for k in ("A1", "b1", "A2", "b2", "A3", "b3", "A4", "b4"):
        a = packed[k]
        weight_bytes += int(np.prod(a.shape)) * a.dtype.itemsize
    in_cols = packed["A1"].shape[0]
    out_cols = packed["A4"].shape[1]
    io_bytes = 2 * rb * in_cols * 2 + 2 * rb * out_cols * 4
    live_cols = (packed["A1"].shape[1] + packed["A2"].shape[1]
                 + packed["A3"].shape[1] + packed["A4"].shape[1])
    act_bytes = rb * live_cols * 6            # f32 result + bf16 copy, rough
    return weight_bytes + io_bytes + act_bytes


def ae2d_forward(obs, packed, row_block=512, min_programs=1, pin_weights=True):
    """AE2D.forward (eval): predictor(obs) reshaped to (instances, 1, H, W).
    One fused pallas_call; batch rows tiled over a 'parallel' grid axis."""
    N, _, H, W = obs.shape
    x = obs.reshape(N, H * W).astype(jnp.bfloat16)
    blk1, blk2 = packed["blk1"], packed["blk2"]
    out_dim = packed["A4"].shape[1]
    out_real = packed["out_real"]
    rb = _pick_row_block(N, row_block, min_programs)

    est = _vmem_estimate_bytes(packed, rb)
    vmem_budget = 48 * 1024 * 1024            # safely under v7x 64 MiB physical
    assert est < vmem_budget, (
        f"packed operators need ~{est / 2**20:.1f} MiB VMEM; the dense packing "
        "grows O((H*W)^2) -- switch to a banded/per-tile variant at this size")

    wconst = lambda i: (0, 0)
    pin = pin_weights and hasattr(pl, "Buffered")

    def wspec(shape):
        # Grid-invariant operands: single-buffer so Pallas does not double the
        # resident weight footprint.
        if pin:
            return pl.BlockSpec(shape, wconst, pipeline_mode=pl.Buffered(1))
        return pl.BlockSpec(shape, wconst)

    kernel = functools.partial(_ae2d_fused_kernel, blk1=blk1, blk2=blk2)
    y = pl.pallas_call(
        kernel,
        out_shape=jax.ShapeDtypeStruct((N, out_dim), jnp.float32),
        grid=(pl.cdiv(N, rb),),
        in_specs=[
            pl.BlockSpec((rb, H * W), lambda i: (i, 0)),
            wspec(packed["A1"].shape), wspec(packed["b1"].shape),
            wspec(packed["A2"].shape), wspec(packed["b2"].shape),
            wspec(packed["A3"].shape), wspec(packed["b3"].shape),
            wspec(packed["A4"].shape), wspec(packed["b4"].shape),
        ],
        out_specs=pl.BlockSpec((rb, out_dim), lambda i: (i, 0)),
        compiler_params=pltpu.CompilerParams(
            dimension_semantics=("parallel",),
            vmem_limit_bytes=vmem_budget),
    )(x, packed["A1"], packed["b1"], packed["A2"], packed["b2"],
      packed["A3"], packed["b3"], packed["A4"], packed["b4"])
    return y[:, :out_real].reshape(N, 1, H, W)


# --------------------------- pure-JAX reference ----------------------------

def _ref_conv(x, w, b):
    y = lax.conv_general_dilated(
        x, w, (1, 1), [(1, 1), (1, 1)],
        dimension_numbers=("NCHW", "OIHW", "NCHW"))
    return y + b[None, :, None, None]


def _ref_deconv(x, w, b):
    w_eq = jnp.flip(w, axis=(2, 3)).transpose(1, 0, 2, 3)
    y = lax.conv_general_dilated(
        x, w_eq, (1, 1), [(2, 2), (2, 2)], lhs_dilation=(2, 2),
        dimension_numbers=("NCHW", "OIHW", "NCHW"))
    return y + b[None, :, None, None]


def _ref_pool(x):
    return lax.reduce_window(x, -jnp.inf, lax.max,
                             (1, 1, 2, 2), (1, 1, 2, 2), "VALID")


def ae2d_forward_ref(obs, params):
    N, _, H, W = obs.shape
    y = _ref_pool(jax.nn.relu(_ref_conv(obs, params["w1"], params["b1"])))
    y = _ref_pool(jax.nn.relu(_ref_conv(y, params["w2"], params["b2"])))
    y = jax.nn.relu(_ref_deconv(y, params["w3"], params["b3"]))
    y = jax.nn.sigmoid(_ref_deconv(y, params["w4"], params["b4"]))
    return y.reshape(N, 1, H, W)


# --------------------------------- main ------------------------------------

def init_params(key):
    ks = jax.random.split(key, 8)
    scale = 0.2
    return {
        # Conv2d(1, 4, 3): weight (Co, Ci, 3, 3)
        "w1": scale * jax.random.normal(ks[0], (4, 1, 3, 3), jnp.float32),
        "b1": scale * jax.random.normal(ks[1], (4,), jnp.float32),
        # Conv2d(4, 2, 3)
        "w2": scale * jax.random.normal(ks[2], (2, 4, 3, 3), jnp.float32),
        "b2": scale * jax.random.normal(ks[3], (2,), jnp.float32),
        # ConvTranspose2d(2, 1, 4): weight (Ci, Co, 4, 4)
        "w3": scale * jax.random.normal(ks[4], (2, 1, 4, 4), jnp.float32),
        "b3": scale * jax.random.normal(ks[5], (1,), jnp.float32),
        # ConvTranspose2d(1, 1, 4)
        "w4": scale * jax.random.normal(ks[6], (1, 1, 4, 4), jnp.float32),
        "b4": scale * jax.random.normal(ks[7], (1,), jnp.float32),
    }


if __name__ == "__main__":
    key = jax.random.PRNGKey(0)
    k_obs, k_par = jax.random.split(key)

    # env: instances=2, height=width=16  ->  obs NCHW (2, 1, 16, 16)
    instances, H, W = 2, 16, 16
    obs = (jax.random.uniform(k_obs, (instances, 1, H, W)) > 0.5).astype(jnp.float32)
    params = init_params(k_par)

    packed = pack_params(params, H, W)          # one-time weight packing

    try:
        fwd = jax.jit(lambda o: ae2d_forward(o, packed, pin_weights=True))
        out = jax.block_until_ready(fwd(obs))
    except Exception:
        # Fallback for Pallas versions without single-buffer pipeline_mode.
        fwd = jax.jit(lambda o: ae2d_forward(o, packed, pin_weights=False))
        out = jax.block_until_ready(fwd(obs))

    ref = jax.block_until_ready(ae2d_forward_ref(obs, params))

    assert out.shape == (instances, 1, H, W), out.shape
    # bf16 MXU operands + approx reciprocal -> relaxed tolerance vs f32 ref.
    assert jnp.allclose(out, ref, rtol=3e-2, atol=3e-2), \
        float(jnp.max(jnp.abs(out - ref)))
    print("KERNEL_OK")
</pallas_src>

<mosaic_0001>
module attributes {stable_mosaic.version = 11 : i64} {
  func.func @_ae2d_fused_kernel(%arg0: i32, %arg1: memref<2x256xbf16, #tpu.memory_space<vmem>>, %arg2: memref<256x1024xbf16, #tpu.memory_space<vmem>>, %arg3: memref<1x1024xf32, #tpu.memory_space<vmem>>, %arg4: memref<256x512xbf16, #tpu.memory_space<vmem>>, %arg5: memref<1x512xf32, #tpu.memory_space<vmem>>, %arg6: memref<128x128xbf16, #tpu.memory_space<vmem>>, %arg7: memref<1x128xf32, #tpu.memory_space<vmem>>, %arg8: memref<128x256xbf16, #tpu.memory_space<vmem>>, %arg9: memref<1x256xf32, #tpu.memory_space<vmem>>, %arg10: memref<2x256xf32, #tpu.memory_space<vmem>>) attributes {dimension_semantics = [#tpu.dimension_semantics<parallel>], iteration_bounds = array<i64: 1>, scalar_prefetch = 0 : i64, scratch_operands = 0 : i64, tpu.core_type = #tpu.core_type<tc>, window_params = [{transform_indices = @transform_0, window_bounds = array<i64: 2, 256>}, {pipeline_mode = #tpu.pipeline_mode<synchronous>, transform_indices = @transform_1, window_bounds = array<i64: 256, 1024>}, {pipeline_mode = #tpu.pipeline_mode<synchronous>, transform_indices = @transform_2, window_bounds = array<i64: 1, 1024>}, {pipeline_mode = #tpu.pipeline_mode<synchronous>, transform_indices = @transform_3, window_bounds = array<i64: 256, 512>}, {pipeline_mode = #tpu.pipeline_mode<synchronous>, transform_indices = @transform_4, window_bounds = array<i64: 1, 512>}, {pipeline_mode = #tpu.pipeline_mode<synchronous>, transform_indices = @transform_5, window_bounds = array<i64: 128, 128>}, {pipeline_mode = #tpu.pipeline_mode<synchronous>, transform_indices = @transform_6, window_bounds = array<i64: 1, 128>}, {pipeline_mode = #tpu.pipeline_mode<synchronous>, transform_indices = @transform_7, window_bounds = array<i64: 128, 256>}, {pipeline_mode = #tpu.pipeline_mode<synchronous>, transform_indices = @transform_8, window_bounds = array<i64: 1, 256>}, {transform_indices = @transform_9, window_bounds = array<i64: 2, 256>}]} {
    %c0 = arith.constant 0 : index
    %c0_0 = arith.constant 0 : index
    %0 = vector.load %arg1[%c0, %c0_0] : memref<2x256xbf16, #tpu.memory_space<vmem>>, vector<2x256xbf16>
    %c0_1 = arith.constant 0 : index
    %c0_2 = arith.constant 0 : index
    %1 = vector.load %arg2[%c0_1, %c0_2] : memref<256x1024xbf16, #tpu.memory_space<vmem>>, vector<256x1024xbf16>
    %cst = arith.constant dense<0.000000e+00> : vector<2x1024xf32>
    %2 = tpu.matmul %0, %1, %cst {dimension_numbers = #tpu.dot_dimension_numbers<[1], [0], [0], [1], [0, 0, 1, 1], [], []>} : vector<2x256xbf16>, vector<256x1024xbf16>, vector<2x1024xf32> -> vector<2x1024xf32>
    %c0_3 = arith.constant 0 : index
    %c0_4 = arith.constant 0 : index
    %3 = vector.load %arg3[%c0_3, %c0_4] : memref<1x1024xf32, #tpu.memory_space<vmem>>, vector<1x1024xf32>
    %4 = vector.broadcast %3 : vector<1x1024xf32> to vector<2x1024xf32>
    %5 = arith.addf %2, %4 : vector<2x1024xf32>
    %6 = vector.extract_strided_slice %5 {offsets = [0, 0], sizes = [2, 256], strides = [1, 1]} : vector<2x1024xf32> to vector<2x256xf32>
    %7 = vector.extract_strided_slice %5 {offsets = [0, 256], sizes = [2, 256], strides = [1, 1]} : vector<2x1024xf32> to vector<2x256xf32>
    %8 = arith.maximumf %6, %7 : vector<2x256xf32>
    %9 = vector.extract_strided_slice %5 {offsets = [0, 512], sizes = [2, 256], strides = [1, 1]} : vector<2x1024xf32> to vector<2x256xf32>
    %10 = vector.extract_strided_slice %5 {offsets = [0, 768], sizes = [2, 256], strides = [1, 1]} : vector<2x1024xf32> to vector<2x256xf32>
    %11 = arith.maximumf %9, %10 : vector<2x256xf32>
    %12 = arith.maximumf %8, %11 : vector<2x256xf32>
    %cst_5 = arith.constant 0.000000e+00 : f32
    %13 = vector.broadcast %cst_5 : f32 to vector<2x256xf32>
    %14 = arith.maximumf %12, %13 : vector<2x256xf32>
    %15 = arith.truncf %14 : vector<2x256xf32> to vector<2x256xbf16>
    %c0_6 = arith.constant 0 : index
    %c0_7 = arith.constant 0 : index
    %16 = vector.load %arg4[%c0_6, %c0_7] : memref<256x512xbf16, #tpu.memory_space<vmem>>, vector<256x512xbf16>
    %cst_8 = arith.constant dense<0.000000e+00> : vector<2x512xf32>
    %17 = tpu.matmul %15, %16, %cst_8 {dimension_numbers = #tpu.dot_dimension_numbers<[1], [0], [0], [1], [0, 0, 1, 1], [], []>} : vector<2x256xbf16>, vector<256x512xbf16>, vector<2x512xf32> -> vector<2x512xf32>
    %c0_9 = arith.constant 0 : index
    %c0_10 = arith.constant 0 : index
    %18 = vector.load %arg5[%c0_9, %c0_10] : memref<1x512xf32, #tpu.memory_space<vmem>>, vector<1x512xf32>
    %19 = vector.broadcast %18 : vector<1x512xf32> to vector<2x512xf32>
    %20 = arith.addf %17, %19 : vector<2x512xf32>
    %21 = vector.extract_strided_slice %20 {offsets = [0, 0], sizes = [2, 128], strides = [1, 1]} : vector<2x512xf32> to vector<2x128xf32>
    %22 = vector.extract_strided_slice %20 {offsets = [0, 128], sizes = [2, 128], strides = [1, 1]} : vector<2x512xf32> to vector<2x128xf32>
    %23 = arith.maximumf %21, %22 : vector<2x128xf32>
    %24 = vector.extract_strided_slice %20 {offsets = [0, 256], sizes = [2, 128], strides = [1, 1]} : vector<2x512xf32> to vector<2x128xf32>
    %25 = vector.extract_strided_slice %20 {offsets = [0, 384], sizes = [2, 128], strides = [1, 1]} : vector<2x512xf32> to vector<2x128xf32>
    %26 = arith.maximumf %24, %25 : vector<2x128xf32>
    %27 = arith.maximumf %23, %26 : vector<2x128xf32>
    %cst_11 = arith.constant 0.000000e+00 : f32
    %28 = vector.broadcast %cst_11 : f32 to vector<2x128xf32>
    %29 = arith.maximumf %27, %28 : vector<2x128xf32>
    %30 = arith.truncf %29 : vector<2x128xf32> to vector<2x128xbf16>
    %c0_12 = arith.constant 0 : index
    %c0_13 = arith.constant 0 : index
    %31 = vector.load %arg6[%c0_12, %c0_13] : memref<128x128xbf16, #tpu.memory_space<vmem>>, vector<128x128xbf16>
    %cst_14 = arith.constant dense<0.000000e+00> : vector<2x128xf32>
    %32 = tpu.matmul %30, %31, %cst_14 {dimension_numbers = #tpu.dot_dimension_numbers<[1], [0], [0], [1], [0, 0, 1, 1], [], []>} : vector<2x128xbf16>, vector<128x128xbf16>, vector<2x128xf32> -> vector<2x128xf32>
    %c0_15 = arith.constant 0 : index
    %c0_16 = arith.constant 0 : index
    %33 = vector.load %arg7[%c0_15, %c0_16] : memref<1x128xf32, #tpu.memory_space<vmem>>, vector<1x128xf32>
    %34 = vector.broadcast %33 : vector<1x128xf32> to vector<2x128xf32>
    %35 = arith.addf %32, %34 : vector<2x128xf32>
    %cst_17 = arith.constant 0.000000e+00 : f32
    %36 = vector.broadcast %cst_17 : f32 to vector<2x128xf32>
    %37 = arith.maximumf %35, %36 : vector<2x128xf32>
    %38 = arith.truncf %37 : vector<2x128xf32> to vector<2x128xbf16>
    %c0_18 = arith.constant 0 : index
    %c0_19 = arith.constant 0 : index
    %39 = vector.load %arg8[%c0_18, %c0_19] : memref<128x256xbf16, #tpu.memory_space<vmem>>, vector<128x256xbf16>
    %cst_20 = arith.constant dense<0.000000e+00> : vector<2x256xf32>
    %40 = tpu.matmul %38, %39, %cst_20 {dimension_numbers = #tpu.dot_dimension_numbers<[1], [0], [0], [1], [0, 0, 1, 1], [], []>} : vector<2x128xbf16>, vector<128x256xbf16>, vector<2x256xf32> -> vector<2x256xf32>
    %c0_21 = arith.constant 0 : index
    %c0_22 = arith.constant 0 : index
    %41 = vector.load %arg9[%c0_21, %c0_22] : memref<1x256xf32, #tpu.memory_space<vmem>>, vector<1x256xf32>
    %42 = vector.broadcast %41 : vector<1x256xf32> to vector<2x256xf32>
    %43 = arith.addf %40, %42 : vector<2x256xf32>
    %cst_23 = arith.constant 0.000000e+00 : f32
    %44 = vector.broadcast %cst_23 : f32 to vector<2x256xf32>
    %45 = arith.subf %44, %43 : vector<2x256xf32>
    %46 = math.exp %45 : vector<2x256xf32>
    %cst_24 = arith.constant 1.000000e+00 : f32
    %47 = vector.broadcast %cst_24 : f32 to vector<2x256xf32>
    %48 = arith.addf %47, %46 : vector<2x256xf32>
    %49 = tpu.reciprocal %48 {approx = true} : vector<2x256xf32> -> vector<2x256xf32>
    %c0_25 = arith.constant 0 : index
    %c0_26 = arith.constant 0 : index
    %50 = vector.load %arg10[%c0_25, %c0_26] : memref<2x256xf32, #tpu.memory_space<vmem>>, vector<2x256xf32>
    tpu.vector_store %arg10[%c0_25, %c0_26], %49 {strides = array<i32>} : memref<2x256xf32, #tpu.memory_space<vmem>>, vector<2x256xf32>,
    return
  }
  func.func @transform_0(%arg0: i32) -> (i32, i32) {
    %c0_i32 = arith.constant 0 : i32
    %c0_i32_0 = arith.constant 0 : i32
    return %arg0, %c0_i32 : i32, i32
  }
  func.func @transform_1(%arg0: i32) -> (i32, i32) {
    %c0_i32 = arith.constant 0 : i32
    %c0_i32_0 = arith.constant 0 : i32
    %c0_i32_1 = arith.constant 0 : i32
    return %c0_i32, %c0_i32_0 : i32, i32
  }
  func.func @transform_2(%arg0: i32) -> (i32, i32) {
    %c0_i32 = arith.constant 0 : i32
    %c0_i32_0 = arith.constant 0 : i32
    %c0_i32_1 = arith.constant 0 : i32
    return %c0_i32, %c0_i32_0 : i32, i32
  }
  func.func @transform_3(%arg0: i32) -> (i32, i32) {
    %c0_i32 = arith.constant 0 : i32
    %c0_i32_0 = arith.constant 0 : i32
    %c0_i32_1 = arith.constant 0 : i32
    return %c0_i32, %c0_i32_0 : i32, i32
  }
  func.func @transform_4(%arg0: i32) -> (i32, i32) {
    %c0_i32 = arith.constant 0 : i32
    %c0_i32_0 = arith.constant 0 : i32
    %c0_i32_1 = arith.constant 0 : i32
    return %c0_i32, %c0_i32_0 : i32, i32
  }
  func.func @transform_5(%arg0: i32) -> (i32, i32) {
    %c0_i32 = arith.constant 0 : i32
    %c0_i32_0 = arith.constant 0 : i32
    %c0_i32_1 = arith.constant 0 : i32
    return %c0_i32, %c0_i32_0 : i32, i32
  }
  func.func @transform_6(%arg0: i32) -> (i32, i32) {
    %c0_i32 = arith.constant 0 : i32
    %c0_i32_0 = arith.constant 0 : i32
    %c0_i32_1 = arith.constant 0 : i32
    return %c0_i32, %c0_i32_0 : i32, i32
  }
  func.func @transform_7(%arg0: i32) -> (i32, i32) {
    %c0_i32 = arith.constant 0 : i32
    %c0_i32_0 = arith.constant 0 : i32
    %c0_i32_1 = arith.constant 0 : i32
    return %c0_i32, %c0_i32_0 : i32, i32
  }
  func.func @transform_8(%arg0: i32) -> (i32, i32) {
    %c0_i32 = arith.constant 0 : i32
    %c0_i32_0 = arith.constant 0 : i32
    %c0_i32_1 = arith.constant 0 : i32
    return %c0_i32, %c0_i32_0 : i32, i32
  }
  func.func @transform_9(%arg0: i32) -> (i32, i32) {
    %c0_i32 = arith.constant 0 : i32
    %c0_i32_0 = arith.constant 0 : i32
    return %arg0, %c0_i32 : i32, i32
  }
}

module attributes {stable_mosaic.version = 11 : i64} {
  func.func @_ae2d_fused_kernel(%arg0: i32, %arg1: memref<2x256xbf16, #tpu.memory_space<vmem>>, %arg2: memref<256x1024xbf16, #tpu.memory_space<vmem>>, %arg3: memref<1x1024xf32, #tpu.memory_space<vmem>>, %arg4: memref<256x512xbf16, #tpu.memory_space<vmem>>, %arg5: memref<1x512xf32, #tpu.memory_space<vmem>>, %arg6: memref<128x128xbf16, #tpu.memory_space<vmem>>, %arg7: memref<1x128xf32, #tpu.memory_space<vmem>>, %arg8: memref<128x256xbf16, #tpu.memory_space<vmem>>, %arg9: memref<1x256xf32, #tpu.memory_space<vmem>>, %arg10: memref<2x256xf32, #tpu.memory_space<vmem>>) attributes {dimension_semantics = [#tpu.dimension_semantics<parallel>], iteration_bounds = array<i64: 1>, scalar_prefetch = 0 : i64, scratch_operands = 0 : i64, tpu.core_type = #tpu.core_type<tc>, window_params = [{transform_indices = @transform_0, window_bounds = array<i64: 2, 256>}, {pipeline_mode = #tpu.pipeline_mode<synchronous>, transform_indices = @transform_1, window_bounds = array<i64: 256, 1024>}, {pipeline_mode = #tpu.pipeline_mode<synchronous>, transform_indices = @transform_2, window_bounds = array<i64: 1, 1024>}, {pipeline_mode = #tpu.pipeline_mode<synchronous>, transform_indices = @transform_3, window_bounds = array<i64: 256, 512>}, {pipeline_mode = #tpu.pipeline_mode<synchronous>, transform_indices = @transform_4, window_bounds = array<i64: 1, 512>}, {pipeline_mode = #tpu.pipeline_mode<synchronous>, transform_indices = @transform_5, window_bounds = array<i64: 128, 128>}, {pipeline_mode = #tpu.pipeline_mode<synchronous>, transform_indices = @transform_6, window_bounds = array<i64: 1, 128>}, {pipeline_mode = #tpu.pipeline_mode<synchronous>, transform_indices = @transform_7, window_bounds = array<i64: 128, 256>}, {pipeline_mode = #tpu.pipeline_mode<synchronous>, transform_indices = @transform_8, window_bounds = array<i64: 1, 256>}, {transform_indices = @transform_9, window_bounds = array<i64: 2, 256>}]} {
    %c0 = arith.constant 0 : index
    %c0_0 = arith.constant 0 : index
    %0 = vector.load %arg1[%c0, %c0_0] : memref<2x256xbf16, #tpu.memory_space<vmem>>, vector<2x256xbf16>
    %c0_1 = arith.constant 0 : index
    %c0_2 = arith.constant 0 : index
    %1 = vector.load %arg2[%c0_1, %c0_2] : memref<256x1024xbf16, #tpu.memory_space<vmem>>, vector<256x1024xbf16>
    %cst = arith.constant dense<0.000000e+00> : vector<2x1024xf32>
    %2 = tpu.matmul %0, %1, %cst {dimension_numbers = #tpu.dot_dimension_numbers<[1], [0], [0], [1], [0, 0, 1, 1], [], []>} : vector<2x256xbf16>, vector<256x1024xbf16>, vector<2x1024xf32> -> vector<2x1024xf32>
    %c0_3 = arith.constant 0 : index
    %c0_4 = arith.constant 0 : index
    %3 = vector.load %arg3[%c0_3, %c0_4] : memref<1x1024xf32, #tpu.memory_space<vmem>>, vector<1x1024xf32>
    %4 = vector.broadcast %3 : vector<1x1024xf32> to vector<2x1024xf32>
    %5 = arith.addf %2, %4 : vector<2x1024xf32>
    %6 = vector.extract_strided_slice %5 {offsets = [0, 0], sizes = [2, 256], strides = [1, 1]} : vector<2x1024xf32> to vector<2x256xf32>
    %7 = vector.extract_strided_slice %5 {offsets = [0, 256], sizes = [2, 256], strides = [1, 1]} : vector<2x1024xf32> to vector<2x256xf32>
    %8 = arith.maximumf %6, %7 : vector<2x256xf32>
    %9 = vector.extract_strided_slice %5 {offsets = [0, 512], sizes = [2, 256], strides = [1, 1]} : vector<2x1024xf32> to vector<2x256xf32>
    %10 = vector.extract_strided_slice %5 {offsets = [0, 768], sizes = [2, 256], strides = [1, 1]} : vector<2x1024xf32> to vector<2x256xf32>
    %11 = arith.maximumf %9, %10 : vector<2x256xf32>
    %12 = arith.maximumf %8, %11 : vector<2x256xf32>
    %cst_5 = arith.constant 0.000000e+00 : f32
    %13 = vector.broadcast %cst_5 : f32 to vector<2x256xf32>
    %14 = arith.maximumf %12, %13 : vector<2x256xf32>
    %15 = arith.truncf %14 : vector<2x256xf32> to vector<2x256xbf16>
    %c0_6 = arith.constant 0 : index
    %c0_7 = arith.constant 0 : index
    %16 = vector.load %arg4[%c0_6, %c0_7] : memref<256x512xbf16, #tpu.memory_space<vmem>>, vector<256x512xbf16>
    %cst_8 = arith.constant dense<0.000000e+00> : vector<2x512xf32>
    %17 = tpu.matmul %15, %16, %cst_8 {dimension_numbers = #tpu.dot_dimension_numbers<[1], [0], [0], [1], [0, 0, 1, 1], [], []>} : vector<2x256xbf16>, vector<256x512xbf16>, vector<2x512xf32> -> vector<2x512xf32>
    %c0_9 = arith.constant 0 : index
    %c0_10 = arith.constant 0 : index
    %18 = vector.load %arg5[%c0_9, %c0_10] : memref<1x512xf32, #tpu.memory_space<vmem>>, vector<1x512xf32>
    %19 = vector.broadcast %18 : vector<1x512xf32> to vector<2x512xf32>
    %20 = arith.addf %17, %19 : vector<2x512xf32>
    %21 = vector.extract_strided_slice %20 {offsets = [0, 0], sizes = [2, 128], strides = [1, 1]} : vector<2x512xf32> to vector<2x128xf32>
    %22 = vector.extract_strided_slice %20 {offsets = [0, 128], sizes = [2, 128], strides = [1, 1]} : vector<2x512xf32> to vector<2x128xf32>
    %23 = arith.maximumf %21, %22 : vector<2x128xf32>
    %24 = vector.extract_strided_slice %20 {offsets = [0, 256], sizes = [2, 128], strides = [1, 1]} : vector<2x512xf32> to vector<2x128xf32>
    %25 = vector.extract_strided_slice %20 {offsets = [0, 384], sizes = [2, 128], strides = [1, 1]} : vector<2x512xf32> to vector<2x128xf32>
    %26 = arith.maximumf %24, %25 : vector<2x128xf32>
    %27 = arith.maximumf %23, %26 : vector<2x128xf32>
    %cst_11 = arith.constant 0.000000e+00 : f32
    %28 = vector.broadcast %cst_11 : f32 to vector<2x128xf32>
    %29 = arith.maximumf %27, %28 : vector<2x128xf32>
    %30 = arith.truncf %29 : vector<2x128xf32> to vector<2x128xbf16>
    %c0_12 = arith.constant 0 : index
    %c0_13 = arith.constant 0 : index
    %31 = vector.load %arg6[%c0_12, %c0_13] : memref<128x128xbf16, #tpu.memory_space<vmem>>, vector<128x128xbf16>
    %cst_14 = arith.constant dense<0.000000e+00> : vector<2x128xf32>
    %32 = tpu.matmul %30, %31, %cst_14 {dimension_numbers = #tpu.dot_dimension_numbers<[1], [0], [0], [1], [0, 0, 1, 1], [], []>} : vector<2x128xbf16>, vector<128x128xbf16>, vector<2x128xf32> -> vector<2x128xf32>
    %c0_15 = arith.constant 0 : index
    %c0_16 = arith.constant 0 : index
    %33 = vector.load %arg7[%c0_15, %c0_16] : memref<1x128xf32, #tpu.memory_space<vmem>>, vector<1x128xf32>
    %34 = vector.broadcast %33 : vector<1x128xf32> to vector<2x128xf32>
    %35 = arith.addf %32, %34 : vector<2x128xf32>
    %cst_17 = arith.constant 0.000000e+00 : f32
    %36 = vector.broadcast %cst_17 : f32 to vector<2x128xf32>
    %37 = arith.maximumf %35, %36 : vector<2x128xf32>
    %38 = arith.truncf %37 : vector<2x128xf32> to vector<2x128xbf16>
    %c0_18 = arith.constant 0 : index
    %c0_19 = arith.constant 0 : index
    %39 = vector.load %arg8[%c0_18, %c0_19] : memref<128x256xbf16, #tpu.memory_space<vmem>>, vector<128x256xbf16>
    %cst_20 = arith.constant dense<0.000000e+00> : vector<2x256xf32>
    %40 = tpu.matmul %38, %39, %cst_20 {dimension_numbers = #tpu.dot_dimension_numbers<[1], [0], [0], [1], [0, 0, 1, 1], [], []>} : vector<2x128xbf16>, vector<128x256xbf16>, vector<2x256xf32> -> vector<2x256xf32>
    %c0_21 = arith.constant 0 : index
    %c0_22 = arith.constant 0 : index
    %41 = vector.load %arg9[%c0_21, %c0_22] : memref<1x256xf32, #tpu.memory_space<vmem>>, vector<1x256xf32>
    %42 = vector.broadcast %41 : vector<1x256xf32> to vector<2x256xf32>
    %43 = arith.addf %40, %42 : vector<2x256xf32>
    %cst_23 = arith.constant 0.000000e+00 : f32
    %44 = vector.broadcast %cst_23 : f32 to vector<2x256xf32>
    %45 = arith.subf %44, %43 : vector<2x256xf32>
    %46 = math.exp %45 : vector<2x256xf32>
    %cst_24 = arith.constant 1.000000e+00 : f32
    %47 = vector.broadcast %cst_24 : f32 to vector<2x256xf32>
    %48 = arith.addf %47, %46 : vector<2x256xf32>
    %49 = tpu.reciprocal %48 {approx = true} : vector<2x256xf32> -> vector<2x256xf32>
    %c0_25 = arith.constant 0 : index
    %c0_26 = arith.constant 0 : index
    %50 = vector.load %arg10[%c0_25, %c0_26] : memref<2x256xf32, #tpu.memory_space<vmem>>, vector<2x256xf32>
    tpu.vector_store %arg10[%c0_25, %c0_26], %49 {strides = array<i32>} : memref<2x256xf32, #tpu.memory_space<vmem>>, vector<2x256xf32>,
    return
  }
  func.func @transform_0(%arg0: i32) -> (i32, i32) {
    %c0_i32 = arith.constant 0 : i32
    %c0_i32_0 = arith.constant 0 : i32
    return %arg0, %c0_i32 : i32, i32
  }
  func.func @transform_1(%arg0: i32) -> (i32, i32) {
    %c0_i32 = arith.constant 0 : i32
    %c0_i32_0 = arith.constant 0 : i32
    %c0_i32_1 = arith.constant 0 : i32
    return %c0_i32, %c0_i32_0 : i32, i32
  }
  func.func @transform_2(%arg0: i32) -> (i32, i32) {
    %c0_i32 = arith.constant 0 : i32
    %c0_i32_0 = arith.constant 0 : i32
    %c0_i32_1 = arith.constant 0 : i32
    return %c0_i32, %c0_i32_0 : i32, i32
  }
  func.func @transform_3(%arg0: i32) -> (i32, i32) {
    %c0_i32 = arith.constant 0 : i32
    %c0_i32_0 = arith.constant 0 : i32
    %c0_i32_1 = arith.constant 0 : i32
    return %c0_i32, %c0_i32_0 : i32, i32
  }
  func.func @transform_4(%arg0: i32) -> (i32, i32) {
    %c0_i32 = arith.constant 0 : i32
    %c0_i32_0 = arith.constant 0 : i32
    %c0_i32_1 = arith.constant 0 : i32
    return %c0_i32, %c0_i32_0 : i32, i32
  }
  func.func @transform_5(%arg0: i32) -> (i32, i32) {
    %c0_i32 = arith.constant 0 : i32
    %c0_i32_0 = arith.constant 0 : i32
    %c0_i32_1 = arith.constant 0 : i32
    return %c0_i32, %c0_i32_0 : i32, i32
  }
  func.func @transform_6(%arg0: i32) -> (i32, i32) {
    %c0_i32 = arith.constant 0 : i32
    %c0_i32_0 = arith.constant 0 : i32
    %c0_i32_1 = arith.constant 0 : i32
    return %c0_i32, %c0_i32_0 : i32, i32
  }
  func.func @transform_7(%arg0: i32) -> (i32, i32) {
    %c0_i32 = arith.constant 0 : i32
    %c0_i32_0 = arith.constant 0 : i32
    %c0_i32_1 = arith.constant 0 : i32
    return %c0_i32, %c0_i32_0 : i32, i32
  }
  func.func @transform_8(%arg0: i32) -> (i32, i32) {
    %c0_i32 = arith.constant 0 : i32
    %c0_i32_0 = arith.constant 0 : i32
    %c0_i32_1 = arith.constant 0 : i32
    return %c0_i32, %c0_i32_0 : i32, i32
  }
  func.func @transform_9(%arg0: i32) -> (i32, i32) {
    %c0_i32 = arith.constant 0 : i32
    %c0_i32_0 = arith.constant 0 : i32
    return %arg0, %c0_i32 : i32, i32
  }
}

</mosaic_0001>

<llo_original>
// kernel: _lambda_.1
$region0: #{_lambda_.1}
  #allocation0 [shape = 'u32[]', space=smem, size = 0x4, offset = 0x4, fixed_abs, tag = 'smem constant byte address 0x4 - core index']
  #allocation1 [shape = 'u32[72,128]{1,0:T(1,128)}', space=vmem, size = 0x9000, scoped, tag = 'internal scratch']
  %s0 = inlined_call_operand.vmem [shape: bf16[2,256], index: 0, kind: input, shape index: {}]
  %s1 = inlined_call_operand.hbm [shape: bf16[256,1024], index: 1, kind: input, shape index: {}]
  %s2 = inlined_call_operand.vmem [shape: f32[1,1024], index: 2, kind: input, shape index: {}]
  %s3 = inlined_call_operand.hbm [shape: bf16[256,512], index: 3, kind: input, shape index: {}]
  %s4 = inlined_call_operand.hbm [shape: f32[1,512], index: 4, kind: input, shape index: {}]
  %s5 = inlined_call_operand.vmem [shape: bf16[128,128], index: 5, kind: input, shape index: {}]
  %s6 = inlined_call_operand.vmem [shape: f32[1,128], index: 6, kind: input, shape index: {}]
  %s7 = inlined_call_operand.hbm [shape: bf16[128,256], index: 7, kind: input, shape index: {}]
  %s8 = inlined_call_operand.vmem [shape: f32[1,256], index: 8, kind: input, shape index: {}]
  %s9 = inlined_call_operand.vmem [shape: f32[2,256], index: 9, kind: output, shape index: {}]
  %s10 = sld [smem:[#allocation0]]
  $region62: #{_lambda_.1} parent=0
    _
  %s12 = ssub.s32 1, %s10
  %s13 = scalar_select 0, %s12, %s10
  $region1: #{_lambda_.1} parent=0
    #allocation2 [shape = 'u8[524288]{0}', space=vmem, size = 0x80000, scoped, tag = 'input window, operand 1, single buffered']
    #allocation3 [shape = 's32[1]{0}', space=sflag, size = 0x4, scoped, tag = 'scoped memory for _lambda_.1']
    #allocation4 [shape = 'u8[262144]{0}', space=vmem, size = 0x40000, scoped, tag = 'input window, operand 3, single buffered']
    #allocation5 [shape = 's32[1]{0}', space=sflag, size = 0x4, scoped, tag = 'scoped memory for _lambda_.1']
    #allocation6 [shape = 'u8[2048]{0}', space=vmem, size = 0x800, scoped, tag = 'input window, operand 4, single buffered']
    #allocation7 [shape = 'u8[65536]{0}', space=vmem, size = 0x10000, scoped, tag = 'input window, operand 7, single buffered']
    #allocation8 [shape = 's32[1]{0}', space=sflag, size = 0x4, scoped, tag = 'scoped memory for _lambda_.1']
    %14 = vsyncpa [#allocation3], 0
    %15 = vsyncpa [#allocation5], 0
    %16 = vsyncpa [#allocation8], 0
    // Predicated region
    $region2: #{_lambda_.1} parent=1 // pred_check
      _
    $region3: #{_lambda_.1} parent=1 // pred_check_branch
      %18 = sbr.rel (0) target = $region5
    $region4: #{_lambda_.1} parent=1 // pred_region
      _
    $region5: #{_lambda_.1} parent=1 // pred_fallthru
      _
    // Predicated region
    $region6: #{_lambda_.1} parent=1 // pred_check
      _
    $region7: #{_lambda_.1} parent=1 // pred_check_branch
      %20 = sbr.rel (0) target = $region9
    $region8: #{_lambda_.1} parent=1 // pred_region
      %22 = vsyncadd [#allocation3], 0
      %s23 = sshll.u32 %s1, 4
      %s24 = int_to_ptr.hbm [resolvable:$true] %s23
      %s25 = sshll.u32 [#allocation2], 4
      %s26 = int_to_ptr.vmem [resolvable:$true] %s25
      %31 = dma.hbm_to_vmem [thread:$0]  %s24, 16384, %s26, [#allocation3], 512, 512, 32
    $region9: #{_lambda_.1} parent=1 // pred_fallthru
      _
    // Predicated region
    $region10: #{_lambda_.1} parent=1 // pred_check
      _
    $region11: #{_lambda_.1} parent=1 // pred_check_branch
      %33 = sbr.rel (0) target = $region13
    $region12: #{_lambda_.1} parent=1 // pred_region
      _
    $region13: #{_lambda_.1} parent=1 // pred_fallthru
      _
    // Predicated region
    $region14: #{_lambda_.1} parent=1 // pred_check
      _
    $region15: #{_lambda_.1} parent=1 // pred_check_branch
      %35 = sbr.rel (0) target = $region17
    $region16: #{_lambda_.1} parent=1 // pred_region
      %37 = vsyncadd [#allocation5], 0
      %s38 = sshll.u32 %s3, 4
      %s39 = int_to_ptr.hbm [resolvable:$true] %s38
      %s40 = sshll.u32 [#allocation4], 4
      %s41 = int_to_ptr.vmem [resolvable:$true] %s40
      %46 = dma.hbm_to_vmem [thread:$0]  %s39, 8192, %s41, [#allocation5], 256, 256, 16
    $region17: #{_lambda_.1} parent=1 // pred_fallthru
      _
    // Predicated region
    $region18: #{_lambda_.1} parent=1 // pred_check
      _
    $region19: #{_lambda_.1} parent=1 // pred_check_branch
      %48 = sbr.rel (0) target = $region21
    $region20: #{_lambda_.1} parent=1 // pred_region
      %50 = vsyncadd [#allocation5], 0
      %s52 = sshll.u32 %s4, 4
      %s53 = int_to_ptr.hbm [resolvable:$true] %s52
      %s54 = sshll.u32 [#allocation6], 4
      %s55 = int_to_ptr.vmem [resolvable:$true] %s54
      %57 = dma.hbm_to_vmem [thread:$0]  %s53, 64, %s55, [#allocation5]
    $region21: #{_lambda_.1} parent=1 // pred_fallthru
      _
    // Predicated region
    $region22: #{_lambda_.1} parent=1 // pred_check
      _
    $region23: #{_lambda_.1} parent=1 // pred_check_branch
      %59 = sbr.rel (0) target = $region25
    $region24: #{_lambda_.1} parent=1 // pred_region
      _
    $region25: #{_lambda_.1} parent=1 // pred_fallthru
      _
    // Predicated region
    $region26: #{_lambda_.1} parent=1 // pred_check
      _
    $region27: #{_lambda_.1} parent=1 // pred_check_branch
      %61 = sbr.rel (0) target = $region29
    $region28: #{_lambda_.1} parent=1 // pred_region
      _
    $region29: #{_lambda_.1} parent=1 // pred_fallthru
      _
    // Predicated region
    $region30: #{_lambda_.1} parent=1 // pred_check
      _
    $region31: #{_lambda_.1} parent=1 // pred_check_branch
      %63 = sbr.rel (0) target = $region33
    $region32: #{_lambda_.1} parent=1 // pred_region
      %65 = vsyncadd [#allocation8], 0
      %s66 = sshll.u32 %s7, 4
      %s67 = int_to_ptr.hbm [resolvable:$true] %s66
      %s68 = sshll.u32 [#allocation7], 4
      %s69 = int_to_ptr.vmem [resolvable:$true] %s68
      %74 = dma.hbm_to_vmem [thread:$0]  %s67, 2048, %s69, [#allocation8], 128, 128, 8
    $region33: #{_lambda_.1} parent=1 // pred_fallthru
      _
    // Predicated region
    $region34: #{_lambda_.1} parent=1 // pred_check
      _
    $region35: #{_lambda_.1} parent=1 // pred_check_branch
      %76 = sbr.rel (0) target = $region37
    $region36: #{_lambda_.1} parent=1 // pred_region
      _
    $region37: #{_lambda_.1} parent=1 // pred_fallthru
      _
    // Predicated region
    $region38: #{_lambda_.1} parent=1 // pred_check
      _
    $region39: #{_lambda_.1} parent=1 // pred_check_branch
      %78 = sbr.rel (0) target = $region41
    $region40: #{_lambda_.1} parent=1 // pred_region
      %80 = dma.done [#allocation3], 16384
    $region41: #{_lambda_.1} parent=1 // pred_fallthru
      _
    // Predicated region
    $region42: #{_lambda_.1} parent=1 // pred_check
      _
    $region43: #{_lambda_.1} parent=1 // pred_check_branch
      %82 = sbr.rel (0) target = $region45
    $region44: #{_lambda_.1} parent=1 // pred_region
      %84 = dma.done [#allocation5], 8192
    $region45: #{_lambda_.1} parent=1 // pred_fallthru
      _
    // Predicated region
    $region46: #{_lambda_.1} parent=1 // pred_check
      _
    $region47: #{_lambda_.1} parent=1 // pred_check_branch
      %86 = sbr.rel (0) target = $region49
    $region48: #{_lambda_.1} parent=1 // pred_region
      %88 = dma.done [#allocation5], 64
    $region49: #{_lambda_.1} parent=1 // pred_fallthru
      _
    // Predicated region
    $region50: #{_lambda_.1} parent=1 // pred_check
      _
    $region51: #{_lambda_.1} parent=1 // pred_check_branch
      %90 = sbr.rel (0) target = $region53
    $region52: #{_lambda_.1} parent=1 // pred_region
      %92 = dma.done [#allocation8], 2048
    $region53: #{_lambda_.1} parent=1 // pred_fallthru
      _
    %v93 = vld [vmem:[%s0] sm:$0x3]
    %v94 = vld [vmem:[#allocation2] sm:$0xff]
    %v95 = vld [vmem:[#allocation2 + $0x8] sm:$0xff]
    %v96 = vld [vmem:[#allocation2 + $0x10] sm:$0xff]
    %v97 = vld [vmem:[#allocation2 + $0x18] sm:$0xff]
    %v98 = vld [vmem:[#allocation2 + $0x20] sm:$0xff]
    %v99 = vld [vmem:[#allocation2 + $0x28] sm:$0xff]
    %v100 = vld [vmem:[#allocation2 + $0x30] sm:$0xff]
    %v101 = vld [vmem:[#allocation2 + $0x38] sm:$0xff]
    %v102 = vld [vmem:[#allocation2 + $0x40] sm:$0xff]
    %v103 = vld [vmem:[#allocation2 + $0x48] sm:$0xff]
    %v104 = vld [vmem:[#allocation2 + $0x50] sm:$0xff]
    %v105 = vld [vmem:[#allocation2 + $0x58] sm:$0xff]
    %v106 = vld [vmem:[#allocation2 + $0x60] sm:$0xff]
    %v107 = vld [vmem:[#allocation2 + $0x68] sm:$0xff]
    %v108 = vld [vmem:[#allocation2 + $0x70] sm:$0xff]
    %v109 = vld [vmem:[#allocation2 + $0x78] sm:$0xff]
    %v110 = vld [vmem:[#allocation2 + $0x80] sm:$0xff]
    %v111 = vld [vmem:[#allocation2 + $0x88] sm:$0xff]
    %v112 = vld [vmem:[#allocation2 + $0x90] sm:$0xff]
    %v113 = vld [vmem:[#allocation2 + $0x98] sm:$0xff]
    %v114 = vld [vmem:[#allocation2 + $0xa0] sm:$0xff]
    %v115 = vld [vmem:[#allocation2 + $0xa8] sm:$0xff]
    %v116 = vld [vmem:[#allocation2 + $0xb0] sm:$0xff]
    %v117 = vld [vmem:[#allocation2 + $0xb8] sm:$0xff]
    %v118 = vld [vmem:[#allocation2 + $0xc0] sm:$0xff]
    %v119 = vld [vmem:[#allocation2 + $0xc8] sm:$0xff]
    %v120 = vld [vmem:[#allocation2 + $0xd0] sm:$0xff]
    %v121 = vld [vmem:[#allocation2 + $0xd8] sm:$0xff]
    %v122 = vld [vmem:[#allocation2 + $0xe0] sm:$0xff]
    %v123 = vld [vmem:[#allocation2 + $0xe8] sm:$0xff]
    %v124 = vld [vmem:[#allocation2 + $0xf0] sm:$0xff]
    %v125 = vld [vmem:[#allocation2 + $0xf8] sm:$0xff]
    %v126 = vld [vmem:[#allocation2 + $0x100] sm:$0xff]
    %v127 = vld [vmem:[#allocation2 + $0x108] sm:$0xff]
    %v128 = vld [vmem:[#allocation2 + $0x110] sm:$0xff]
    %v129 = vld [vmem:[#allocation2 + $0x118] sm:$0xff]
    %v130 = vld [vmem:[#allocation2 + $0x120] sm:$0xff]
    %v131 = vld [vmem:[#allocation2 + $0x128] sm:$0xff]
    %v132 = vld [vmem:[#allocation2 + $0x130] sm:$0xff]
    %v133 = vld [vmem:[#allocation2 + $0x138] sm:$0xff]
    %v134 = vld [vmem:[#allocation2 + $0x140] sm:$0xff]
    %v135 = vld [vmem:[#allocation2 + $0x148] sm:$0xff]
    %v136 = vld [vmem:[#allocation2 + $0x150] sm:$0xff]
    %v137 = vld [vmem:[#allocation2 + $0x158] sm:$0xff]
    %v138 = vld [vmem:[#allocation2 + $0x160] sm:$0xff]
    %v139 = vld [vmem:[#allocation2 + $0x168] sm:$0xff]
    %v140 = vld [vmem:[#allocation2 + $0x170] sm:$0xff]
    %v141 = vld [vmem:[#allocation2 + $0x178] sm:$0xff]
    %v142 = vld [vmem:[#allocation2 + $0x180] sm:$0xff]
    %v143 = vld [vmem:[#allocation2 + $0x188] sm:$0xff]
    %v144 = vld [vmem:[#allocation2 + $0x190] sm:$0xff]
    %v145 = vld [vmem:[#allocation2 + $0x198] sm:$0xff]
    %v146 = vld [vmem:[#allocation2 + $0x1a0] sm:$0xff]
    %v147 = vld [vmem:[#allocation2 + $0x1a8] sm:$0xff]
    %v148 = vld [vmem:[#allocation2 + $0x1b0] sm:$0xff]
    %v149 = vld [vmem:[#allocation2 + $0x1b8] sm:$0xff]
    %v150 = vld [vmem:[#allocation2 + $0x1c0] sm:$0xff]
    %v151 = vld [vmem:[#allocation2 + $0x1c8] sm:$0xff]
    %v152 = vld [vmem:[#allocation2 + $0x1d0] sm:$0xff]
    %v153 = vld [vmem:[#allocation2 + $0x1d8] sm:$0xff]
    %v154 = vld [vmem:[#allocation2 + $0x1e0] sm:$0xff]
    %v155 = vld [vmem:[#allocation2 + $0x1e8] sm:$0xff]
    %v156 = vld [vmem:[#allocation2 + $0x1f0] sm:$0xff]
    %v157 = vld [vmem:[#allocation2 + $0x1f8] sm:$0xff]
    %v158 = vld [vmem:[#allocation2 + $0x200] sm:$0xff]
    %v159 = vld [vmem:[#allocation2 + $0x208] sm:$0xff]
    %v160 = vld [vmem:[#allocation2 + $0x210] sm:$0xff]
    %v161 = vld [vmem:[#allocation2 + $0x218] sm:$0xff]
    %v162 = vld [vmem:[#allocation2 + $0x220] sm:$0xff]
    %v163 = vld [vmem:[#allocation2 + $0x228] sm:$0xff]
    %v164 = vld [vmem:[#allocation2 + $0x230] sm:$0xff]
    %v165 = vld [vmem:[#allocation2 + $0x238] sm:$0xff]
    %v166 = vld [vmem:[#allocation2 + $0x240] sm:$0xff]
    %v167 = vld [vmem:[#allocation2 + $0x248] sm:$0xff]
    %v168 = vld [vmem:[#allocation2 + $0x250] sm:$0xff]
    %v169 = vld [vmem:[#allocation2 + $0x258] sm:$0xff]
    %v170 = vld [vmem:[#allocation2 + $0x260] sm:$0xff]
    %v171 = vld [vmem:[#allocation2 + $0x268] sm:$0xff]
    %v172 = vld [vmem:[#allocation2 + $0x270] sm:$0xff]
    %v173 = vld [vmem:[#allocation2 + $0x278] sm:$0xff]
    %v174 = vld [vmem:[#allocation2 + $0x280] sm:$0xff]
    %v175 = vld [vmem:[#allocation2 + $0x288] sm:$0xff]
    %v176 = vld [vmem:[#allocation2 + $0x290] sm:$0xff]
    %v177 = vld [vmem:[#allocation2 + $0x298] sm:$0xff]
    %v178 = vld [vmem:[#allocation2 + $0x2a0] sm:$0xff]
    %v179 = vld [vmem:[#allocation2 + $0x2a8] sm:$0xff]
    %v180 = vld [vmem:[#allocation2 + $0x2b0] sm:$0xff]
    %v181 = vld [vmem:[#allocation2 + $0x2b8] sm:$0xff]
    %v182 = vld [vmem:[#allocation2 + $0x2c0] sm:$0xff]
    %v183 = vld [vmem:[#allocation2 + $0x2c8] sm:$0xff]
    %v184 = vld [vmem:[#allocation2 + $0x2d0] sm:$0xff]
    %v185 = vld [vmem:[#allocation2 + $0x2d8] sm:$0xff]
    %v186 = vld [vmem:[#allocation2 + $0x2e0] sm:$0xff]
    %v187 = vld [vmem:[#allocation2 + $0x2e8] sm:$0xff]
    %v188 = vld [vmem:[#allocation2 + $0x2f0] sm:$0xff]
    %v189 = vld [vmem:[#allocation2 + $0x2f8] sm:$0xff]
    %v190 = vld [vmem:[#allocation2 + $0x300] sm:$0xff]
    %v191 = vld [vmem:[#allocation2 + $0x308] sm:$0xff]
    %v192 = vld [vmem:[#allocation2 + $0x310] sm:$0xff]
    %v193 = vld [vmem:[#allocation2 + $0x318] sm:$0xff]
    %v194 = vld [vmem:[#allocation2 + $0x320] sm:$0xff]
    %v195 = vld [vmem:[#allocation2 + $0x328] sm:$0xff]
    %v196 = vld [vmem:[#allocation2 + $0x330] sm:$0xff]
    %v197 = vld [vmem:[#allocation2 + $0x338] sm:$0xff]
    %v198 = vld [vmem:[#allocation2 + $0x340] sm:$0xff]
    %v199 = vld [vmem:[#allocation2 + $0x348] sm:$0xff]
    %v200 = vld [vmem:[#allocation2 + $0x350] sm:$0xff]
    %v201 = vld [vmem:[#allocation2 + $0x358] sm:$0xff]
    %v202 = vld [vmem:[#allocation2 + $0x360] sm:$0xff]
    %v203 = vld [vmem:[#allocation2 + $0x368] sm:$0xff]
    %v204 = vld [vmem:[#allocation2 + $0x370] sm:$0xff]
    %v205 = vld [vmem:[#allocation2 + $0x378] sm:$0xff]
    %v206 = vld [vmem:[#allocation2 + $0x380] sm:$0xff]
    %v207 = vld [vmem:[#allocation2 + $0x388] sm:$0xff]
    %v208 = vld [vmem:[#allocation2 + $0x390] sm:$0xff]
    %v209 = vld [vmem:[#allocation2 + $0x398] sm:$0xff]
    %v210 = vld [vmem:[#allocation2 + $0x3a0] sm:$0xff]
    %v211 = vld [vmem:[#allocation2 + $0x3a8] sm:$0xff]
    %v212 = vld [vmem:[#allocation2 + $0x3b0] sm:$0xff]
    %v213 = vld [vmem:[#allocation2 + $0x3b8] sm:$0xff]
    %v214 = vld [vmem:[#allocation2 + $0x3c0] sm:$0xff]
    %v215 = vld [vmem:[#allocation2 + $0x3c8] sm:$0xff]
    %v216 = vld [vmem:[#allocation2 + $0x3d0] sm:$0xff]
    %v217 = vld [vmem:[#allocation2 + $0x3d8] sm:$0xff]
    %v218 = vld [vmem:[#allocation2 + $0x3e0] sm:$0xff]
    %v219 = vld [vmem:[#allocation2 + $0x3e8] sm:$0xff]
    %v220 = vld [vmem:[#allocation2 + $0x3f0] sm:$0xff]
    %v221 = vld [vmem:[#allocation2 + $0x3f8] sm:$0xff]
    %v222 = vld [vmem:[%s2] sm:$0xff]
    %v224 = vperm.slane %v222, 0
    %v225 = vperm.slane %v222, 1
    %v226 = vperm.slane %v222, 2
    %v227 = vperm.slane %v222, 3
    %v228 = vperm.slane %v222, 4
    %v229 = vperm.slane %v222, 5
    %v230 = vperm.slane %v222, 6
    %v231 = vperm.slane %v222, 7
    %241 = vst [vmem:[#allocation1] ss:$9 sm:$0xff] %v93
    %v242 = vld [vmem:[#allocation1] sm:$0xff]
    %v243 = vld [vmem:[#allocation1 + $0x9] sm:$0xff]
    %v374 = vunpack.c.l.b16 %v94
    %v375 = vunpack.c.h.b16 %v94
    %v376 = vunpack.c.l.b16 %v95
    %v377 = vunpack.c.h.b16 %v95
    %v378 = vunpack.c.l.b16 %v96
    %v379 = vunpack.c.h.b16 %v96
    %v380 = vunpack.c.l.b16 %v97
    %v381 = vunpack.c.h.b16 %v97
    %v382 = vunpack.c.l.b16 %v98
    %v383 = vunpack.c.h.b16 %v98
    %v384 = vunpack.c.l.b16 %v99
    %v385 = vunpack.c.h.b16 %v99
    %v386 = vunpack.c.l.b16 %v100
    %v387 = vunpack.c.h.b16 %v100
    %v388 = vunpack.c.l.b16 %v101
    %v389 = vunpack.c.h.b16 %v101
    %v390 = vunpack.c.l.b16 %v102
    %v391 = vunpack.c.h.b16 %v102
    %v392 = vunpack.c.l.b16 %v103
    %v393 = vunpack.c.h.b16 %v103
    %v394 = vunpack.c.l.b16 %v104
    %v395 = vunpack.c.h.b16 %v104
    %v396 = vunpack.c.l.b16 %v105
    %v397 = vunpack.c.h.b16 %v105
    %v398 = vunpack.c.l.b16 %v106
    %v399 = vunpack.c.h.b16 %v106
    %v400 = vunpack.c.l.b16 %v107
    %v401 = vunpack.c.h.b16 %v107
    %v402 = vunpack.c.l.b16 %v108
    %v403 = vunpack.c.h.b16 %v108
    %v404 = vunpack.c.l.b16 %v109
    %v405 = vunpack.c.h.b16 %v109
    %v406 = vunpack.c.l.b16 %v110
    %v407 = vunpack.c.h.b16 %v110
    %v408 = vunpack.c.l.b16 %v111
    %v409 = vunpack.c.h.b16 %v111
    %v410 = vunpack.c.l.b16 %v112
    %v411 = vunpack.c.h.b16 %v112
    %v412 = vunpack.c.l.b16 %v113
    %v413 = vunpack.c.h.b16 %v113
    %v414 = vunpack.c.l.b16 %v114
    %v415 = vunpack.c.h.b16 %v114
    %v416 = vunpack.c.l.b16 %v115
    %v417 = vunpack.c.h.b16 %v115
    %v418 = vunpack.c.l.b16 %v116
    %v419 = vunpack.c.h.b16 %v116
    %v420 = vunpack.c.l.b16 %v117
    %v421 = vunpack.c.h.b16 %v117
    %v422 = vunpack.c.l.b16 %v118
    %v423 = vunpack.c.h.b16 %v118
    %v424 = vunpack.c.l.b16 %v119
    %v425 = vunpack.c.h.b16 %v119
    %v426 = vunpack.c.l.b16 %v120
    %v427 = vunpack.c.h.b16 %v120
    %v428 = vunpack.c.l.b16 %v121
    %v429 = vunpack.c.h.b16 %v121
    %v430 = vunpack.c.l.b16 %v122
    %v431 = vunpack.c.h.b16 %v122
    %v432 = vunpack.c.l.b16 %v123
    %v433 = vunpack.c.h.b16 %v123
    %v434 = vunpack.c.l.b16 %v124
    %v435 = vunpack.c.h.b16 %v124
    %v436 = vunpack.c.l.b16 %v125
    %v437 = vunpack.c.h.b16 %v125
    %v438 = vunpack.c.l.b16 %v126
    %v439 = vunpack.c.h.b16 %v126
    %v440 = vunpack.c.l.b16 %v127
    %v441 = vunpack.c.h.b16 %v127
    %v442 = vunpack.c.l.b16 %v128
    %v443 = vunpack.c.h.b16 %v128
    %v444 = vunpack.c.l.b16 %v129
    %v445 = vunpack.c.h.b16 %v129
    %v446 = vunpack.c.l.b16 %v130
    %v447 = vunpack.c.h.b16 %v130
    %v448 = vunpack.c.l.b16 %v131
    %v449 = vunpack.c.h.b16 %v131
    %v450 = vunpack.c.l.b16 %v132
    %v451 = vunpack.c.h.b16 %v132
    %v452 = vunpack.c.l.b16 %v133
    %v453 = vunpack.c.h.b16 %v133
    %v454 = vunpack.c.l.b16 %v134
    %v455 = vunpack.c.h.b16 %v134
    %v456 = vunpack.c.l.b16 %v135
    %v457 = vunpack.c.h.b16 %v135
    %v458 = vunpack.c.l.b16 %v136
    %v459 = vunpack.c.h.b16 %v136
    %v460 = vunpack.c.l.b16 %v137
    %v461 = vunpack.c.h.b16 %v137
    %v462 = vunpack.c.l.b16 %v138
    %v463 = vunpack.c.h.b16 %v138
    %v464 = vunpack.c.l.b16 %v139
    %v465 = vunpack.c.h.b16 %v139
    %v466 = vunpack.c.l.b16 %v140
    %v467 = vunpack.c.h.b16 %v140
    %v468 = vunpack.c.l.b16 %v141
    %v469 = vunpack.c.h.b16 %v141
    %v470 = vunpack.c.l.b16 %v142
    %v471 = vunpack.c.h.b16 %v142
    %v472 = vunpack.c.l.b16 %v143
    %v473 = vunpack.c.h.b16 %v143
    %v474 = vunpack.c.l.b16 %v144
    %v475 = vunpack.c.h.b16 %v144
    %v476 = vunpack.c.l.b16 %v145
    %v477 = vunpack.c.h.b16 %v145
    %v478 = vunpack.c.l.b16 %v146
    %v479 = vunpack.c.h.b16 %v146
    %v480 = vunpack.c.l.b16 %v147
    %v481 = vunpack.c.h.b16 %v147
    %v482 = vunpack.c.l.b16 %v148
    %v483 = vunpack.c.h.b16 %v148
    %v484 = vunpack.c.l.b16 %v149
    %v485 = vunpack.c.h.b16 %v149
    %v486 = vunpack.c.l.b16 %v150
    %v487 = vunpack.c.h.b16 %v150
    %v488 = vunpack.c.l.b16 %v151
    %v489 = vunpack.c.h.b16 %v151
    %v490 = vunpack.c.l.b16 %v152
    %v491 = vunpack.c.h.b16 %v152
    %v492 = vunpack.c.l.b16 %v153
    %v493 = vunpack.c.h.b16 %v153
    %v494 = vunpack.c.l.b16 %v154
    %v495 = vunpack.c.h.b16 %v154
    %v496 = vunpack.c.l.b16 %v155
    %v497 = vunpack.c.h.b16 %v155
    %v498 = vunpack.c.l.b16 %v156
    %v499 = vunpack.c.h.b16 %v156
    %v500 = vunpack.c.l.b16 %v157
    %v501 = vunpack.c.h.b16 %v157
    %v502 = vunpack.c.l.b16 %v158
    %v503 = vunpack.c.h.b16 %v158
    %v504 = vunpack.c.l.b16 %v159
    %v505 = vunpack.c.h.b16 %v159
    %v506 = vunpack.c.l.b16 %v160
    %v507 = vunpack.c.h.b16 %v160
    %v508 = vunpack.c.l.b16 %v161
    %v509 = vunpack.c.h.b16 %v161
    %v510 = vunpack.c.l.b16 %v162
    %v511 = vunpack.c.h.b16 %v162
    %v512 = vunpack.c.l.b16 %v163
    %v513 = vunpack.c.h.b16 %v163
    %v514 = vunpack.c.l.b16 %v164
    %v515 = vunpack.c.h.b16 %v164
    %v516 = vunpack.c.l.b16 %v165
    %v517 = vunpack.c.h.b16 %v165
    %v518 = vunpack.c.l.b16 %v166
    %v519 = vunpack.c.h.b16 %v166
    %v520 = vunpack.c.l.b16 %v167
    %v521 = vunpack.c.h.b16 %v167
    %v522 = vunpack.c.l.b16 %v168
    %v523 = vunpack.c.h.b16 %v168
    %v524 = vunpack.c.l.b16 %v169
    %v525 = vunpack.c.h.b16 %v169
    %v526 = vunpack.c.l.b16 %v170
    %v527 = vunpack.c.h.b16 %v170
    %v528 = vunpack.c.l.b16 %v171
    %v529 = vunpack.c.h.b16 %v171
    %v530 = vunpack.c.l.b16 %v172
    %v531 = vunpack.c.h.b16 %v172
    %v532 = vunpack.c.l.b16 %v173
    %v533 = vunpack.c.h.b16 %v173
    %v534 = vunpack.c.l.b16 %v174
    %v535 = vunpack.c.h.b16 %v174
    %v536 = vunpack.c.l.b16 %v175
    %v537 = vunpack.c.h.b16 %v175
    %v538 = vunpack.c.l.b16 %v176
    %v539 = vunpack.c.h.b16 %v176
    %v540 = vunpack.c.l.b16 %v177
    %v541 = vunpack.c.h.b16 %v177
    %v542 = vunpack.c.l.b16 %v178
    %v543 = vunpack.c.h.b16 %v178
    %v544 = vunpack.c.l.b16 %v179
    %v545 = vunpack.c.h.b16 %v179
    %v546 = vunpack.c.l.b16 %v180
    %v547 = vunpack.c.h.b16 %v180
    %v548 = vunpack.c.l.b16 %v181
    %v549 = vunpack.c.h.b16 %v181
    %v550 = vunpack.c.l.b16 %v182
    %v551 = vunpack.c.h.b16 %v182
    %v552 = vunpack.c.l.b16 %v183
    %v553 = vunpack.c.h.b16 %v183
    %v554 = vunpack.c.l.b16 %v184
    %v555 = vunpack.c.h.b16 %v184
    %v556 = vunpack.c.l.b16 %v185
    %v557 = vunpack.c.h.b16 %v185
    %v558 = vunpack.c.l.b16 %v186
    %v559 = vunpack.c.h.b16 %v186
    %v560 = vunpack.c.l.b16 %v187
    %v561 = vunpack.c.h.b16 %v187
    %v562 = vunpack.c.l.b16 %v188
    %v563 = vunpack.c.h.b16 %v188
    %v564 = vunpack.c.l.b16 %v189
    %v565 = vunpack.c.h.b16 %v189
    %v566 = vunpack.c.l.b16 %v190
    %v567 = vunpack.c.h.b16 %v190
    %v568 = vunpack.c.l.b16 %v191
    %v569 = vunpack.c.h.b16 %v191
    %v570 = vunpack.c.l.b16 %v192
    %v571 = vunpack.c.h.b16 %v192
    %v572 = vunpack.c.l.b16 %v193
    %v573 = vunpack.c.h.b16 %v193
    %v574 = vunpack.c.l.b16 %v194
    %v575 = vunpack.c.h.b16 %v194
    %v576 = vunpack.c.l.b16 %v195
    %v577 = vunpack.c.h.b16 %v195
    %v578 = vunpack.c.l.b16 %v196
    %v579 = vunpack.c.h.b16 %v196
    %v580 = vunpack.c.l.b16 %v197
    %v581 = vunpack.c.h.b16 %v197
    %v582 = vunpack.c.l.b16 %v198
    %v583 = vunpack.c.h.b16 %v198
    %v584 = vunpack.c.l.b16 %v199
    %v585 = vunpack.c.h.b16 %v199
    %v586 = vunpack.c.l.b16 %v200
    %v587 = vunpack.c.h.b16 %v200
    %v588 = vunpack.c.l.b16 %v201
    %v589 = vunpack.c.h.b16 %v201
    %v590 = vunpack.c.l.b16 %v202
    %v591 = vunpack.c.h.b16 %v202
    %v592 = vunpack.c.l.b16 %v203
    %v593 = vunpack.c.h.b16 %v203
    %v594 = vunpack.c.l.b16 %v204
    %v595 = vunpack.c.h.b16 %v204
    %v596 = vunpack.c.l.b16 %v205
    %v597 = vunpack.c.h.b16 %v205
    %v598 = vunpack.c.l.b16 %v206
    %v599 = vunpack.c.h.b16 %v206
    %v600 = vunpack.c.l.b16 %v207
    %v601 = vunpack.c.h.b16 %v207
    %v602 = vunpack.c.l.b16 %v208
    %v603 = vunpack.c.h.b16 %v208
    %v604 = vunpack.c.l.b16 %v209
    %v605 = vunpack.c.h.b16 %v209
    %v606 = vunpack.c.l.b16 %v210
    %v607 = vunpack.c.h.b16 %v210
    %v608 = vunpack.c.l.b16 %v211
    %v609 = vunpack.c.h.b16 %v211
    %v610 = vunpack.c.l.b16 %v212
    %v611 = vunpack.c.h.b16 %v212
    %v612 = vunpack.c.l.b16 %v213
    %v613 = vunpack.c.h.b16 %v213
    %v614 = vunpack.c.l.b16 %v214
    %v615 = vunpack.c.h.b16 %v214
    %v616 = vunpack.c.l.b16 %v215
    %v617 = vunpack.c.h.b16 %v215
    %v618 = vunpack.c.l.b16 %v216
    %v619 = vunpack.c.h.b16 %v216
    %v620 = vunpack.c.l.b16 %v217
    %v621 = vunpack.c.h.b16 %v217
    %v622 = vunpack.c.l.b16 %v218
    %v623 = vunpack.c.h.b16 %v218
    %v624 = vunpack.c.l.b16 %v219
    %v625 = vunpack.c.h.b16 %v219
    %v626 = vunpack.c.l.b16 %v220
    %v627 = vunpack.c.h.b16 %v220
    %v628 = vunpack.c.l.b16 %v221
    %v629 = vunpack.c.h.b16 %v221
    %v630 = vpack.c.b16 %v382, %v374
    %v631 = vpack.c.b16 %v383, %v375
    %v632 = vpack.c.b16 %v384, %v376
    %v633 = vpack.c.b16 %v385, %v377
    %v634 = vpack.c.b16 %v386, %v378
    %v635 = vpack.c.b16 %v387, %v379
    %v636 = vpack.c.b16 %v388, %v380
    %v637 = vpack.c.b16 %v389, %v381
    %v638 = vpack.c.b16 %v398, %v390
    %v639 = vpack.c.b16 %v399, %v391
    %v640 = vpack.c.b16 %v400, %v392
    %v641 = vpack.c.b16 %v401, %v393
    %v642 = vpack.c.b16 %v402, %v394
    %v643 = vpack.c.b16 %v403, %v395
    %v644 = vpack.c.b16 %v404, %v396
    %v645 = vpack.c.b16 %v405, %v397
    %v646 = vpack.c.b16 %v414, %v406
    %v647 = vpack.c.b16 %v415, %v407
    %v648 = vpack.c.b16 %v416, %v408
    %v649 = vpack.c.b16 %v417, %v409
    %v650 = vpack.c.b16 %v418, %v410
    %v651 = vpack.c.b16 %v419, %v411
    %v652 = vpack.c.b16 %v420, %v412
    %v653 = vpack.c.b16 %v421, %v413
    %v654 = vpack.c.b16 %v430, %v422
    %v655 = vpack.c.b16 %v431, %v423
    %v656 = vpack.c.b16 %v432, %v424
    %v657 = vpack.c.b16 %v433, %v425
    %v658 = vpack.c.b16 %v434, %v426
    %v659 = vpack.c.b16 %v435, %v427
    %v660 = vpack.c.b16 %v436, %v428
    %v661 = vpack.c.b16 %v437, %v429
    %v662 = vpack.c.b16 %v446, %v438
    %v663 = vpack.c.b16 %v447, %v439
    %v664 = vpack.c.b16 %v448, %v440
    %v665 = vpack.c.b16 %v449, %v441
    %v666 = vpack.c.b16 %v450, %v442
    %v667 = vpack.c.b16 %v451, %v443
    %v668 = vpack.c.b16 %v452, %v444
    %v669 = vpack.c.b16 %v453, %v445
    %v670 = vpack.c.b16 %v462, %v454
    %v671 = vpack.c.b16 %v463, %v455
    %v672 = vpack.c.b16 %v464, %v456
    %v673 = vpack.c.b16 %v465, %v457
    %v674 = vpack.c.b16 %v466, %v458
    %v675 = vpack.c.b16 %v467, %v459
    %v676 = vpack.c.b16 %v468, %v460
    %v677 = vpack.c.b16 %v469, %v461
    %v678 = vpack.c.b16 %v478, %v470
    %v679 = vpack.c.b16 %v479, %v471
    %v680 = vpack.c.b16 %v480, %v472
    %v681 = vpack.c.b16 %v481, %v473
    %v682 = vpack.c.b16 %v482, %v474
    %v683 = vpack.c.b16 %v483, %v475
    %v684 = vpack.c.b16 %v484, %v476
    %v685 = vpack.c.b16 %v485, %v477
    %v686 = vpack.c.b16 %v494, %v486
    %v687 = vpack.c.b16 %v495, %v487
    %v688 = vpack.c.b16 %v496, %v488
    %v689 = vpack.c.b16 %v497, %v489
    %v690 = vpack.c.b16 %v498, %v490
    %v691 = vpack.c.b16 %v499, %v491
    %v692 = vpack.c.b16 %v500, %v492
    %v693 = vpack.c.b16 %v501, %v493
    %v694 = vpack.c.b16 %v510, %v502
    %v695 = vpack.c.b16 %v511, %v503
    %v696 = vpack.c.b16 %v512, %v504
    %v697 = vpack.c.b16 %v513, %v505
    %v698 = vpack.c.b16 %v514, %v506
    %v699 = vpack.c.b16 %v515, %v507
    %v700 = vpack.c.b16 %v516, %v508
    %v701 = vpack.c.b16 %v517, %v509
    %v702 = vpack.c.b16 %v526, %v518
    %v703 = vpack.c.b16 %v527, %v519
    %v704 = vpack.c.b16 %v528, %v520
    %v705 = vpack.c.b16 %v529, %v521
    %v706 = vpack.c.b16 %v530, %v522
    %v707 = vpack.c.b16 %v531, %v523
    %v708 = vpack.c.b16 %v532, %v524
    %v709 = vpack.c.b16 %v533, %v525
    %v710 = vpack.c.b16 %v542, %v534
    %v711 = vpack.c.b16 %v543, %v535
    %v712 = vpack.c.b16 %v544, %v536
    %v713 = vpack.c.b16 %v545, %v537
    %v714 = vpack.c.b16 %v546, %v538
    %v715 = vpack.c.b16 %v547, %v539
    %v716 = vpack.c.b16 %v548, %v540
    %v717 = vpack.c.b16 %v549, %v541
    %v718 = vpack.c.b16 %v558, %v550
    %v719 = vpack.c.b16 %v559, %v551
    %v720 = vpack.c.b16 %v560, %v552
    %v721 = vpack.c.b16 %v561, %v553
    %v722 = vpack.c.b16 %v562, %v554
    %v723 = vpack.c.b16 %v563, %v555
    %v724 = vpack.c.b16 %v564, %v556
    %v725 = vpack.c.b16 %v565, %v557
    %v726 = vpack.c.b16 %v574, %v566
    %v727 = vpack.c.b16 %v575, %v567
    %v728 = vpack.c.b16 %v576, %v568
    %v729 = vpack.c.b16 %v577, %v569
    %v730 = vpack.c.b16 %v578, %v570
    %v731 = vpack.c.b16 %v579, %v571
    %v732 = vpack.c.b16 %v580, %v572
    %v733 = vpack.c.b16 %v581, %v573
    %v734 = vpack.c.b16 %v590, %v582
    %v735 = vpack.c.b16 %v591, %v583
    %v736 = vpack.c.b16 %v592, %v584
    %v737 = vpack.c.b16 %v593, %v585
    %v738 = vpack.c.b16 %v594, %v586
    %v739 = vpack.c.b16 %v595, %v587
    %v740 = vpack.c.b16 %v596, %v588
    %v741 = vpack.c.b16 %v597, %v589
    %v742 = vpack.c.b16 %v606, %v598
    %v743 = vpack.c.b16 %v607, %v599
    %v744 = vpack.c.b16 %v608, %v600
    %v745 = vpack.c.b16 %v609, %v601
    %v746 = vpack.c.b16 %v610, %v602
    %v747 = vpack.c.b16 %v611, %v603
    %v748 = vpack.c.b16 %v612, %v604
    %v749 = vpack.c.b16 %v613, %v605
    %v750 = vpack.c.b16 %v622, %v614
    %v751 = vpack.c.b16 %v623, %v615
    %v752 = vpack.c.b16 %v624, %v616
    %v753 = vpack.c.b16 %v625, %v617
    %v754 = vpack.c.b16 %v626, %v618
    %v755 = vpack.c.b16 %v627, %v619
    %v756 = vpack.c.b16 %v628, %v620
    %v757 = vpack.c.b16 %v629, %v621
    %886 = vmatpush.bf16.msra.mxu0 %v686
    %887 = vmatpush.bf16.msra.mxu0 %v678
    %888 = vmatpush.bf16.msra.mxu0 %v670
    %889 = vmatpush.bf16.msra.mxu0 %v662
    %890 = vmatpush.bf16.msra.mxu0 %v654
    %891 = vmatpush.bf16.msra.mxu0 %v646
    %892 = vmatpush.bf16.msra.mxu0 %v638
    %893 = vmatpush.bf16.msra.mxu0 %v630
    %894 = vmatmul.bf16.gmra.mxu0 %v242
    %v895 = vpop.f32.mrf.mxu0
    %v896 = vadd.f32 %v224, %v895
    %v897 = vpop.f32.mrf.mxu0
    %898 = vdwg.mxu0
    %899 = vmatpush.bf16.msra.mxu0 %v750
    %900 = vmatpush.bf16.msra.mxu0 %v742
    %901 = vmatpush.bf16.msra.mxu0 %v734
    %902 = vmatpush.bf16.msra.mxu0 %v726
    %903 = vmatpush.bf16.msra.mxu0 %v718
    %904 = vmatpush.bf16.msra.mxu0 %v710
    %905 = vmatpush.bf16.msra.mxu0 %v702
    %906 = vmatpush.bf16.msra.mxu0 %v694
    %907 = vmatmul.bf16.gmra.mxu0 %v243
    %v908 = vpop.f32.mrf.mxu0
    %v909 = vadd.f32 %v896, %v908
    %v910 = vpop.f32.mrf.mxu0
    %911 = vdwg.mxu0
    %912 = vmatpush.bf16.msra.mxu0 %v687
    %913 = vmatpush.bf16.msra.mxu0 %v679
    %914 = vmatpush.bf16.msra.mxu0 %v671
    %915 = vmatpush.bf16.msra.mxu0 %v663
    %916 = vmatpush.bf16.msra.mxu0 %v655
    %917 = vmatpush.bf16.msra.mxu0 %v647
    %918 = vmatpush.bf16.msra.mxu0 %v639
    %919 = vmatpush.bf16.msra.mxu0 %v631
    %920 = vmatmul.bf16.gmra.mxu0 %v242
    %v921 = vpop.f32.mrf.mxu0
    %v922 = vadd.f32 %v225, %v921
    %v923 = vpop.f32.mrf.mxu0
    %924 = vdwg.mxu0
    %925 = vmatpush.bf16.msra.mxu0 %v751
    %926 = vmatpush.bf16.msra.mxu0 %v743
    %927 = vmatpush.bf16.msra.mxu0 %v735
    %928 = vmatpush.bf16.msra.mxu0 %v727
    %929 = vmatpush.bf16.msra.mxu0 %v719
    %930 = vmatpush.bf16.msra.mxu0 %v711
    %931 = vmatpush.bf16.msra.mxu0 %v703
    %932 = vmatpush.bf16.msra.mxu0 %v695
    %933 = vmatmul.bf16.gmra.mxu0 %v243
    %v934 = vpop.f32.mrf.mxu0
    %v935 = vadd.f32 %v922, %v934
    %v936 = vpop.f32.mrf.mxu0
    %937 = vdwg.mxu0
    %938 = vmatpush.bf16.msra.mxu0 %v688
    %939 = vmatpush.bf16.msra.mxu0 %v680
    %940 = vmatpush.bf16.msra.mxu0 %v672
    %941 = vmatpush.bf16.msra.mxu0 %v664
    %942 = vmatpush.bf16.msra.mxu0 %v656
    %943 = vmatpush.bf16.msra.mxu0 %v648
    %944 = vmatpush.bf16.msra.mxu0 %v640
    %945 = vmatpush.bf16.msra.mxu0 %v632
    %946 = vmatmul.bf16.gmra.mxu0 %v242
    %v947 = vpop.f32.mrf.mxu0
    %v948 = vadd.f32 %v226, %v947
    %v949 = vpop.f32.mrf.mxu0
    %950 = vdwg.mxu0
    %951 = vmatpush.bf16.msra.mxu0 %v752
    %952 = vmatpush.bf16.msra.mxu0 %v744
    %953 = vmatpush.bf16.msra.mxu0 %v736
    %954 = vmatpush.bf16.msra.mxu0 %v728
    %955 = vmatpush.bf16.msra.mxu0 %v720
    %956 = vmatpush.bf16.msra.mxu0 %v712
    %957 = vmatpush.bf16.msra.mxu0 %v704
    %958 = vmatpush.bf16.msra.mxu0 %v696
    %959 = vmatmul.bf16.gmra.mxu0 %v243
    %v960 = vpop.f32.mrf.mxu0
    %v961 = vadd.f32 %v948, %v960
    %v962 = vpop.f32.mrf.mxu0
    %963 = vdwg.mxu0
    %964 = vmatpush.bf16.msra.mxu0 %v689
    %965 = vmatpush.bf16.msra.mxu0 %v681
    %966 = vmatpush.bf16.msra.mxu0 %v673
    %967 = vmatpush.bf16.msra.mxu0 %v665
    %968 = vmatpush.bf16.msra.mxu0 %v657
    %969 = vmatpush.bf16.msra.mxu0 %v649
    %970 = vmatpush.bf16.msra.mxu0 %v641
    %971 = vmatpush.bf16.msra.mxu0 %v633
    %972 = vmatmul.bf16.gmra.mxu0 %v242
    %v973 = vpop.f32.mrf.mxu0
    %v974 = vadd.f32 %v227, %v973
    %v975 = vpop.f32.mrf.mxu0
    %976 = vdwg.mxu0
    %977 = vmatpush.bf16.msra.mxu0 %v753
    %978 = vmatpush.bf16.msra.mxu0 %v745
    %979 = vmatpush.bf16.msra.mxu0 %v737
    %980 = vmatpush.bf16.msra.mxu0 %v729
    %981 = vmatpush.bf16.msra.mxu0 %v721
    %982 = vmatpush.bf16.msra.mxu0 %v713
    %983 = vmatpush.bf16.msra.mxu0 %v705
    %984 = vmatpush.bf16.msra.mxu0 %v697
    %985 = vmatmul.bf16.gmra.mxu0 %v243
    %v986 = vpop.f32.mrf.mxu0
    %v987 = vadd.f32 %v974, %v986
    %v988 = vpop.f32.mrf.mxu0
    %989 = vdwg.mxu0
    %990 = vmatpush.bf16.msra.mxu0 %v690
    %991 = vmatpush.bf16.msra.mxu0 %v682
    %992 = vmatpush.bf16.msra.mxu0 %v674
    %993 = vmatpush.bf16.msra.mxu0 %v666
    %994 = vmatpush.bf16.msra.mxu0 %v658
    %995 = vmatpush.bf16.msra.mxu0 %v650
    %996 = vmatpush.bf16.msra.mxu0 %v642
    %997 = vmatpush.bf16.msra.mxu0 %v634
    %998 = vmatmul.bf16.gmra.mxu0 %v242
    %v999 = vpop.f32.mrf.mxu0
    %v1000 = vadd.f32 %v228, %v999
    %v1001 = vpop.f32.mrf.mxu0
    %1002 = vdwg.mxu0
    %1003 = vmatpush.bf16.msra.mxu0 %v754
    %1004 = vmatpush.bf16.msra.mxu0 %v746
    %1005 = vmatpush.bf16.msra.mxu0 %v738
    %1006 = vmatpush.bf16.msra.mxu0 %v730
    %1007 = vmatpush.bf16.msra.mxu0 %v722
    %1008 = vmatpush.bf16.msra.mxu0 %v714
    %1009 = vmatpush.bf16.msra.mxu0 %v706
    %1010 = vmatpush.bf16.msra.mxu0 %v698
    %1011 = vmatmul.bf16.gmra.mxu0 %v243
    %v1012 = vpop.f32.mrf.mxu0
    %v1013 = vadd.f32 %v1000, %v1012
    %v1014 = vpop.f32.mrf.mxu0
    %1015 = vdwg.mxu0
    %1016 = vmatpush.bf16.msra.mxu0 %v691
    %1017 = vmatpush.bf16.msra.mxu0 %v683
    %1018 = vmatpush.bf16.msra.mxu0 %v675
    %1019 = vmatpush.bf16.msra.mxu0 %v667
    %1020 = vmatpush.bf16.msra.mxu0 %v659
    %1021 = vmatpush.bf16.msra.mxu0 %v651
    %1022 = vmatpush.bf16.msra.mxu0 %v643
    %1023 = vmatpush.bf16.msra.mxu0 %v635
    %1024 = vmatmul.bf16.gmra.mxu0 %v242
    %v1025 = vpop.f32.mrf.mxu0
    %v1026 = vadd.f32 %v229, %v1025
    %v1027 = vpop.f32.mrf.mxu0
    %1028 = vdwg.mxu0
    %1029 = vmatpush.bf16.msra.mxu0 %v755
    %1030 = vmatpush.bf16.msra.mxu0 %v747
    %1031 = vmatpush.bf16.msra.mxu0 %v739
    %1032 = vmatpush.bf16.msra.mxu0 %v731
    %1033 = vmatpush.bf16.msra.mxu0 %v723
    %1034 = vmatpush.bf16.msra.mxu0 %v715
    %1035 = vmatpush.bf16.msra.mxu0 %v707
    %1036 = vmatpush.bf16.msra.mxu0 %v699
    %1037 = vmatmul.bf16.gmra.mxu0 %v243
    %v1038 = vpop.f32.mrf.mxu0
    %v1039 = vadd.f32 %v1026, %v1038
    %v1040 = vpop.f32.mrf.mxu0
    %1041 = vdwg.mxu0
    %1042 = vmatpush.bf16.msra.mxu0 %v692
    %1043 = vmatpush.bf16.msra.mxu0 %v684
    %1044 = vmatpush.bf16.msra.mxu0 %v676
    %1045 = vmatpush.bf16.msra.mxu0 %v668
    %1046 = vmatpush.bf16.msra.mxu0 %v660
    %1047 = vmatpush.bf16.msra.mxu0 %v652
    %1048 = vmatpush.bf16.msra.mxu0 %v644
    %1049 = vmatpush.bf16.msra.mxu0 %v636
    %1050 = vmatmul.bf16.gmra.mxu0 %v242
    %v1051 = vpop.f32.mrf.mxu0
    %v1052 = vadd.f32 %v230, %v1051
    %v1053 = vpop.f32.mrf.mxu0
    %1054 = vdwg.mxu0
    %1055 = vmatpush.bf16.msra.mxu0 %v756
    %1056 = vmatpush.bf16.msra.mxu0 %v748
    %1057 = vmatpush.bf16.msra.mxu0 %v740
    %1058 = vmatpush.bf16.msra.mxu0 %v732
    %1059 = vmatpush.bf16.msra.mxu0 %v724
    %1060 = vmatpush.bf16.msra.mxu0 %v716
    %1061 = vmatpush.bf16.msra.mxu0 %v708
    %1062 = vmatpush.bf16.msra.mxu0 %v700
    %1063 = vmatmul.bf16.gmra.mxu0 %v243
    %v1064 = vpop.f32.mrf.mxu0
    %v1065 = vadd.f32 %v1052, %v1064
    %v1066 = vpop.f32.mrf.mxu0
    %1067 = vdwg.mxu0
    %1068 = vmatpush.bf16.msra.mxu0 %v693
    %1069 = vmatpush.bf16.msra.mxu0 %v685
    %1070 = vmatpush.bf16.msra.mxu0 %v677
    %1071 = vmatpush.bf16.msra.mxu0 %v669
    %1072 = vmatpush.bf16.msra.mxu0 %v661
    %1073 = vmatpush.bf16.msra.mxu0 %v653
    %1074 = vmatpush.bf16.msra.mxu0 %v645
    %1075 = vmatpush.bf16.msra.mxu0 %v637
    %1076 = vmatmul.bf16.gmra.mxu0 %v242
    %v1077 = vpop.f32.mrf.mxu0
    %v1078 = vadd.f32 %v231, %v1077
    %v1079 = vpop.f32.mrf.mxu0
    %1080 = vdwg.mxu0
    %1081 = vmatpush.bf16.msra.mxu0 %v757
    %1082 = vmatpush.bf16.msra.mxu0 %v749
    %1083 = vmatpush.bf16.msra.mxu0 %v741
    %1084 = vmatpush.bf16.msra.mxu0 %v733
    %1085 = vmatpush.bf16.msra.mxu0 %v725
    %1086 = vmatpush.bf16.msra.mxu0 %v717
    %1087 = vmatpush.bf16.msra.mxu0 %v709
    %1088 = vmatpush.bf16.msra.mxu0 %v701
    %1089 = vmatmul.bf16.gmra.mxu0 %v243
    %v1090 = vpop.f32.mrf.mxu0
    %v1091 = vadd.f32 %v1078, %v1090
    %v1092 = vpop.f32.mrf.mxu0
    %1093 = vdwg.mxu0
    %v1094 = vmax.f32 %v909, %v961
    %v1095 = vmax.f32 %v935, %v987
    %v1096 = vmax.f32 %v1013, %v1065
    %v1097 = vmax.f32 %v1039, %v1091
    %v1098 = vmax.f32 %v1094, %v1096
    %v1099 = vmax.f32 %v1095, %v1097
    %v1100 = vmax.f32 %v1098, 0.0
    %v1101 = vmax.f32 %v1099, 0.0
    %v1102 = vpack.c.bf16 %v1100, %v1100
    %v1103 = vpack.c.bf16 %v1101, %v1101
    %v1104 = vld [vmem:[#allocation4] sm:$0xff]
    %v1105 = vld [vmem:[#allocation4 + $0x8] sm:$0xff]
    %v1106 = vld [vmem:[#allocation4 + $0x10] sm:$0xff]
    %v1107 = vld [vmem:[#allocation4 + $0x18] sm:$0xff]
    %v1108 = vld [vmem:[#allocation4 + $0x20] sm:$0xff]
    %v1109 = vld [vmem:[#allocation4 + $0x28] sm:$0xff]
    %v1110 = vld [vmem:[#allocation4 + $0x30] sm:$0xff]
    %v1111 = vld [vmem:[#allocation4 + $0x38] sm:$0xff]
    %v1112 = vld [vmem:[#allocation4 + $0x40] sm:$0xff]
    %v1113 = vld [vmem:[#allocation4 + $0x48] sm:$0xff]
    %v1114 = vld [vmem:[#allocation4 + $0x50] sm:$0xff]
    %v1115 = vld [vmem:[#allocation4 + $0x58] sm:$0xff]
    %v1116 = vld [vmem:[#allocation4 + $0x60] sm:$0xff]
    %v1117 = vld [vmem:[#allocation4 + $0x68] sm:$0xff]
    %v1118 = vld [vmem:[#allocation4 + $0x70] sm:$0xff]
    %v1119 = vld [vmem:[#allocation4 + $0x78] sm:$0xff]
    %v1120 = vld [vmem:[#allocation4 + $0x80] sm:$0xff]
    %v1121 = vld [vmem:[#allocation4 + $0x88] sm:$0xff]
    %v1122 = vld [vmem:[#allocation4 + $0x90] sm:$0xff]
    %v1123 = vld [vmem:[#allocation4 + $0x98] sm:$0xff]
    %v1124 = vld [vmem:[#allocation4 + $0xa0] sm:$0xff]
    %v1125 = vld [vmem:[#allocation4 + $0xa8] sm:$0xff]
    %v1126 = vld [vmem:[#allocation4 + $0xb0] sm:$0xff]
    %v1127 = vld [vmem:[#allocation4 + $0xb8] sm:$0xff]
    %v1128 = vld [vmem:[#allocation4 + $0xc0] sm:$0xff]
    %v1129 = vld [vmem:[#allocation4 + $0xc8] sm:$0xff]
    %v1130 = vld [vmem:[#allocation4 + $0xd0] sm:$0xff]
    %v1131 = vld [vmem:[#allocation4 + $0xd8] sm:$0xff]
    %v1132 = vld [vmem:[#allocation4 + $0xe0] sm:$0xff]
    %v1133 = vld [vmem:[#allocation4 + $0xe8] sm:$0xff]
    %v1134 = vld [vmem:[#allocation4 + $0xf0] sm:$0xff]
    %v1135 = vld [vmem:[#allocation4 + $0xf8] sm:$0xff]
    %v1136 = vld [vmem:[#allocation4 + $0x100] sm:$0xff]
    %v1137 = vld [vmem:[#allocation4 + $0x108] sm:$0xff]
    %v1138 = vld [vmem:[#allocation4 + $0x110] sm:$0xff]
    %v1139 = vld [vmem:[#allocation4 + $0x118] sm:$0xff]
    %v1140 = vld [vmem:[#allocation4 + $0x120] sm:$0xff]
    %v1141 = vld [vmem:[#allocation4 + $0x128] sm:$0xff]
    %v1142 = vld [vmem:[#allocation4 + $0x130] sm:$0xff]
    %v1143 = vld [vmem:[#allocation4 + $0x138] sm:$0xff]
    %v1144 = vld [vmem:[#allocation4 + $0x140] sm:$0xff]
    %v1145 = vld [vmem:[#allocation4 + $0x148] sm:$0xff]
    %v1146 = vld [vmem:[#allocation4 + $0x150] sm:$0xff]
    %v1147 = vld [vmem:[#allocation4 + $0x158] sm:$0xff]
    %v1148 = vld [vmem:[#allocation4 + $0x160] sm:$0xff]
    %v1149 = vld [vmem:[#allocation4 + $0x168] sm:$0xff]
    %v1150 = vld [vmem:[#allocation4 + $0x170] sm:$0xff]
    %v1151 = vld [vmem:[#allocation4 + $0x178] sm:$0xff]
    %v1152 = vld [vmem:[#allocation4 + $0x180] sm:$0xff]
    %v1153 = vld [vmem:[#allocation4 + $0x188] sm:$0xff]
    %v1154 = vld [vmem:[#allocation4 + $0x190] sm:$0xff]
    %v1155 = vld [vmem:[#allocation4 + $0x198] sm:$0xff]
    %v1156 = vld [vmem:[#allocation4 + $0x1a0] sm:$0xff]
    %v1157 = vld [vmem:[#allocation4 + $0x1a8] sm:$0xff]
    %v1158 = vld [vmem:[#allocation4 + $0x1b0] sm:$0xff]
    %v1159 = vld [vmem:[#allocation4 + $0x1b8] sm:$0xff]
    %v1160 = vld [vmem:[#allocation4 + $0x1c0] sm:$0xff]
    %v1161 = vld [vmem:[#allocation4 + $0x1c8] sm:$0xff]
    %v1162 = vld [vmem:[#allocation4 + $0x1d0] sm:$0xff]
    %v1163 = vld [vmem:[#allocation4 + $0x1d8] sm:$0xff]
    %v1164 = vld [vmem:[#allocation4 + $0x1e0] sm:$0xff]
    %v1165 = vld [vmem:[#allocation4 + $0x1e8] sm:$0xff]
    %v1166 = vld [vmem:[#allocation4 + $0x1f0] sm:$0xff]
    %v1167 = vld [vmem:[#allocation4 + $0x1f8] sm:$0xff]
    %v1168 = vld [vmem:[#allocation6] sm:$0xf]
    %v1170 = vperm.slane %v1168, 0
    %v1171 = vperm.slane %v1168, 1
    %v1172 = vperm.slane %v1168, 2
    %v1173 = vperm.slane %v1168, 3
    %v1242 = vunpack.c.l.b16 %v1104
    %v1243 = vunpack.c.h.b16 %v1104
    %v1244 = vunpack.c.l.b16 %v1105
    %v1245 = vunpack.c.h.b16 %v1105
    %v1246 = vunpack.c.l.b16 %v1106
    %v1247 = vunpack.c.h.b16 %v1106
    %v1248 = vunpack.c.l.b16 %v1107
    %v1249 = vunpack.c.h.b16 %v1107
    %v1250 = vunpack.c.l.b16 %v1108
    %v1251 = vunpack.c.h.b16 %v1108
    %v1252 = vunpack.c.l.b16 %v1109
    %v1253 = vunpack.c.h.b16 %v1109
    %v1254 = vunpack.c.l.b16 %v1110
    %v1255 = vunpack.c.h.b16 %v1110
    %v1256 = vunpack.c.l.b16 %v1111
    %v1257 = vunpack.c.h.b16 %v1111
    %v1258 = vunpack.c.l.b16 %v1112
    %v1259 = vunpack.c.h.b16 %v1112
    %v1260 = vunpack.c.l.b16 %v1113
    %v1261 = vunpack.c.h.b16 %v1113
    %v1262 = vunpack.c.l.b16 %v1114
    %v1263 = vunpack.c.h.b16 %v1114
    %v1264 = vunpack.c.l.b16 %v1115
    %v1265 = vunpack.c.h.b16 %v1115
    %v1266 = vunpack.c.l.b16 %v1116
    %v1267 = vunpack.c.h.b16 %v1116
    %v1268 = vunpack.c.l.b16 %v1117
    %v1269 = vunpack.c.h.b16 %v1117
    %v1270 = vunpack.c.l.b16 %v1118
    %v1271 = vunpack.c.h.b16 %v1118
    %v1272 = vunpack.c.l.b16 %v1119
    %v1273 = vunpack.c.h.b16 %v1119
    %v1274 = vunpack.c.l.b16 %v1120
    %v1275 = vunpack.c.h.b16 %v1120
    %v1276 = vunpack.c.l.b16 %v1121
    %v1277 = vunpack.c.h.b16 %v1121
    %v1278 = vunpack.c.l.b16 %v1122
    %v1279 = vunpack.c.h.b16 %v1122
    %v1280 = vunpack.c.l.b16 %v1123
    %v1281 = vunpack.c.h.b16 %v1123
    %v1282 = vunpack.c.l.b16 %v1124
    %v1283 = vunpack.c.h.b16 %v1124
    %v1284 = vunpack.c.l.b16 %v1125
    %v1285 = vunpack.c.h.b16 %v1125
    %v1286 = vunpack.c.l.b16 %v1126
    %v1287 = vunpack.c.h.b16 %v1126
    %v1288 = vunpack.c.l.b16 %v1127
    %v1289 = vunpack.c.h.b16 %v1127
    %v1290 = vunpack.c.l.b16 %v1128
    %v1291 = vunpack.c.h.b16 %v1128
    %v1292 = vunpack.c.l.b16 %v1129
    %v1293 = vunpack.c.h.b16 %v1129
    %v1294 = vunpack.c.l.b16 %v1130
    %v1295 = vunpack.c.h.b16 %v1130
    %v1296 = vunpack.c.l.b16 %v1131
    %v1297 = vunpack.c.h.b16 %v1131
    %v1298 = vunpack.c.l.b16 %v1132
    %v1299 = vunpack.c.h.b16 %v1132
    %v1300 = vunpack.c.l.b16 %v1133
    %v1301 = vunpack.c.h.b16 %v1133
    %v1302 = vunpack.c.l.b16 %v1134
    %v1303 = vunpack.c.h.b16 %v1134
    %v1304 = vunpack.c.l.b16 %v1135
    %v1305 = vunpack.c.h.b16 %v1135
    %v1306 = vunpack.c.l.b16 %v1136
    %v1307 = vunpack.c.h.b16 %v1136
    %v1308 = vunpack.c.l.b16 %v1137
    %v1309 = vunpack.c.h.b16 %v1137
    %v1310 = vunpack.c.l.b16 %v1138
    %v1311 = vunpack.c.h.b16 %v1138
    %v1312 = vunpack.c.l.b16 %v1139
    %v1313 = vunpack.c.h.b16 %v1139
    %v1314 = vunpack.c.l.b16 %v1140
    %v1315 = vunpack.c.h.b16 %v1140
    %v1316 = vunpack.c.l.b16 %v1141
    %v1317 = vunpack.c.h.b16 %v1141
    %v1318 = vunpack.c.l.b16 %v1142
    %v1319 = vunpack.c.h.b16 %v1142
    %v1320 = vunpack.c.l.b16 %v1143
    %v1321 = vunpack.c.h.b16 %v1143
    %v1322 = vunpack.c.l.b16 %v1144
    %v1323 = vunpack.c.h.b16 %v1144
    %v1324 = vunpack.c.l.b16 %v1145
    %v1325 = vunpack.c.h.b16 %v1145
    %v1326 = vunpack.c.l.b16 %v1146
    %v1327 = vunpack.c.h.b16 %v1146
    %v1328 = vunpack.c.l.b16 %v1147
    %v1329 = vunpack.c.h.b16 %v1147
    %v1330 = vunpack.c.l.b16 %v1148
    %v1331 = vunpack.c.h.b16 %v1148
    %v1332 = vunpack.c.l.b16 %v1149
    %v1333 = vunpack.c.h.b16 %v1149
    %v1334 = vunpack.c.l.b16 %v1150
    %v1335 = vunpack.c.h.b16 %v1150
    %v1336 = vunpack.c.l.b16 %v1151
    %v1337 = vunpack.c.h.b16 %v1151
    %v1338 = vunpack.c.l.b16 %v1152
    %v1339 = vunpack.c.h.b16 %v1152
    %v1340 = vunpack.c.l.b16 %v1153
    %v1341 = vunpack.c.h.b16 %v1153
    %v1342 = vunpack.c.l.b16 %v1154
    %v1343 = vunpack.c.h.b16 %v1154
    %v1344 = vunpack.c.l.b16 %v1155
    %v1345 = vunpack.c.h.b16 %v1155
    %v1346 = vunpack.c.l.b16 %v1156
    %v1347 = vunpack.c.h.b16 %v1156
    %v1348 = vunpack.c.l.b16 %v1157
    %v1349 = vunpack.c.h.b16 %v1157
    %v1350 = vunpack.c.l.b16 %v1158
    %v1351 = vunpack.c.h.b16 %v1158
    %v1352 = vunpack.c.l.b16 %v1159
    %v1353 = vunpack.c.h.b16 %v1159
    %v1354 = vunpack.c.l.b16 %v1160
    %v1355 = vunpack.c.h.b16 %v1160
    %v1356 = vunpack.c.l.b16 %v1161
    %v1357 = vunpack.c.h.b16 %v1161
    %v1358 = vunpack.c.l.b16 %v1162
    %v1359 = vunpack.c.h.b16 %v1162
    %v1360 = vunpack.c.l.b16 %v1163
    %v1361 = vunpack.c.h.b16 %v1163
    %v1362 = vunpack.c.l.b16 %v1164
    %v1363 = vunpack.c.h.b16 %v1164
    %v1364 = vunpack.c.l.b16 %v1165
    %v1365 = vunpack.c.h.b16 %v1165
    %v1366 = vunpack.c.l.b16 %v1166
    %v1367 = vunpack.c.h.b16 %v1166
    %v1368 = vunpack.c.l.b16 %v1167
    %v1369 = vunpack.c.h.b16 %v1167
    %v1370 = vpack.c.b16 %v1246, %v1242
    %v1371 = vpack.c.b16 %v1247, %v1243
    %v1372 = vpack.c.b16 %v1248, %v1244
    %v1373 = vpack.c.b16 %v1249, %v1245
    %v1374 = vpack.c.b16 %v1254, %v1250
    %v1375 = vpack.c.b16 %v1255, %v1251
    %v1376 = vpack.c.b16 %v1256, %v1252
    %v1377 = vpack.c.b16 %v1257, %v1253
    %v1378 = vpack.c.b16 %v1262, %v1258
    %v1379 = vpack.c.b16 %v1263, %v1259
    %v1380 = vpack.c.b16 %v1264, %v1260
    %v1381 = vpack.c.b16 %v1265, %v1261
    %v1382 = vpack.c.b16 %v1270, %v1266
    %v1383 = vpack.c.b16 %v1271, %v1267
    %v1384 = vpack.c.b16 %v1272, %v1268
    %v1385 = vpack.c.b16 %v1273, %v1269
    %v1386 = vpack.c.b16 %v1278, %v1274
    %v1387 = vpack.c.b16 %v1279, %v1275
    %v1388 = vpack.c.b16 %v1280, %v1276
    %v1389 = vpack.c.b16 %v1281, %v1277
    %v1390 = vpack.c.b16 %v1286, %v1282
    %v1391 = vpack.c.b16 %v1287, %v1283
    %v1392 = vpack.c.b16 %v1288, %v1284
    %v1393 = vpack.c.b16 %v1289, %v1285
    %v1394 = vpack.c.b16 %v1294, %v1290
    %v1395 = vpack.c.b16 %v1295, %v1291
    %v1396 = vpack.c.b16 %v1296, %v1292
    %v1397 = vpack.c.b16 %v1297, %v1293
    %v1398 = vpack.c.b16 %v1302, %v1298
    %v1399 = vpack.c.b16 %v1303, %v1299
    %v1400 = vpack.c.b16 %v1304, %v1300
    %v1401 = vpack.c.b16 %v1305, %v1301
    %v1402 = vpack.c.b16 %v1310, %v1306
    %v1403 = vpack.c.b16 %v1311, %v1307
    %v1404 = vpack.c.b16 %v1312, %v1308
    %v1405 = vpack.c.b16 %v1313, %v1309
    %v1406 = vpack.c.b16 %v1318, %v1314
    %v1407 = vpack.c.b16 %v1319, %v1315
    %v1408 = vpack.c.b16 %v1320, %v1316
    %v1409 = vpack.c.b16 %v1321, %v1317
    %v1410 = vpack.c.b16 %v1326, %v1322
    %v1411 = vpack.c.b16 %v1327, %v1323
    %v1412 = vpack.c.b16 %v1328, %v1324
    %v1413 = vpack.c.b16 %v1329, %v1325
    %v1414 = vpack.c.b16 %v1334, %v1330
    %v1415 = vpack.c.b16 %v1335, %v1331
    %v1416 = vpack.c.b16 %v1336, %v1332
    %v1417 = vpack.c.b16 %v1337, %v1333
    %v1418 = vpack.c.b16 %v1342, %v1338
    %v1419 = vpack.c.b16 %v1343, %v1339
    %v1420 = vpack.c.b16 %v1344, %v1340
    %v1421 = vpack.c.b16 %v1345, %v1341
    %v1422 = vpack.c.b16 %v1350, %v1346
    %v1423 = vpack.c.b16 %v1351, %v1347
    %v1424 = vpack.c.b16 %v1352, %v1348
    %v1425 = vpack.c.b16 %v1353, %v1349
    %v1426 = vpack.c.b16 %v1358, %v1354
    %v1427 = vpack.c.b16 %v1359, %v1355
    %v1428 = vpack.c.b16 %v1360, %v1356
    %v1429 = vpack.c.b16 %v1361, %v1357
    %v1430 = vpack.c.b16 %v1366, %v1362
    %v1431 = vpack.c.b16 %v1367, %v1363
    %v1432 = vpack.c.b16 %v1368, %v1364
    %v1433 = vpack.c.b16 %v1369, %v1365
    %1498 = vmatpush.bf16.msra.mxu0 %v1398
    %1499 = vmatpush.bf16.msra.mxu0 %v1394
    %1500 = vmatpush.bf16.msra.mxu0 %v1390
    %1501 = vmatpush.bf16.msra.mxu0 %v1386
    %1502 = vmatpush.bf16.msra.mxu0 %v1382
    %1503 = vmatpush.bf16.msra.mxu0 %v1378
    %1504 = vmatpush.bf16.msra.mxu0 %v1374
    %1505 = vmatpush.bf16.msra.mxu0 %v1370
    %1506 = vmatmul.bf16.gmra.mxu0 %v1102
    %v1507 = vpop.f32.mrf.mxu0
    %v1508 = vadd.f32 %v1170, %v1507
    %v1509 = vpop.f32.mrf.mxu0
    %1510 = vdwg.mxu0
    %1511 = vmatpush.bf16.msra.mxu0 %v1430
    %1512 = vmatpush.bf16.msra.mxu0 %v1426
    %1513 = vmatpush.bf16.msra.mxu0 %v1422
    %1514 = vmatpush.bf16.msra.mxu0 %v1418
    %1515 = vmatpush.bf16.msra.mxu0 %v1414
    %1516 = vmatpush.bf16.msra.mxu0 %v1410
    %1517 = vmatpush.bf16.msra.mxu0 %v1406
    %1518 = vmatpush.bf16.msra.mxu0 %v1402
    %1519 = vmatmul.bf16.gmra.mxu0 %v1103
    %v1520 = vpop.f32.mrf.mxu0
    %v1521 = vadd.f32 %v1508, %v1520
    %v1522 = vpop.f32.mrf.mxu0
    %1523 = vdwg.mxu0
    %1524 = vmatpush.bf16.msra.mxu0 %v1399
    %1525 = vmatpush.bf16.msra.mxu0 %v1395
    %1526 = vmatpush.bf16.msra.mxu0 %v1391
    %1527 = vmatpush.bf16.msra.mxu0 %v1387
    %1528 = vmatpush.bf16.msra.mxu0 %v1383
    %1529 = vmatpush.bf16.msra.mxu0 %v1379
    %1530 = vmatpush.bf16.msra.mxu0 %v1375
    %1531 = vmatpush.bf16.msra.mxu0 %v1371
    %1532 = vmatmul.bf16.gmra.mxu0 %v1102
    %v1533 = vpop.f32.mrf.mxu0
    %v1534 = vadd.f32 %v1171, %v1533
    %v1535 = vpop.f32.mrf.mxu0
    %1536 = vdwg.mxu0
    %1537 = vmatpush.bf16.msra.mxu0 %v1431
    %1538 = vmatpush.bf16.msra.mxu0 %v1427
    %1539 = vmatpush.bf16.msra.mxu0 %v1423
    %1540 = vmatpush.bf16.msra.mxu0 %v1419
    %1541 = vmatpush.bf16.msra.mxu0 %v1415
    %1542 = vmatpush.bf16.msra.mxu0 %v1411
    %1543 = vmatpush.bf16.msra.mxu0 %v1407
    %1544 = vmatpush.bf16.msra.mxu0 %v1403
    %1545 = vmatmul.bf16.gmra.mxu0 %v1103
    %v1546 = vpop.f32.mrf.mxu0
    %v1547 = vadd.f32 %v1534, %v1546
    %v1548 = vpop.f32.mrf.mxu0
    %1549 = vdwg.mxu0
    %1550 = vmatpush.bf16.msra.mxu0 %v1400
    %1551 = vmatpush.bf16.msra.mxu0 %v1396
    %1552 = vmatpush.bf16.msra.mxu0 %v1392
    %1553 = vmatpush.bf16.msra.mxu0 %v1388
    %1554 = vmatpush.bf16.msra.mxu0 %v1384
    %1555 = vmatpush.bf16.msra.mxu0 %v1380
    %1556 = vmatpush.bf16.msra.mxu0 %v1376
    %1557 = vmatpush.bf16.msra.mxu0 %v1372
    %1558 = vmatmul.bf16.gmra.mxu0 %v1102
    %v1559 = vpop.f32.mrf.mxu0
    %v1560 = vadd.f32 %v1172, %v1559
    %v1561 = vpop.f32.mrf.mxu0
    %1562 = vdwg.mxu0
    %1563 = vmatpush.bf16.msra.mxu0 %v1432
    %1564 = vmatpush.bf16.msra.mxu0 %v1428
    %1565 = vmatpush.bf16.msra.mxu0 %v1424
    %1566 = vmatpush.bf16.msra.mxu0 %v1420
    %1567 = vmatpush.bf16.msra.mxu0 %v1416
    %1568 = vmatpush.bf16.msra.mxu0 %v1412
    %1569 = vmatpush.bf16.msra.mxu0 %v1408
    %1570 = vmatpush.bf16.msra.mxu0 %v1404
    %1571 = vmatmul.bf16.gmra.mxu0 %v1103
    %v1572 = vpop.f32.mrf.mxu0
    %v1573 = vadd.f32 %v1560, %v1572
    %v1574 = vpop.f32.mrf.mxu0
    %1575 = vdwg.mxu0
    %1576 = vmatpush.bf16.msra.mxu0 %v1401
    %1577 = vmatpush.bf16.msra.mxu0 %v1397
    %1578 = vmatpush.bf16.msra.mxu0 %v1393
    %1579 = vmatpush.bf16.msra.mxu0 %v1389
    %1580 = vmatpush.bf16.msra.mxu0 %v1385
    %1581 = vmatpush.bf16.msra.mxu0 %v1381
    %1582 = vmatpush.bf16.msra.mxu0 %v1377
    %1583 = vmatpush.bf16.msra.mxu0 %v1373
    %1584 = vmatmul.bf16.gmra.mxu0 %v1102
    %v1585 = vpop.f32.mrf.mxu0
    %v1586 = vadd.f32 %v1173, %v1585
    %v1587 = vpop.f32.mrf.mxu0
    %1588 = vdwg.mxu0
    %1589 = vmatpush.bf16.msra.mxu0 %v1433
    %1590 = vmatpush.bf16.msra.mxu0 %v1429
    %1591 = vmatpush.bf16.msra.mxu0 %v1425
    %1592 = vmatpush.bf16.msra.mxu0 %v1421
    %1593 = vmatpush.bf16.msra.mxu0 %v1417
    %1594 = vmatpush.bf16.msra.mxu0 %v1413
    %1595 = vmatpush.bf16.msra.mxu0 %v1409
    %1596 = vmatpush.bf16.msra.mxu0 %v1405
    %1597 = vmatmul.bf16.gmra.mxu0 %v1103
    %v1598 = vpop.f32.mrf.mxu0
    %v1599 = vadd.f32 %v1586, %v1598
    %v1600 = vpop.f32.mrf.mxu0
    %1601 = vdwg.mxu0
    %v1602 = vmax.f32 %v1521, %v1547
    %v1603 = vmax.f32 %v1573, %v1599
    %v1604 = vmax.f32 %v1602, %v1603
    %v1605 = vmax.f32 %v1604, 0.0
    %v1606 = vpack.c.bf16 %v1605, %v1605
    %v1607 = vld [vmem:[%s5] sm:$0xf]
    %v1608 = vld [vmem:[%s5 + $0x4] sm:$0xf]
    %v1609 = vld [vmem:[%s5 + $0x8] sm:$0xf]
    %v1610 = vld [vmem:[%s5 + $0xc] sm:$0xf]
    %v1611 = vld [vmem:[%s5 + $0x10] sm:$0xf]
    %v1612 = vld [vmem:[%s5 + $0x14] sm:$0xf]
    %v1613 = vld [vmem:[%s5 + $0x18] sm:$0xf]
    %v1614 = vld [vmem:[%s5 + $0x1c] sm:$0xf]
    %v1615 = vld [vmem:[%s5 + $0x20] sm:$0xf]
    %v1616 = vld [vmem:[%s5 + $0x24] sm:$0xf]
    %v1617 = vld [vmem:[%s5 + $0x28] sm:$0xf]
    %v1618 = vld [vmem:[%s5 + $0x2c] sm:$0xf]
    %v1619 = vld [vmem:[%s5 + $0x30] sm:$0xf]
    %v1620 = vld [vmem:[%s5 + $0x34] sm:$0xf]
    %v1621 = vld [vmem:[%s5 + $0x38] sm:$0xf]
    %v1622 = vld [vmem:[%s5 + $0x3c] sm:$0xf]
    %v1623 = vld [vmem:[%s6] sm:$0x1]
    %v1625 = vperm.slane %v1623, 0
    %v1643 = vunpack.c.l.b16 %v1607
    %v1644 = vunpack.c.l.b16 %v1608
    %v1645 = vunpack.c.l.b16 %v1609
    %v1646 = vunpack.c.l.b16 %v1610
    %v1647 = vunpack.c.l.b16 %v1611
    %v1648 = vunpack.c.l.b16 %v1612
    %v1649 = vunpack.c.l.b16 %v1613
    %v1650 = vunpack.c.l.b16 %v1614
    %v1651 = vunpack.c.l.b16 %v1615
    %v1652 = vunpack.c.l.b16 %v1616
    %v1653 = vunpack.c.l.b16 %v1617
    %v1654 = vunpack.c.l.b16 %v1618
    %v1655 = vunpack.c.l.b16 %v1619
    %v1656 = vunpack.c.l.b16 %v1620
    %v1657 = vunpack.c.l.b16 %v1621
    %v1658 = vunpack.c.l.b16 %v1622
    %v1659 = vpack.c.b16 %v1644, %v1643
    %v1660 = vpack.c.b16 %v1646, %v1645
    %v1661 = vpack.c.b16 %v1648, %v1647
    %v1662 = vpack.c.b16 %v1650, %v1649
    %v1663 = vpack.c.b16 %v1652, %v1651
    %v1664 = vpack.c.b16 %v1654, %v1653
    %v1665 = vpack.c.b16 %v1656, %v1655
    %v1666 = vpack.c.b16 %v1658, %v1657
    %1675 = vmatpush.bf16.msra.mxu0 %v1666
    %1676 = vmatpush.bf16.msra.mxu0 %v1665
    %1677 = vmatpush.bf16.msra.mxu0 %v1664
    %1678 = vmatpush.bf16.msra.mxu0 %v1663
    %1679 = vmatpush.bf16.msra.mxu0 %v1662
    %1680 = vmatpush.bf16.msra.mxu0 %v1661
    %1681 = vmatpush.bf16.msra.mxu0 %v1660
    %1682 = vmatpush.bf16.msra.mxu0 %v1659
    %1683 = vmatmul.bf16.gmra.mxu0 %v1606
    %v1684 = vpop.f32.mrf.mxu0
    %v1685 = vadd.f32 %v1625, %v1684
    %v1686 = vpop.f32.mrf.mxu0
    %1687 = vdwg.mxu0
    %v1688 = vmax.f32 %v1685, 0.0
    %v1689 = vpack.c.bf16 %v1688, %v1688
    %v1690 = vld [vmem:[#allocation7] sm:$0xff]
    %v1691 = vld [vmem:[#allocation7 + $0x8] sm:$0xff]
    %v1692 = vld [vmem:[#allocation7 + $0x10] sm:$0xff]
    %v1693 = vld [vmem:[#allocation7 + $0x18] sm:$0xff]
    %v1694 = vld [vmem:[#allocation7 + $0x20] sm:$0xff]
    %v1695 = vld [vmem:[#allocation7 + $0x28] sm:$0xff]
    %v1696 = vld [vmem:[#allocation7 + $0x30] sm:$0xff]
    %v1697 = vld [vmem:[#allocation7 + $0x38] sm:$0xff]
    %v1698 = vld [vmem:[#allocation7 + $0x40] sm:$0xff]
    %v1699 = vld [vmem:[#allocation7 + $0x48] sm:$0xff]
    %v1700 = vld [vmem:[#allocation7 + $0x50] sm:$0xff]
    %v1701 = vld [vmem:[#allocation7 + $0x58] sm:$0xff]
    %v1702 = vld [vmem:[#allocation7 + $0x60] sm:$0xff]
    %v1703 = vld [vmem:[#allocation7 + $0x68] sm:$0xff]
    %v1704 = vld [vmem:[#allocation7 + $0x70] sm:$0xff]
    %v1705 = vld [vmem:[#allocation7 + $0x78] sm:$0xff]
    %v1706 = vld [vmem:[%s8] sm:$0x3]
    %v1708 = vperm.slane %v1706, 0
    %v1709 = vperm.slane %v1706, 1
    %v1728 = vunpack.c.l.b16 %v1690
    %v1729 = vunpack.c.h.b16 %v1690
    %v1730 = vunpack.c.l.b16 %v1691
    %v1731 = vunpack.c.h.b16 %v1691
    %v1732 = vunpack.c.l.b16 %v1692
    %v1733 = vunpack.c.h.b16 %v1692
    %v1734 = vunpack.c.l.b16 %v1693
    %v1735 = vunpack.c.h.b16 %v1693
    %v1736 = vunpack.c.l.b16 %v1694
    %v1737 = vunpack.c.h.b16 %v1694
    %v1738 = vunpack.c.l.b16 %v1695
    %v1739 = vunpack.c.h.b16 %v1695
    %v1740 = vunpack.c.l.b16 %v1696
    %v1741 = vunpack.c.h.b16 %v1696
    %v1742 = vunpack.c.l.b16 %v1697
    %v1743 = vunpack.c.h.b16 %v1697
    %v1744 = vunpack.c.l.b16 %v1698
    %v1745 = vunpack.c.h.b16 %v1698
    %v1746 = vunpack.c.l.b16 %v1699
    %v1747 = vunpack.c.h.b16 %v1699
    %v1748 = vunpack.c.l.b16 %v1700
    %v1749 = vunpack.c.h.b16 %v1700
    %v1750 = vunpack.c.l.b16 %v1701
    %v1751 = vunpack.c.h.b16 %v1701
    %v1752 = vunpack.c.l.b16 %v1702
    %v1753 = vunpack.c.h.b16 %v1702
    %v1754 = vunpack.c.l.b16 %v1703
    %v1755 = vunpack.c.h.b16 %v1703
    %v1756 = vunpack.c.l.b16 %v1704
    %v1757 = vunpack.c.h.b16 %v1704
    %v1758 = vunpack.c.l.b16 %v1705
    %v1759 = vunpack.c.h.b16 %v1705
    %v1760 = vpack.c.b16 %v1730, %v1728
    %v1761 = vpack.c.b16 %v1731, %v1729
    %v1762 = vpack.c.b16 %v1734, %v1732
    %v1763 = vpack.c.b16 %v1735, %v1733
    %v1764 = vpack.c.b16 %v1738, %v1736
    %v1765 = vpack.c.b16 %v1739, %v1737
    %v1766 = vpack.c.b16 %v1742, %v1740
    %v1767 = vpack.c.b16 %v1743, %v1741
    %v1768 = vpack.c.b16 %v1746, %v1744
    %v1769 = vpack.c.b16 %v1747, %v1745
    %v1770 = vpack.c.b16 %v1750, %v1748
    %v1771 = vpack.c.b16 %v1751, %v1749
    %v1772 = vpack.c.b16 %v1754, %v1752
    %v1773 = vpack.c.b16 %v1755, %v1753
    %v1774 = vpack.c.b16 %v1758, %v1756
    %v1775 = vpack.c.b16 %v1759, %v1757
    %1792 = vmatpush.bf16.msra.mxu0 %v1774
    %1793 = vmatpush.bf16.msra.mxu0 %v1772
    %1794 = vmatpush.bf16.msra.mxu0 %v1770
    %1795 = vmatpush.bf16.msra.mxu0 %v1768
    %1796 = vmatpush.bf16.msra.mxu0 %v1766
    %1797 = vmatpush.bf16.msra.mxu0 %v1764
    %1798 = vmatpush.bf16.msra.mxu0 %v1762
    %1799 = vmatpush.bf16.msra.mxu0 %v1760
    %1800 = vmatmul.bf16.gmra.mxu0 %v1689
    %v1801 = vpop.f32.mrf.mxu0
    %v1802 = vadd.f32 %v1708, %v1801
    %v1803 = vpop.f32.mrf.mxu0
    %1804 = vdwg.mxu0
    %1805 = vmatpush.bf16.msra.mxu0 %v1775
    %1806 = vmatpush.bf16.msra.mxu0 %v1773
    %1807 = vmatpush.bf16.msra.mxu0 %v1771
    %1808 = vmatpush.bf16.msra.mxu0 %v1769
    %1809 = vmatpush.bf16.msra.mxu0 %v1767
    %1810 = vmatpush.bf16.msra.mxu0 %v1765
    %1811 = vmatpush.bf16.msra.mxu0 %v1763
    %1812 = vmatpush.bf16.msra.mxu0 %v1761
    %1813 = vmatmul.bf16.gmra.mxu0 %v1689
    %v1814 = vpop.f32.mrf.mxu0
    %v1815 = vadd.f32 %v1709, %v1814
    %v1816 = vpop.f32.mrf.mxu0
    %1817 = vdwg.mxu0
    %v1818 = vsub.f32 0.0, %v1802
    %v1819 = vsub.f32 0.0, %v1815
    %v1820 = vmul.f32 %v1818, 1.442695
    %v1821 = vpow.pop %v1820
    %v1822 = vmul.f32 %v1819, 1.442695
    %v1823 = vpow.pop %v1822
    %v1824 = vadd.f32 %v1821, 1.0
    %v1825 = vadd.f32 %v1823, 1.0
    %v1826 = vrcp.pop %v1824
    %v1827 = vrcp.pop %v1825
    %v1830 = vrot.slane %v1827, 6
    %vm1831 = vcmask 1041408
    %v1832 = vsel %vm1831, %v1826, %v1830
    %1834 = vst [vmem:[%s9] sm:$0xf] %v1832
    // Predicated region
    $region54: #{_lambda_.1} parent=1 // pred_check
      _
    $region55: #{_lambda_.1} parent=1 // pred_check_branch
      %1836 = sbr.rel (0) target = $region57
    $region56: #{_lambda_.1} parent=1 // pred_region
      _
    $region57: #{_lambda_.1} parent=1 // pred_fallthru
      _
    // Predicated region
    $region58: #{_lambda_.1} parent=1 // pred_check
      _
    $region59: #{_lambda_.1} parent=1 // pred_check_branch
      %1838 = sbr.rel (0) target = $region61
    $region60: #{_lambda_.1} parent=1 // pred_region
      _
    $region61: #{_lambda_.1} parent=1 // pred_fallthru
      _
    %1839 = vsyncpa [#allocation3], 1
    %1840 = vsyncpa [#allocation5], 1
    %1841 = vsyncpa [#allocation8], 1

// kernel: _lambda_.1
$region0: #{_lambda_.1}
  #allocation0 [shape = 'u32[]', space=smem, size = 0x4, offset = 0x4, fixed_abs, tag = 'smem constant byte address 0x4 - core index']
  #allocation1 [shape = 'u32[72,128]{1,0:T(1,128)}', space=vmem, size = 0x9000, scoped, tag = 'internal scratch']
  %s0 = inlined_call_operand.vmem [shape: bf16[2,256], index: 0, kind: input, shape index: {}]
  %s1 = inlined_call_operand.hbm [shape: bf16[256,1024], index: 1, kind: input, shape index: {}]
  %s2 = inlined_call_operand.vmem [shape: f32[1,1024], index: 2, kind: input, shape index: {}]
  %s3 = inlined_call_operand.hbm [shape: bf16[256,512], index: 3, kind: input, shape index: {}]
  %s4 = inlined_call_operand.hbm [shape: f32[1,512], index: 4, kind: input, shape index: {}]
  %s5 = inlined_call_operand.vmem [shape: bf16[128,128], index: 5, kind: input, shape index: {}]
  %s6 = inlined_call_operand.vmem [shape: f32[1,128], index: 6, kind: input, shape index: {}]
  %s7 = inlined_call_operand.hbm [shape: bf16[128,256], index: 7, kind: input, shape index: {}]
  %s8 = inlined_call_operand.vmem [shape: f32[1,256], index: 8, kind: input, shape index: {}]
  %s9 = inlined_call_operand.vmem [shape: f32[2,256], index: 9, kind: output, shape index: {}]
  %s10 = sld [smem:[#allocation0]]
  $region62: #{_lambda_.1} parent=0
    _
  %s12 = ssub.s32 1, %s10
  %s13 = scalar_select 0, %s12, %s10
  $region1: #{_lambda_.1} parent=0
    #allocation2 [shape = 'u8[524288]{0}', space=vmem, size = 0x80000, scoped, tag = 'input window, operand 1, single buffered']
    #allocation3 [shape = 's32[1]{0}', space=sflag, size = 0x4, scoped, tag = 'scoped memory for _lambda_.1']
    #allocation4 [shape = 'u8[262144]{0}', space=vmem, size = 0x40000, scoped, tag = 'input window, operand 3, single buffered']
    #allocation5 [shape = 's32[1]{0}', space=sflag, size = 0x4, scoped, tag = 'scoped memory for _lambda_.1']
    #allocation6 [shape = 'u8[2048]{0}', space=vmem, size = 0x800, scoped, tag = 'input window, operand 4, single buffered']
    #allocation7 [shape = 'u8[65536]{0}', space=vmem, size = 0x10000, scoped, tag = 'input window, operand 7, single buffered']
    #allocation8 [shape = 's32[1]{0}', space=sflag, size = 0x4, scoped, tag = 'scoped memory for _lambda_.1']
    %14 = vsyncpa [#allocation3], 0
    %15 = vsyncpa [#allocation5], 0
    %16 = vsyncpa [#allocation8], 0
    // Predicated region
    $region2: #{_lambda_.1} parent=1 // pred_check
      _
    $region3: #{_lambda_.1} parent=1 // pred_check_branch
      %18 = sbr.rel (0) target = $region5
    $region4: #{_lambda_.1} parent=1 // pred_region
      _
    $region5: #{_lambda_.1} parent=1 // pred_fallthru
      _
    // Predicated region
    $region6: #{_lambda_.1} parent=1 // pred_check
      _
    $region7: #{_lambda_.1} parent=1 // pred_check_branch
      %20 = sbr.rel (0) target = $region9
    $region8: #{_lambda_.1} parent=1 // pred_region
      %22 = vsyncadd [#allocation3], 0
      %s23 = sshll.u32 %s1, 4
      %s24 = int_to_ptr.hbm [resolvable:$true] %s23
      %s25 = sshll.u32 [#allocation2], 4
      %s26 = int_to_ptr.vmem [resolvable:$true] %s25
      %31 = dma.hbm_to_vmem [thread:$0]  %s24, 16384, %s26, [#allocation3], 512, 512, 32
    $region9: #{_lambda_.1} parent=1 // pred_fallthru
      _
    // Predicated region
    $region10: #{_lambda_.1} parent=1 // pred_check
      _
    $region11: #{_lambda_.1} parent=1 // pred_check_branch
      %33 = sbr.rel (0) target = $region13
    $region12: #{_lambda_.1} parent=1 // pred_region
      _
    $region13: #{_lambda_.1} parent=1 // pred_fallthru
      _
    // Predicated region
    $region14: #{_lambda_.1} parent=1 // pred_check
      _
    $region15: #{_lambda_.1} parent=1 // pred_check_branch
      %35 = sbr.rel (0) target = $region17
    $region16: #{_lambda_.1} parent=1 // pred_region
      %37 = vsyncadd [#allocation5], 0
      %s38 = sshll.u32 %s3, 4
      %s39 = int_to_ptr.hbm [resolvable:$true] %s38
      %s40 = sshll.u32 [#allocation4], 4
      %s41 = int_to_ptr.vmem [resolvable:$true] %s40
      %46 = dma.hbm_to_vmem [thread:$0]  %s39, 8192, %s41, [#allocation5], 256, 256, 16
    $region17: #{_lambda_.1} parent=1 // pred_fallthru
      _
    // Predicated region
    $region18: #{_lambda_.1} parent=1 // pred_check
      _
    $region19: #{_lambda_.1} parent=1 // pred_check_branch
      %48 = sbr.rel (0) target = $region21
    $region20: #{_lambda_.1} parent=1 // pred_region
      %50 = vsyncadd [#allocation5], 0
      %s52 = sshll.u32 %s4, 4
      %s53 = int_to_ptr.hbm [resolvable:$true] %s52
      %s54 = sshll.u32 [#allocation6], 4
      %s55 = int_to_ptr.vmem [resolvable:$true] %s54
      %57 = dma.hbm_to_vmem [thread:$0]  %s53, 64, %s55, [#allocation5]
    $region21: #{_lambda_.1} parent=1 // pred_fallthru
      _
    // Predicated region
    $region22: #{_lambda_.1} parent=1 // pred_check
      _
    $region23: #{_lambda_.1} parent=1 // pred_check_branch
      %59 = sbr.rel (0) target = $region25
    $region24: #{_lambda_.1} parent=1 // pred_region
      _
    $region25: #{_lambda_.1} parent=1 // pred_fallthru
      _
    // Predicated region
    $region26: #{_lambda_.1} parent=1 // pred_check
      _
    $region27: #{_lambda_.1} parent=1 // pred_check_branch
      %61 = sbr.rel (0) target = $region29
    $region28: #{_lambda_.1} parent=1 // pred_region
      _
    $region29: #{_lambda_.1} parent=1 // pred_fallthru
      _
    // Predicated region
    $region30: #{_lambda_.1} parent=1 // pred_check
      _
    $region31: #{_lambda_.1} parent=1 // pred_check_branch
      %63 = sbr.rel (0) target = $region33
    $region32: #{_lambda_.1} parent=1 // pred_region
      %65 = vsyncadd [#allocation8], 0
      %s66 = sshll.u32 %s7, 4
      %s67 = int_to_ptr.hbm [resolvable:$true] %s66
      %s68 = sshll.u32 [#allocation7], 4
      %s69 = int_to_ptr.vmem [resolvable:$true] %s68
      %74 = dma.hbm_to_vmem [thread:$0]  %s67, 2048, %s69, [#allocation8], 128, 128, 8
    $region33: #{_lambda_.1} parent=1 // pred_fallthru
      _
    // Predicated region
    $region34: #{_lambda_.1} parent=1 // pred_check
      _
    $region35: #{_lambda_.1} parent=1 // pred_check_branch
      %76 = sbr.rel (0) target = $region37
    $region36: #{_lambda_.1} parent=1 // pred_region
      _
    $region37: #{_lambda_.1} parent=1 // pred_fallthru
      _
    // Predicated region
    $region38: #{_lambda_.1} parent=1 // pred_check
      _
    $region39: #{_lambda_.1} parent=1 // pred_check_branch
      %78 = sbr.rel (0) target = $region41
    $region40: #{_lambda_.1} parent=1 // pred_region
      %80 = dma.done [#allocation3], 16384
    $region41: #{_lambda_.1} parent=1 // pred_fallthru
      _
    // Predicated region
    $region42: #{_lambda_.1} parent=1 // pred_check
      _
    $region43: #{_lambda_.1} parent=1 // pred_check_branch
      %82 = sbr.rel (0) target = $region45
    $region44: #{_lambda_.1} parent=1 // pred_region
      %84 = dma.done [#allocation5], 8192
    $region45: #{_lambda_.1} parent=1 // pred_fallthru
      _
    // Predicated region
    $region46: #{_lambda_.1} parent=1 // pred_check
      _
    $region47: #{_lambda_.1} parent=1 // pred_check_branch
      %86 = sbr.rel (0) target = $region49
    $region48: #{_lambda_.1} parent=1 // pred_region
      %88 = dma.done [#allocation5], 64
    $region49: #{_lambda_.1} parent=1 // pred_fallthru
      _
    // Predicated region
    $region50: #{_lambda_.1} parent=1 // pred_check
      _
    $region51: #{_lambda_.1} parent=1 // pred_check_branch
      %90 = sbr.rel (0) target = $region53
    $region52: #{_lambda_.1} parent=1 // pred_region
      %92 = dma.done [#allocation8], 2048
    $region53: #{_lambda_.1} parent=1 // pred_fallthru
      _
    %v93 = vld [vmem:[%s0] sm:$0x3]
    %v94 = vld [vmem:[#allocation2] sm:$0xff]
    %v95 = vld [vmem:[#allocation2 + $0x8] sm:$0xff]
    %v96 = vld [vmem:[#allocation2 + $0x10] sm:$0xff]
    %v97 = vld [vmem:[#allocation2 + $0x18] sm:$0xff]
    %v98 = vld [vmem:[#allocation2 + $0x20] sm:$0xff]
    %v99 = vld [vmem:[#allocation2 + $0x28] sm:$0xff]
    %v100 = vld [vmem:[#allocation2 + $0x30] sm:$0xff]
    %v101 = vld [vmem:[#allocation2 + $0x38] sm:$0xff]
    %v102 = vld [vmem:[#allocation2 + $0x40] sm:$0xff]
    %v103 = vld [vmem:[#allocation2 + $0x48] sm:$0xff]
    %v104 = vld [vmem:[#allocation2 + $0x50] sm:$0xff]
    %v105 = vld [vmem:[#allocation2 + $0x58] sm:$0xff]
    %v106 = vld [vmem:[#allocation2 + $0x60] sm:$0xff]
    %v107 = vld [vmem:[#allocation2 + $0x68] sm:$0xff]
    %v108 = vld [vmem:[#allocation2 + $0x70] sm:$0xff]
    %v109 = vld [vmem:[#allocation2 + $0x78] sm:$0xff]
    %v110 = vld [vmem:[#allocation2 + $0x80] sm:$0xff]
    %v111 = vld [vmem:[#allocation2 + $0x88] sm:$0xff]
    %v112 = vld [vmem:[#allocation2 + $0x90] sm:$0xff]
    %v113 = vld [vmem:[#allocation2 + $0x98] sm:$0xff]
    %v114 = vld [vmem:[#allocation2 + $0xa0] sm:$0xff]
    %v115 = vld [vmem:[#allocation2 + $0xa8] sm:$0xff]
    %v116 = vld [vmem:[#allocation2 + $0xb0] sm:$0xff]
    %v117 = vld [vmem:[#allocation2 + $0xb8] sm:$0xff]
    %v118 = vld [vmem:[#allocation2 + $0xc0] sm:$0xff]
    %v119 = vld [vmem:[#allocation2 + $0xc8] sm:$0xff]
    %v120 = vld [vmem:[#allocation2 + $0xd0] sm:$0xff]
    %v121 = vld [vmem:[#allocation2 + $0xd8] sm:$0xff]
    %v122 = vld [vmem:[#allocation2 + $0xe0] sm:$0xff]
    %v123 = vld [vmem:[#allocation2 + $0xe8] sm:$0xff]
    %v124 = vld [vmem:[#allocation2 + $0xf0] sm:$0xff]
    %v125 = vld [vmem:[#allocation2 + $0xf8] sm:$0xff]
    %v126 = vld [vmem:[#allocation2 + $0x100] sm:$0xff]
    %v127 = vld [vmem:[#allocation2 + $0x108] sm:$0xff]
    %v128 = vld [vmem:[#allocation2 + $0x110] sm:$0xff]
    %v129 = vld [vmem:[#allocation2 + $0x118] sm:$0xff]
    %v130 = vld [vmem:[#allocation2 + $0x120] sm:$0xff]
    %v131 = vld [vmem:[#allocation2 + $0x128] sm:$0xff]
    %v132 = vld [vmem:[#allocation2 + $0x130] sm:$0xff]
    %v133 = vld [vmem:[#allocation2 + $0x138] sm:$0xff]
    %v134 = vld [vmem:[#allocation2 + $0x140] sm:$0xff]
    %v135 = vld [vmem:[#allocation2 + $0x148] sm:$0xff]
    %v136 = vld [vmem:[#allocation2 + $0x150] sm:$0xff]
    %v137 = vld [vmem:[#allocation2 + $0x158] sm:$0xff]
    %v138 = vld [vmem:[#allocation2 + $0x160] sm:$0xff]
    %v139 = vld [vmem:[#allocation2 + $0x168] sm:$0xff]
    %v140 = vld [vmem:[#allocation2 + $0x170] sm:$0xff]
    %v141 = vld [vmem:[#allocation2 + $0x178] sm:$0xff]
    %v142 = vld [vmem:[#allocation2 + $0x180] sm:$0xff]
    %v143 = vld [vmem:[#allocation2 + $0x188] sm:$0xff]
    %v144 = vld [vmem:[#allocation2 + $0x190] sm:$0xff]
    %v145 = vld [vmem:[#allocation2 + $0x198] sm:$0xff]
    %v146 = vld [vmem:[#allocation2 + $0x1a0] sm:$0xff]
    %v147 = vld [vmem:[#allocation2 + $0x1a8] sm:$0xff]
    %v148 = vld [vmem:[#allocation2 + $0x1b0] sm:$0xff]
    %v149 = vld [vmem:[#allocation2 + $0x1b8] sm:$0xff]
    %v150 = vld [vmem:[#allocation2 + $0x1c0] sm:$0xff]
    %v151 = vld [vmem:[#allocation2 + $0x1c8] sm:$0xff]
    %v152 = vld [vmem:[#allocation2 + $0x1d0] sm:$0xff]
    %v153 = vld [vmem:[#allocation2 + $0x1d8] sm:$0xff]
    %v154 = vld [vmem:[#allocation2 + $0x1e0] sm:$0xff]
    %v155 = vld [vmem:[#allocation2 + $0x1e8] sm:$0xff]
    %v156 = vld [vmem:[#allocation2 + $0x1f0] sm:$0xff]
    %v157 = vld [vmem:[#allocation2 + $0x1f8] sm:$0xff]
    %v158 = vld [vmem:[#allocation2 + $0x200] sm:$0xff]
    %v159 = vld [vmem:[#allocation2 + $0x208] sm:$0xff]
    %v160 = vld [vmem:[#allocation2 + $0x210] sm:$0xff]
    %v161 = vld [vmem:[#allocation2 + $0x218] sm:$0xff]
    %v162 = vld [vmem:[#allocation2 + $0x220] sm:$0xff]
    %v163 = vld [vmem:[#allocation2 + $0x228] sm:$0xff]
    %v164 = vld [vmem:[#allocation2 + $0x230] sm:$0xff]
    %v165 = vld [vmem:[#allocation2 + $0x238] sm:$0xff]
    %v166 = vld [vmem:[#allocation2 + $0x240] sm:$0xff]
    %v167 = vld [vmem:[#allocation2 + $0x248] sm:$0xff]
    %v168 = vld [vmem:[#allocation2 + $0x250] sm:$0xff]
    %v169 = vld [vmem:[#allocation2 + $0x258] sm:$0xff]
    %v170 = vld [vmem:[#allocation2 + $0x260] sm:$0xff]
    %v171 = vld [vmem:[#allocation2 + $0x268] sm:$0xff]
    %v172 = vld [vmem:[#allocation2 + $0x270] sm:$0xff]
    %v173 = vld [vmem:[#allocation2 + $0x278] sm:$0xff]
    %v174 = vld [vmem:[#allocation2 + $0x280] sm:$0xff]
    %v175 = vld [vmem:[#allocation2 + $0x288] sm:$0xff]
    %v176 = vld [vmem:[#allocation2 + $0x290] sm:$0xff]
    %v177 = vld [vmem:[#allocation2 + $0x298] sm:$0xff]
    %v178 = vld [vmem:[#allocation2 + $0x2a0] sm:$0xff]
    %v179 = vld [vmem:[#allocation2 + $0x2a8] sm:$0xff]
    %v180 = vld [vmem:[#allocation2 + $0x2b0] sm:$0xff]
    %v181 = vld [vmem:[#allocation2 + $0x2b8] sm:$0xff]
    %v182 = vld [vmem:[#allocation2 + $0x2c0] sm:$0xff]
    %v183 = vld [vmem:[#allocation2 + $0x2c8] sm:$0xff]
    %v184 = vld [vmem:[#allocation2 + $0x2d0] sm:$0xff]
    %v185 = vld [vmem:[#allocation2 + $0x2d8] sm:$0xff]
    %v186 = vld [vmem:[#allocation2 + $0x2e0] sm:$0xff]
    %v187 = vld [vmem:[#allocation2 + $0x2e8] sm:$0xff]
    %v188 = vld [vmem:[#allocation2 + $0x2f0] sm:$0xff]
    %v189 = vld [vmem:[#allocation2 + $0x2f8] sm:$0xff]
    %v190 = vld [vmem:[#allocation2 + $0x300] sm:$0xff]
    %v191 = vld [vmem:[#allocation2 + $0x308] sm:$0xff]
    %v192 = vld [vmem:[#allocation2 + $0x310] sm:$0xff]
    %v193 = vld [vmem:[#allocation2 + $0x318] sm:$0xff]
    %v194 = vld [vmem:[#allocation2 + $0x320] sm:$0xff]
    %v195 = vld [vmem:[#allocation2 + $0x328] sm:$0xff]
    %v196 = vld [vmem:[#allocation2 + $0x330] sm:$0xff]
    %v197 = vld [vmem:[#allocation2 + $0x338] sm:$0xff]
    %v198 = vld [vmem:[#allocation2 + $0x340] sm:$0xff]
    %v199 = vld [vmem:[#allocation2 + $0x348] sm:$0xff]
    %v200 = vld [vmem:[#allocation2 + $0x350] sm:$0xff]
    %v201 = vld [vmem:[#allocation2 + $0x358] sm:$0xff]
    %v202 = vld [vmem:[#allocation2 + $0x360] sm:$0xff]
    %v203 = vld [vmem:[#allocation2 + $0x368] sm:$0xff]
    %v204 = vld [vmem:[#allocation2 + $0x370] sm:$0xff]
    %v205 = vld [vmem:[#allocation2 + $0x378] sm:$0xff]
    %v206 = vld [vmem:[#allocation2 + $0x380] sm:$0xff]
    %v207 = vld [vmem:[#allocation2 + $0x388] sm:$0xff]
    %v208 = vld [vmem:[#allocation2 + $0x390] sm:$0xff]
    %v209 = vld [vmem:[#allocation2 + $0x398] sm:$0xff]
    %v210 = vld [vmem:[#allocation2 + $0x3a0] sm:$0xff]
    %v211 = vld [vmem:[#allocation2 + $0x3a8] sm:$0xff]
    %v212 = vld [vmem:[#allocation2 + $0x3b0] sm:$0xff]
    %v213 = vld [vmem:[#allocation2 + $0x3b8] sm:$0xff]
    %v214 = vld [vmem:[#allocation2 + $0x3c0] sm:$0xff]
    %v215 = vld [vmem:[#allocation2 + $0x3c8] sm:$0xff]
    %v216 = vld [vmem:[#allocation2 + $0x3d0] sm:$0xff]
    %v217 = vld [vmem:[#allocation2 + $0x3d8] sm:$0xff]
    %v218 = vld [vmem:[#allocation2 + $0x3e0] sm:$0xff]
    %v219 = vld [vmem:[#allocation2 + $0x3e8] sm:$0xff]
    %v220 = vld [vmem:[#allocation2 + $0x3f0] sm:$0xff]
    %v221 = vld [vmem:[#allocation2 + $0x3f8] sm:$0xff]
    %v222 = vld [vmem:[%s2] sm:$0xff]
    %v224 = vperm.slane %v222, 0
    %v225 = vperm.slane %v222, 1
    %v226 = vperm.slane %v222, 2
    %v227 = vperm.slane %v222, 3
    %v228 = vperm.slane %v222, 4
    %v229 = vperm.slane %v222, 5
    %v230 = vperm.slane %v222, 6
    %v231 = vperm.slane %v222, 7
    %241 = vst [vmem:[#allocation1] ss:$9 sm:$0xff] %v93
    %v242 = vld [vmem:[#allocation1] sm:$0xff]
    %v243 = vld [vmem:[#allocation1 + $0x9] sm:$0xff]
    %v374 = vunpack.c.l.b16 %v94
    %v375 = vunpack.c.h.b16 %v94
    %v376 = vunpack.c.l.b16 %v95
    %v377 = vunpack.c.h.b16 %v95
    %v378 = vunpack.c.l.b16 %v96
    %v379 = vunpack.c.h.b16 %v96
    %v380 = vunpack.c.l.b16 %v97
    %v381 = vunpack.c.h.b16 %v97
    %v382 = vunpack.c.l.b16 %v98
    %v383 = vunpack.c.h.b16 %v98
    %v384 = vunpack.c.l.b16 %v99
    %v385 = vunpack.c.h.b16 %v99
    %v386 = vunpack.c.l.b16 %v100
    %v387 = vunpack.c.h.b16 %v100
    %v388 = vunpack.c.l.b16 %v101
    %v389 = vunpack.c.h.b16 %v101
    %v390 = vunpack.c.l.b16 %v102
    %v391 = vunpack.c.h.b16 %v102
    %v392 = vunpack.c.l.b16 %v103
    %v393 = vunpack.c.h.b16 %v103
    %v394 = vunpack.c.l.b16 %v104
    %v395 = vunpack.c.h.b16 %v104
    %v396 = vunpack.c.l.b16 %v105
    %v397 = vunpack.c.h.b16 %v105
    %v398 = vunpack.c.l.b16 %v106
    %v399 = vunpack.c.h.b16 %v106
    %v400 = vunpack.c.l.b16 %v107
    %v401 = vunpack.c.h.b16 %v107
    %v402 = vunpack.c.l.b16 %v108
    %v403 = vunpack.c.h.b16 %v108
    %v404 = vunpack.c.l.b16 %v109
    %v405 = vunpack.c.h.b16 %v109
    %v406 = vunpack.c.l.b16 %v110
    %v407 = vunpack.c.h.b16 %v110
    %v408 = vunpack.c.l.b16 %v111
    %v409 = vunpack.c.h.b16 %v111
    %v410 = vunpack.c.l.b16 %v112
    %v411 = vunpack.c.h.b16 %v112
    %v412 = vunpack.c.l.b16 %v113
    %v413 = vunpack.c.h.b16 %v113
    %v414 = vunpack.c.l.b16 %v114
    %v415 = vunpack.c.h.b16 %v114
    %v416 = vunpack.c.l.b16 %v115
    %v417 = vunpack.c.h.b16 %v115
    %v418 = vunpack.c.l.b16 %v116
    %v419 = vunpack.c.h.b16 %v116
    %v420 = vunpack.c.l.b16 %v117
    %v421 = vunpack.c.h.b16 %v117
    %v422 = vunpack.c.l.b16 %v118
    %v423 = vunpack.c.h.b16 %v118
    %v424 = vunpack.c.l.b16 %v119
    %v425 = vunpack.c.h.b16 %v119
    %v426 = vunpack.c.l.b16 %v120
    %v427 = vunpack.c.h.b16 %v120
    %v428 = vunpack.c.l.b16 %v121
    %v429 = vunpack.c.h.b16 %v121
    %v430 = vunpack.c.l.b16 %v122
    %v431 = vunpack.c.h.b16 %v122
    %v432 = vunpack.c.l.b16 %v123
    %v433 = vunpack.c.h.b16 %v123
    %v434 = vunpack.c.l.b16 %v124
    %v435 = vunpack.c.h.b16 %v124
    %v436 = vunpack.c.l.b16 %v125
    %v437 = vunpack.c.h.b16 %v125
    %v438 = vunpack.c.l.b16 %v126
    %v439 = vunpack.c.h.b16 %v126
    %v440 = vunpack.c.l.b16 %v127
    %v441 = vunpack.c.h.b16 %v127
    %v442 = vunpack.c.l.b16 %v128
    %v443 = vunpack.c.h.b16 %v128
    %v444 = vunpack.c.l.b16 %v129
    %v445 = vunpack.c.h.b16 %v129
    %v446 = vunpack.c.l.b16 %v130
    %v447 = vunpack.c.h.b16 %v130
    %v448 = vunpack.c.l.b16 %v131
    %v449 = vunpack.c.h.b16 %v131
    %v450 = vunpack.c.l.b16 %v132
    %v451 = vunpack.c.h.b16 %v132
    %v452 = vunpack.c.l.b16 %v133
    %v453 = vunpack.c.h.b16 %v133
    %v454 = vunpack.c.l.b16 %v134
    %v455 = vunpack.c.h.b16 %v134
    %v456 = vunpack.c.l.b16 %v135
    %v457 = vunpack.c.h.b16 %v135
    %v458 = vunpack.c.l.b16 %v136
    %v459 = vunpack.c.h.b16 %v136
    %v460 = vunpack.c.l.b16 %v137
    %v461 = vunpack.c.h.b16 %v137
    %v462 = vunpack.c.l.b16 %v138
    %v463 = vunpack.c.h.b16 %v138
    %v464 = vunpack.c.l.b16 %v139
    %v465 = vunpack.c.h.b16 %v139
    %v466 = vunpack.c.l.b16 %v140
    %v467 = vunpack.c.h.b16 %v140
    %v468 = vunpack.c.l.b16 %v141
    %v469 = vunpack.c.h.b16 %v141
    %v470 = vunpack.c.l.b16 %v142
    %v471 = vunpack.c.h.b16 %v142
    %v472 = vunpack.c.l.b16 %v143
    %v473 = vunpack.c.h.b16 %v143
    %v474 = vunpack.c.l.b16 %v144
    %v475 = vunpack.c.h.b16 %v144
    %v476 = vunpack.c.l.b16 %v145
    %v477 = vunpack.c.h.b16 %v145
    %v478 = vunpack.c.l.b16 %v146
    %v479 = vunpack.c.h.b16 %v146
    %v480 = vunpack.c.l.b16 %v147
    %v481 = vunpack.c.h.b16 %v147
    %v482 = vunpack.c.l.b16 %v148
    %v483 = vunpack.c.h.b16 %v148
    %v484 = vunpack.c.l.b16 %v149
    %v485 = vunpack.c.h.b16 %v149
    %v486 = vunpack.c.l.b16 %v150
    %v487 = vunpack.c.h.b16 %v150
    %v488 = vunpack.c.l.b16 %v151
    %v489 = vunpack.c.h.b16 %v151
    %v490 = vunpack.c.l.b16 %v152
    %v491 = vunpack.c.h.b16 %v152
    %v492 = vunpack.c.l.b16 %v153
    %v493 = vunpack.c.h.b16 %v153
    %v494 = vunpack.c.l.b16 %v154
    %v495 = vunpack.c.h.b16 %v154
    %v496 = vunpack.c.l.b16 %v155
    %v497 = vunpack.c.h.b16 %v155
    %v498 = vunpack.c.l.b16 %v156
    %v499 = vunpack.c.h.b16 %v156
    %v500 = vunpack.c.l.b16 %v157
    %v501 = vunpack.c.h.b16 %v157
    %v502 = vunpack.c.l.b16 %v158
    %v503 = vunpack.c.h.b16 %v158
    %v504 = vunpack.c.l.b16 %v159
    %v505 = vunpack.c.h.b16 %v159
    %v506 = vunpack.c.l.b16 %v160
    %v507 = vunpack.c.h.b16 %v160
    %v508 = vunpack.c.l.b16 %v161
    %v509 = vunpack.c.h.b16 %v161
    %v510 = vunpack.c.l.b16 %v162
    %v511 = vunpack.c.h.b16 %v162
    %v512 = vunpack.c.l.b16 %v163
    %v513 = vunpack.c.h.b16 %v163
    %v514 = vunpack.c.l.b16 %v164
    %v515 = vunpack.c.h.b16 %v164
    %v516 = vunpack.c.l.b16 %v165
    %v517 = vunpack.c.h.b16 %v165
    %v518 = vunpack.c.l.b16 %v166
    %v519 = vunpack.c.h.b16 %v166
    %v520 = vunpack.c.l.b16 %v167
    %v521 = vunpack.c.h.b16 %v167
    %v522 = vunpack.c.l.b16 %v168
    %v523 = vunpack.c.h.b16 %v168
    %v524 = vunpack.c.l.b16 %v169
    %v525 = vunpack.c.h.b16 %v169
    %v526 = vunpack.c.l.b16 %v170
    %v527 = vunpack.c.h.b16 %v170
    %v528 = vunpack.c.l.b16 %v171
    %v529 = vunpack.c.h.b16 %v171
    %v530 = vunpack.c.l.b16 %v172
    %v531 = vunpack.c.h.b16 %v172
    %v532 = vunpack.c.l.b16 %v173
    %v533 = vunpack.c.h.b16 %v173
    %v534 = vunpack.c.l.b16 %v174
    %v535 = vunpack.c.h.b16 %v174
    %v536 = vunpack.c.l.b16 %v175
    %v537 = vunpack.c.h.b16 %v175
    %v538 = vunpack.c.l.b16 %v176
    %v539 = vunpack.c.h.b16 %v176
    %v540 = vunpack.c.l.b16 %v177
    %v541 = vunpack.c.h.b16 %v177
    %v542 = vunpack.c.l.b16 %v178
    %v543 = vunpack.c.h.b16 %v178
    %v544 = vunpack.c.l.b16 %v179
    %v545 = vunpack.c.h.b16 %v179
    %v546 = vunpack.c.l.b16 %v180
    %v547 = vunpack.c.h.b16 %v180
    %v548 = vunpack.c.l.b16 %v181
    %v549 = vunpack.c.h.b16 %v181
    %v550 = vunpack.c.l.b16 %v182
    %v551 = vunpack.c.h.b16 %v182
    %v552 = vunpack.c.l.b16 %v183
    %v553 = vunpack.c.h.b16 %v183
    %v554 = vunpack.c.l.b16 %v184
    %v555 = vunpack.c.h.b16 %v184
    %v556 = vunpack.c.l.b16 %v185
    %v557 = vunpack.c.h.b16 %v185
    %v558 = vunpack.c.l.b16 %v186
    %v559 = vunpack.c.h.b16 %v186
    %v560 = vunpack.c.l.b16 %v187
    %v561 = vunpack.c.h.b16 %v187
    %v562 = vunpack.c.l.b16 %v188
    %v563 = vunpack.c.h.b16 %v188
    %v564 = vunpack.c.l.b16 %v189
    %v565 = vunpack.c.h.b16 %v189
    %v566 = vunpack.c.l.b16 %v190
    %v567 = vunpack.c.h.b16 %v190
    %v568 = vunpack.c.l.b16 %v191
    %v569 = vunpack.c.h.b16 %v191
    %v570 = vunpack.c.l.b16 %v192
    %v571 = vunpack.c.h.b16 %v192
    %v572 = vunpack.c.l.b16 %v193
    %v573 = vunpack.c.h.b16 %v193
    %v574 = vunpack.c.l.b16 %v194
    %v575 = vunpack.c.h.b16 %v194
    %v576 = vunpack.c.l.b16 %v195
    %v577 = vunpack.c.h.b16 %v195
    %v578 = vunpack.c.l.b16 %v196
    %v579 = vunpack.c.h.b16 %v196
    %v580 = vunpack.c.l.b16 %v197
    %v581 = vunpack.c.h.b16 %v197
    %v582 = vunpack.c.l.b16 %v198
    %v583 = vunpack.c.h.b16 %v198
    %v584 = vunpack.c.l.b16 %v199
    %v585 = vunpack.c.h.b16 %v199
    %v586 = vunpack.c.l.b16 %v200
    %v587 = vunpack.c.h.b16 %v200
    %v588 = vunpack.c.l.b16 %v201
    %v589 = vunpack.c.h.b16 %v201
    %v590 = vunpack.c.l.b16 %v202
    %v591 = vunpack.c.h.b16 %v202
    %v592 = vunpack.c.l.b16 %v203
    %v593 = vunpack.c.h.b16 %v203
    %v594 = vunpack.c.l.b16 %v204
    %v595 = vunpack.c.h.b16 %v204
    %v596 = vunpack.c.l.b16 %v205
    %v597 = vunpack.c.h.b16 %v205
    %v598 = vunpack.c.l.b16 %v206
    %v599 = vunpack.c.h.b16 %v206
    %v600 = vunpack.c.l.b16 %v207
    %v601 = vunpack.c.h.b16 %v207
    %v602 = vunpack.c.l.b16 %v208
    %v603 = vunpack.c.h.b16 %v208
    %v604 = vunpack.c.l.b16 %v209
    %v605 = vunpack.c.h.b16 %v209
    %v606 = vunpack.c.l.b16 %v210
    %v607 = vunpack.c.h.b16 %v210
    %v608 = vunpack.c.l.b16 %v211
    %v609 = vunpack.c.h.b16 %v211
    %v610 = vunpack.c.l.b16 %v212
    %v611 = vunpack.c.h.b16 %v212
    %v612 = vunpack.c.l.b16 %v213
    %v613 = vunpack.c.h.b16 %v213
    %v614 = vunpack.c.l.b16 %v214
    %v615 = vunpack.c.h.b16 %v214
    %v616 = vunpack.c.l.b16 %v215
    %v617 = vunpack.c.h.b16 %v215
    %v618 = vunpack.c.l.b16 %v216
    %v619 = vunpack.c.h.b16 %v216
    %v620 = vunpack.c.l.b16 %v217
    %v621 = vunpack.c.h.b16 %v217
    %v622 = vunpack.c.l.b16 %v218
    %v623 = vunpack.c.h.b16 %v218
    %v624 = vunpack.c.l.b16 %v219
    %v625 = vunpack.c.h.b16 %v219
    %v626 = vunpack.c.l.b16 %v220
    %v627 = vunpack.c.h.b16 %v220
    %v628 = vunpack.c.l.b16 %v221
    %v629 = vunpack.c.h.b16 %v221
    %v630 = vpack.c.b16 %v382, %v374
    %v631 = vpack.c.b16 %v383, %v375
    %v632 = vpack.c.b16 %v384, %v376
    %v633 = vpack.c.b16 %v385, %v377
    %v634 = vpack.c.b16 %v386, %v378
    %v635 = vpack.c.b16 %v387, %v379
    %v636 = vpack.c.b16 %v388, %v380
    %v637 = vpack.c.b16 %v389, %v381
    %v638 = vpack.c.b16 %v398, %v390
    %v639 = vpack.c.b16 %v399, %v391
    %v640 = vpack.c.b16 %v400, %v392
    %v641 = vpack.c.b16 %v401, %v393
    %v642 = vpack.c.b16 %v402, %v394
    %v643 = vpack.c.b16 %v403, %v395
    %v644 = vpack.c.b16 %v404, %v396
    %v645 = vpack.c.b16 %v405, %v397
    %v646 = vpack.c.b16 %v414, %v406
    %v647 = vpack.c.b16 %v415, %v407
    %v648 = vpack.c.b16 %v416, %v408
    %v649 = vpack.c.b16 %v417, %v409
    %v650 = vpack.c.b16 %v418, %v410
    %v651 = vpack.c.b16 %v419, %v411
    %v652 = vpack.c.b16 %v420, %v412
    %v653 = vpack.c.b16 %v421, %v413
    %v654 = vpack.c.b16 %v430, %v422
    %v655 = vpack.c.b16 %v431, %v423
    %v656 = vpack.c.b16 %v432, %v424
    %v657 = vpack.c.b16 %v433, %v425
    %v658 = vpack.c.b16 %v434, %v426
    %v659 = vpack.c.b16 %v435, %v427
    %v660 = vpack.c.b16 %v436, %v428
    %v661 = vpack.c.b16 %v437, %v429
    %v662 = vpack.c.b16 %v446, %v438
    %v663 = vpack.c.b16 %v447, %v439
    %v664 = vpack.c.b16 %v448, %v440
    %v665 = vpack.c.b16 %v449, %v441
    %v666 = vpack.c.b16 %v450, %v442
    %v667 = vpack.c.b16 %v451, %v443
    %v668 = vpack.c.b16 %v452, %v444
    %v669 = vpack.c.b16 %v453, %v445
    %v670 = vpack.c.b16 %v462, %v454
    %v671 = vpack.c.b16 %v463, %v455
    %v672 = vpack.c.b16 %v464, %v456
    %v673 = vpack.c.b16 %v465, %v457
    %v674 = vpack.c.b16 %v466, %v458
    %v675 = vpack.c.b16 %v467, %v459
    %v676 = vpack.c.b16 %v468, %v460
    %v677 = vpack.c.b16 %v469, %v461
    %v678 = vpack.c.b16 %v478, %v470
    %v679 = vpack.c.b16 %v479, %v471
    %v680 = vpack.c.b16 %v480, %v472
    %v681 = vpack.c.b16 %v481, %v473
    %v682 = vpack.c.b16 %v482, %v474
    %v683 = vpack.c.b16 %v483, %v475
    %v684 = vpack.c.b16 %v484, %v476
    %v685 = vpack.c.b16 %v485, %v477
    %v686 = vpack.c.b16 %v494, %v486
    %v687 = vpack.c.b16 %v495, %v487
    %v688 = vpack.c.b16 %v496, %v488
    %v689 = vpack.c.b16 %v497, %v489
    %v690 = vpack.c.b16 %v498, %v490
    %v691 = vpack.c.b16 %v499, %v491
    %v692 = vpack.c.b16 %v500, %v492
    %v693 = vpack.c.b16 %v501, %v493
    %v694 = vpack.c.b16 %v510, %v502
    %v695 = vpack.c.b16 %v511, %v503
    %v696 = vpack.c.b16 %v512, %v504
    %v697 = vpack.c.b16 %v513, %v505
    %v698 = vpack.c.b16 %v514, %v506
    %v699 = vpack.c.b16 %v515, %v507
    %v700 = vpack.c.b16 %v516, %v508
    %v701 = vpack.c.b16 %v517, %v509
    %v702 = vpack.c.b16 %v526, %v518
    %v703 = vpack.c.b16 %v527, %v519
    %v704 = vpack.c.b16 %v528, %v520
    %v705 = vpack.c.b16 %v529, %v521
    %v706 = vpack.c.b16 %v530, %v522
    %v707 = vpack.c.b16 %v531, %v523
    %v708 = vpack.c.b16 %v532, %v524
    %v709 = vpack.c.b16 %v533, %v525
    %v710 = vpack.c.b16 %v542, %v534
    %v711 = vpack.c.b16 %v543, %v535
    %v712 = vpack.c.b16 %v544, %v536
    %v713 = vpack.c.b16 %v545, %v537
    %v714 = vpack.c.b16 %v546, %v538
    %v715 = vpack.c.b16 %v547, %v539
    %v716 = vpack.c.b16 %v548, %v540
    %v717 = vpack.c.b16 %v549, %v541
    %v718 = vpack.c.b16 %v558, %v550
    %v719 = vpack.c.b16 %v559, %v551
    %v720 = vpack.c.b16 %v560, %v552
    %v721 = vpack.c.b16 %v561, %v553
    %v722 = vpack.c.b16 %v562, %v554
    %v723 = vpack.c.b16 %v563, %v555
    %v724 = vpack.c.b16 %v564, %v556
    %v725 = vpack.c.b16 %v565, %v557
    %v726 = vpack.c.b16 %v574, %v566
    %v727 = vpack.c.b16 %v575, %v567
    %v728 = vpack.c.b16 %v576, %v568
    %v729 = vpack.c.b16 %v577, %v569
    %v730 = vpack.c.b16 %v578, %v570
    %v731 = vpack.c.b16 %v579, %v571
    %v732 = vpack.c.b16 %v580, %v572
    %v733 = vpack.c.b16 %v581, %v573
    %v734 = vpack.c.b16 %v590, %v582
    %v735 = vpack.c.b16 %v591, %v583
    %v736 = vpack.c.b16 %v592, %v584
    %v737 = vpack.c.b16 %v593, %v585
    %v738 = vpack.c.b16 %v594, %v586
    %v739 = vpack.c.b16 %v595, %v587
    %v740 = vpack.c.b16 %v596, %v588
    %v741 = vpack.c.b16 %v597, %v589
    %v742 = vpack.c.b16 %v606, %v598
    %v743 = vpack.c.b16 %v607, %v599
    %v744 = vpack.c.b16 %v608, %v600
    %v745 = vpack.c.b16 %v609, %v601
    %v746 = vpack.c.b16 %v610, %v602
    %v747 = vpack.c.b16 %v611, %v603
    %v748 = vpack.c.b16 %v612, %v604
    %v749 = vpack.c.b16 %v613, %v605
    %v750 = vpack.c.b16 %v622, %v614
    %v751 = vpack.c.b16 %v623, %v615
    %v752 = vpack.c.b16 %v624, %v616
    %v753 = vpack.c.b16 %v625, %v617
    %v754 = vpack.c.b16 %v626, %v618
    %v755 = vpack.c.b16 %v627, %v619
    %v756 = vpack.c.b16 %v628, %v620
    %v757 = vpack.c.b16 %v629, %v621
    %886 = vmatpush.bf16.msra.mxu0 %v686
    %887 = vmatpush.bf16.msra.mxu0 %v678
    %888 = vmatpush.bf16.msra.mxu0 %v670
    %889 = vmatpush.bf16.msra.mxu0 %v662
    %890 = vmatpush.bf16.msra.mxu0 %v654
    %891 = vmatpush.bf16.msra.mxu0 %v646
    %892 = vmatpush.bf16.msra.mxu0 %v638
    %893 = vmatpush.bf16.msra.mxu0 %v630
    %894 = vmatmul.bf16.gmra.mxu0 %v242
    %v895 = vpop.f32.mrf.mxu0
    %v896 = vadd.f32 %v224, %v895
    %v897 = vpop.f32.mrf.mxu0
    %898 = vdwg.mxu0
    %899 = vmatpush.bf16.msra.mxu0 %v750
    %900 = vmatpush.bf16.msra.mxu0 %v742
    %901 = vmatpush.bf16.msra.mxu0 %v734
    %902 = vmatpush.bf16.msra.mxu0 %v726
    %903 = vmatpush.bf16.msra.mxu0 %v718
    %904 = vmatpush.bf16.msra.mxu0 %v710
    %905 = vmatpush.bf16.msra.mxu0 %v702
    %906 = vmatpush.bf16.msra.mxu0 %v694
    %907 = vmatmul.bf16.gmra.mxu0 %v243
    %v908 = vpop.f32.mrf.mxu0
    %v909 = vadd.f32 %v896, %v908
    %v910 = vpop.f32.mrf.mxu0
    %911 = vdwg.mxu0
    %912 = vmatpush.bf16.msra.mxu0 %v687
    %913 = vmatpush.bf16.msra.mxu0 %v679
    %914 = vmatpush.bf16.msra.mxu0 %v671
    %915 = vmatpush.bf16.msra.mxu0 %v663
    %916 = vmatpush.bf16.msra.mxu0 %v655
    %917 = vmatpush.bf16.msra.mxu0 %v647
    %918 = vmatpush.bf16.msra.mxu0 %v639
    %919 = vmatpush.bf16.msra.mxu0 %v631
    %920 = vmatmul.bf16.gmra.mxu0 %v242
    %v921 = vpop.f32.mrf.mxu0
    %v922 = vadd.f32 %v225, %v921
    %v923 = vpop.f32.mrf.mxu0
    %924 = vdwg.mxu0
    %925 = vmatpush.bf16.msra.mxu0 %v751
    %926 = vmatpush.bf16.msra.mxu0 %v743
    %927 = vmatpush.bf16.msra.mxu0 %v735
    %928 = vmatpush.bf16.msra.mxu0 %v727
    %929 = vmatpush.bf16.msra.mxu0 %v719
    %930 = vmatpush.bf16.msra.mxu0 %v711
    %931 = vmatpush.bf16.msra.mxu0 %v703
    %932 = vmatpush.bf16.msra.mxu0 %v695
    %933 = vmatmul.bf16.gmra.mxu0 %v243
    %v934 = vpop.f32.mrf.mxu0
    %v935 = vadd.f32 %v922, %v934
    %v936 = vpop.f32.mrf.mxu0
    %937 = vdwg.mxu0
    %938 = vmatpush.bf16.msra.mxu0 %v688
    %939 = vmatpush.bf16.msra.mxu0 %v680
    %940 = vmatpush.bf16.msra.mxu0 %v672
    %941 = vmatpush.bf16.msra.mxu0 %v664
    %942 = vmatpush.bf16.msra.mxu0 %v656
    %943 = vmatpush.bf16.msra.mxu0 %v648
    %944 = vmatpush.bf16.msra.mxu0 %v640
    %945 = vmatpush.bf16.msra.mxu0 %v632
    %946 = vmatmul.bf16.gmra.mxu0 %v242
    %v947 = vpop.f32.mrf.mxu0
    %v948 = vadd.f32 %v226, %v947
    %v949 = vpop.f32.mrf.mxu0
    %950 = vdwg.mxu0
    %951 = vmatpush.bf16.msra.mxu0 %v752
    %952 = vmatpush.bf16.msra.mxu0 %v744
    %953 = vmatpush.bf16.msra.mxu0 %v736
    %954 = vmatpush.bf16.msra.mxu0 %v728
    %955 = vmatpush.bf16.msra.mxu0 %v720
    %956 = vmatpush.bf16.msra.mxu0 %v712
    %957 = vmatpush.bf16.msra.mxu0 %v704
    %958 = vmatpush.bf16.msra.mxu0 %v696
    %959 = vmatmul.bf16.gmra.mxu0 %v243
    %v960 = vpop.f32.mrf.mxu0
    %v961 = vadd.f32 %v948, %v960
    %v962 = vpop.f32.mrf.mxu0
    %963 = vdwg.mxu0
    %964 = vmatpush.bf16.msra.mxu0 %v689
    %965 = vmatpush.bf16.msra.mxu0 %v681
    %966 = vmatpush.bf16.msra.mxu0 %v673
    %967 = vmatpush.bf16.msra.mxu0 %v665
    %968 = vmatpush.bf16.msra.mxu0 %v657
    %969 = vmatpush.bf16.msra.mxu0 %v649
    %970 = vmatpush.bf16.msra.mxu0 %v641
    %971 = vmatpush.bf16.msra.mxu0 %v633
    %972 = vmatmul.bf16.gmra.mxu0 %v242
    %v973 = vpop.f32.mrf.mxu0
    %v974 = vadd.f32 %v227, %v973
    %v975 = vpop.f32.mrf.mxu0
    %976 = vdwg.mxu0
    %977 = vmatpush.bf16.msra.mxu0 %v753
    %978 = vmatpush.bf16.msra.mxu0 %v745
    %979 = vmatpush.bf16.msra.mxu0 %v737
    %980 = vmatpush.bf16.msra.mxu0 %v729
    %981 = vmatpush.bf16.msra.mxu0 %v721
    %982 = vmatpush.bf16.msra.mxu0 %v713
    %983 = vmatpush.bf16.msra.mxu0 %v705
    %984 = vmatpush.bf16.msra.mxu0 %v697
    %985 = vmatmul.bf16.gmra.mxu0 %v243
    %v986 = vpop.f32.mrf.mxu0
    %v987 = vadd.f32 %v974, %v986
    %v988 = vpop.f32.mrf.mxu0
    %989 = vdwg.mxu0
    %990 = vmatpush.bf16.msra.mxu0 %v690
    %991 = vmatpush.bf16.msra.mxu0 %v682
    %992 = vmatpush.bf16.msra.mxu0 %v674
    %993 = vmatpush.bf16.msra.mxu0 %v666
    %994 = vmatpush.bf16.msra.mxu0 %v658
    %995 = vmatpush.bf16.msra.mxu0 %v650
    %996 = vmatpush.bf16.msra.mxu0 %v642
    %997 = vmatpush.bf16.msra.mxu0 %v634
    %998 = vmatmul.bf16.gmra.mxu0 %v242
    %v999 = vpop.f32.mrf.mxu0
    %v1000 = vadd.f32 %v228, %v999
    %v1001 = vpop.f32.mrf.mxu0
    %1002 = vdwg.mxu0
    %1003 = vmatpush.bf16.msra.mxu0 %v754
    %1004 = vmatpush.bf16.msra.mxu0 %v746
    %1005 = vmatpush.bf16.msra.mxu0 %v738
    %1006 = vmatpush.bf16.msra.mxu0 %v730
    %1007 = vmatpush.bf16.msra.mxu0 %v722
    %1008 = vmatpush.bf16.msra.mxu0 %v714
    %1009 = vmatpush.bf16.msra.mxu0 %v706
    %1010 = vmatpush.bf16.msra.mxu0 %v698
    %1011 = vmatmul.bf16.gmra.mxu0 %v243
    %v1012 = vpop.f32.mrf.mxu0
    %v1013 = vadd.f32 %v1000, %v1012
    %v1014 = vpop.f32.mrf.mxu0
    %1015 = vdwg.mxu0
    %1016 = vmatpush.bf16.msra.mxu0 %v691
    %1017 = vmatpush.bf16.msra.mxu0 %v683
    %1018 = vmatpush.bf16.msra.mxu0 %v675
    %1019 = vmatpush.bf16.msra.mxu0 %v667
    %1020 = vmatpush.bf16.msra.mxu0 %v659
    %1021 = vmatpush.bf16.msra.mxu0 %v651
    %1022 = vmatpush.bf16.msra.mxu0 %v643
    %1023 = vmatpush.bf16.msra.mxu0 %v635
    %1024 = vmatmul.bf16.gmra.mxu0 %v242
    %v1025 = vpop.f32.mrf.mxu0
    %v1026 = vadd.f32 %v229, %v1025
    %v1027 = vpop.f32.mrf.mxu0
    %1028 = vdwg.mxu0
    %1029 = vmatpush.bf16.msra.mxu0 %v755
    %1030 = vmatpush.bf16.msra.mxu0 %v747
    %1031 = vmatpush.bf16.msra.mxu0 %v739
    %1032 = vmatpush.bf16.msra.mxu0 %v731
    %1033 = vmatpush.bf16.msra.mxu0 %v723
    %1034 = vmatpush.bf16.msra.mxu0 %v715
    %1035 = vmatpush.bf16.msra.mxu0 %v707
    %1036 = vmatpush.bf16.msra.mxu0 %v699
    %1037 = vmatmul.bf16.gmra.mxu0 %v243
    %v1038 = vpop.f32.mrf.mxu0
    %v1039 = vadd.f32 %v1026, %v1038
    %v1040 = vpop.f32.mrf.mxu0
    %1041 = vdwg.mxu0
    %1042 = vmatpush.bf16.msra.mxu0 %v692
    %1043 = vmatpush.bf16.msra.mxu0 %v684
    %1044 = vmatpush.bf16.msra.mxu0 %v676
    %1045 = vmatpush.bf16.msra.mxu0 %v668
    %1046 = vmatpush.bf16.msra.mxu0 %v660
    %1047 = vmatpush.bf16.msra.mxu0 %v652
    %1048 = vmatpush.bf16.msra.mxu0 %v644
    %1049 = vmatpush.bf16.msra.mxu0 %v636
    %1050 = vmatmul.bf16.gmra.mxu0 %v242
    %v1051 = vpop.f32.mrf.mxu0
    %v1052 = vadd.f32 %v230, %v1051
    %v1053 = vpop.f32.mrf.mxu0
    %1054 = vdwg.mxu0
    %1055 = vmatpush.bf16.msra.mxu0 %v756
    %1056 = vmatpush.bf16.msra.mxu0 %v748
    %1057 = vmatpush.bf16.msra.mxu0 %v740
    %1058 = vmatpush.bf16.msra.mxu0 %v732
    %1059 = vmatpush.bf16.msra.mxu0 %v724
    %1060 = vmatpush.bf16.msra.mxu0 %v716
    %1061 = vmatpush.bf16.msra.mxu0 %v708
    %1062 = vmatpush.bf16.msra.mxu0 %v700
    %1063 = vmatmul.bf16.gmra.mxu0 %v243
    %v1064 = vpop.f32.mrf.mxu0
    %v1065 = vadd.f32 %v1052, %v1064
    %v1066 = vpop.f32.mrf.mxu0
    %1067 = vdwg.mxu0
    %1068 = vmatpush.bf16.msra.mxu0 %v693
    %1069 = vmatpush.bf16.msra.mxu0 %v685
    %1070 = vmatpush.bf16.msra.mxu0 %v677
    %1071 = vmatpush.bf16.msra.mxu0 %v669
    %1072 = vmatpush.bf16.msra.mxu0 %v661
    %1073 = vmatpush.bf16.msra.mxu0 %v653
    %1074 = vmatpush.bf16.msra.mxu0 %v645
    %1075 = vmatpush.bf16.msra.mxu0 %v637
    %1076 = vmatmul.bf16.gmra.mxu0 %v242
    %v1077 = vpop.f32.mrf.mxu0
    %v1078 = vadd.f32 %v231, %v1077
    %v1079 = vpop.f32.mrf.mxu0
    %1080 = vdwg.mxu0
    %1081 = vmatpush.bf16.msra.mxu0 %v757
    %1082 = vmatpush.bf16.msra.mxu0 %v749
    %1083 = vmatpush.bf16.msra.mxu0 %v741
    %1084 = vmatpush.bf16.msra.mxu0 %v733
    %1085 = vmatpush.bf16.msra.mxu0 %v725
    %1086 = vmatpush.bf16.msra.mxu0 %v717
    %1087 = vmatpush.bf16.msra.mxu0 %v709
    %1088 = vmatpush.bf16.msra.mxu0 %v701
    %1089 = vmatmul.bf16.gmra.mxu0 %v243
    %v1090 = vpop.f32.mrf.mxu0
    %v1091 = vadd.f32 %v1078, %v1090
    %v1092 = vpop.f32.mrf.mxu0
    %1093 = vdwg.mxu0
    %v1094 = vmax.f32 %v909, %v961
    %v1095 = vmax.f32 %v935, %v987
    %v1096 = vmax.f32 %v1013, %v1065
    %v1097 = vmax.f32 %v1039, %v1091
    %v1098 = vmax.f32 %v1094, %v1096
    %v1099 = vmax.f32 %v1095, %v1097
    %v1100 = vmax.f32 %v1098, 0.0
    %v1101 = vmax.f32 %v1099, 0.0
    %v1102 = vpack.c.bf16 %v1100, %v1100
    %v1103 = vpack.c.bf16 %v1101, %v1101
    %v1104 = vld [vmem:[#allocation4] sm:$0xff]
    %v1105 = vld [vmem:[#allocation4 + $0x8] sm:$0xff]
    %v1106 = vld [vmem:[#allocation4 + $0x10] sm:$0xff]
    %v1107 = vld [vmem:[#allocation4 + $0x18] sm:$0xff]
    %v1108 = vld [vmem:[#allocation4 + $0x20] sm:$0xff]
    %v1109 = vld [vmem:[#allocation4 + $0x28] sm:$0xff]
    %v1110 = vld [vmem:[#allocation4 + $0x30] sm:$0xff]
    %v1111 = vld [vmem:[#allocation4 + $0x38] sm:$0xff]
    %v1112 = vld [vmem:[#allocation4 + $0x40] sm:$0xff]
    %v1113 = vld [vmem:[#allocation4 + $0x48] sm:$0xff]
    %v1114 = vld [vmem:[#allocation4 + $0x50] sm:$0xff]
    %v1115 = vld [vmem:[#allocation4 + $0x58] sm:$0xff]
    %v1116 = vld [vmem:[#allocation4 + $0x60] sm:$0xff]
    %v1117 = vld [vmem:[#allocation4 + $0x68] sm:$0xff]
    %v1118 = vld [vmem:[#allocation4 + $0x70] sm:$0xff]
    %v1119 = vld [vmem:[#allocation4 + $0x78] sm:$0xff]
    %v1120 = vld [vmem:[#allocation4 + $0x80] sm:$0xff]
    %v1121 = vld [vmem:[#allocation4 + $0x88] sm:$0xff]
    %v1122 = vld [vmem:[#allocation4 + $0x90] sm:$0xff]
    %v1123 = vld [vmem:[#allocation4 + $0x98] sm:$0xff]
    %v1124 = vld [vmem:[#allocation4 + $0xa0] sm:$0xff]
    %v1125 = vld [vmem:[#allocation4 + $0xa8] sm:$0xff]
    %v1126 = vld [vmem:[#allocation4 + $0xb0] sm:$0xff]
    %v1127 = vld [vmem:[#allocation4 + $0xb8] sm:$0xff]
    %v1128 = vld [vmem:[#allocation4 + $0xc0] sm:$0xff]
    %v1129 = vld [vmem:[#allocation4 + $0xc8] sm:$0xff]
    %v1130 = vld [vmem:[#allocation4 + $0xd0] sm:$0xff]
    %v1131 = vld [vmem:[#allocation4 + $0xd8] sm:$0xff]
    %v1132 = vld [vmem:[#allocation4 + $0xe0] sm:$0xff]
    %v1133 = vld [vmem:[#allocation4 + $0xe8] sm:$0xff]
    %v1134 = vld [vmem:[#allocation4 + $0xf0] sm:$0xff]
    %v1135 = vld [vmem:[#allocation4 + $0xf8] sm:$0xff]
    %v1136 = vld [vmem:[#allocation4 + $0x100] sm:$0xff]
    %v1137 = vld [vmem:[#allocation4 + $0x108] sm:$0xff]
    %v1138 = vld [vmem:[#allocation4 + $0x110] sm:$0xff]
    %v1139 = vld [vmem:[#allocation4 + $0x118] sm:$0xff]
    %v1140 = vld [vmem:[#allocation4 + $0x120] sm:$0xff]
    %v1141 = vld [vmem:[#allocation4 + $0x128] sm:$0xff]
    %v1142 = vld [vmem:[#allocation4 + $0x130] sm:$0xff]
    %v1143 = vld [vmem:[#allocation4 + $0x138] sm:$0xff]
    %v1144 = vld [vmem:[#allocation4 + $0x140] sm:$0xff]
    %v1145 = vld [vmem:[#allocation4 + $0x148] sm:$0xff]
    %v1146 = vld [vmem:[#allocation4 + $0x150] sm:$0xff]
    %v1147 = vld [vmem:[#allocation4 + $0x158] sm:$0xff]
    %v1148 = vld [vmem:[#allocation4 + $0x160] sm:$0xff]
    %v1149 = vld [vmem:[#allocation4 + $0x168] sm:$0xff]
    %v1150 = vld [vmem:[#allocation4 + $0x170] sm:$0xff]
    %v1151 = vld [vmem:[#allocation4 + $0x178] sm:$0xff]
    %v1152 = vld [vmem:[#allocation4 + $0x180] sm:$0xff]
    %v1153 = vld [vmem:[#allocation4 + $0x188] sm:$0xff]
    %v1154 = vld [vmem:[#allocation4 + $0x190] sm:$0xff]
    %v1155 = vld [vmem:[#allocation4 + $0x198] sm:$0xff]
    %v1156 = vld [vmem:[#allocation4 + $0x1a0] sm:$0xff]
    %v1157 = vld [vmem:[#allocation4 + $0x1a8] sm:$0xff]
    %v1158 = vld [vmem:[#allocation4 + $0x1b0] sm:$0xff]
    %v1159 = vld [vmem:[#allocation4 + $0x1b8] sm:$0xff]
    %v1160 = vld [vmem:[#allocation4 + $0x1c0] sm:$0xff]
    %v1161 = vld [vmem:[#allocation4 + $0x1c8] sm:$0xff]
    %v1162 = vld [vmem:[#allocation4 + $0x1d0] sm:$0xff]
    %v1163 = vld [vmem:[#allocation4 + $0x1d8] sm:$0xff]
    %v1164 = vld [vmem:[#allocation4 + $0x1e0] sm:$0xff]
    %v1165 = vld [vmem:[#allocation4 + $0x1e8] sm:$0xff]
    %v1166 = vld [vmem:[#allocation4 + $0x1f0] sm:$0xff]
    %v1167 = vld [vmem:[#allocation4 + $0x1f8] sm:$0xff]
    %v1168 = vld [vmem:[#allocation6] sm:$0xf]
    %v1170 = vperm.slane %v1168, 0
    %v1171 = vperm.slane %v1168, 1
    %v1172 = vperm.slane %v1168, 2
    %v1173 = vperm.slane %v1168, 3
    %v1242 = vunpack.c.l.b16 %v1104
    %v1243 = vunpack.c.h.b16 %v1104
    %v1244 = vunpack.c.l.b16 %v1105
    %v1245 = vunpack.c.h.b16 %v1105
    %v1246 = vunpack.c.l.b16 %v1106
    %v1247 = vunpack.c.h.b16 %v1106
    %v1248 = vunpack.c.l.b16 %v1107
    %v1249 = vunpack.c.h.b16 %v1107
    %v1250 = vunpack.c.l.b16 %v1108
    %v1251 = vunpack.c.h.b16 %v1108
    %v1252 = vunpack.c.l.b16 %v1109
    %v1253 = vunpack.c.h.b16 %v1109
    %v1254 = vunpack.c.l.b16 %v1110
    %v1255 = vunpack.c.h.b16 %v1110
    %v1256 = vunpack.c.l.b16 %v1111
    %v1257 = vunpack.c.h.b16 %v1111
    %v1258 = vunpack.c.l.b16 %v1112
    %v1259 = vunpack.c.h.b16 %v1112
    %v1260 = vunpack.c.l.b16 %v1113
    %v1261 = vunpack.c.h.b16 %v1113
    %v1262 = vunpack.c.l.b16 %v1114
    %v1263 = vunpack.c.h.b16 %v1114
    %v1264 = vunpack.c.l.b16 %v1115
    %v1265 = vunpack.c.h.b16 %v1115
    %v1266 = vunpack.c.l.b16 %v1116
    %v1267 = vunpack.c.h.b16 %v1116
    %v1268 = vunpack.c.l.b16 %v1117
    %v1269 = vunpack.c.h.b16 %v1117
    %v1270 = vunpack.c.l.b16 %v1118
    %v1271 = vunpack.c.h.b16 %v1118
    %v1272 = vunpack.c.l.b16 %v1119
    %v1273 = vunpack.c.h.b16 %v1119
    %v1274 = vunpack.c.l.b16 %v1120
    %v1275 = vunpack.c.h.b16 %v1120
    %v1276 = vunpack.c.l.b16 %v1121
    %v1277 = vunpack.c.h.b16 %v1121
    %v1278 = vunpack.c.l.b16 %v1122
    %v1279 = vunpack.c.h.b16 %v1122
    %v1280 = vunpack.c.l.b16 %v1123
    %v1281 = vunpack.c.h.b16 %v1123
    %v1282 = vunpack.c.l.b16 %v1124
    %v1283 = vunpack.c.h.b16 %v1124
    %v1284 = vunpack.c.l.b16 %v1125
    %v1285 = vunpack.c.h.b16 %v1125
    %v1286 = vunpack.c.l.b16 %v1126
    %v1287 = vunpack.c.h.b16 %v1126
    %v1288 = vunpack.c.l.b16 %v1127
    %v1289 = vunpack.c.h.b16 %v1127
    %v1290 = vunpack.c.l.b16 %v1128
    %v1291 = vunpack.c.h.b16 %v1128
    %v1292 = vunpack.c.l.b16 %v1129
    %v1293 = vunpack.c.h.b16 %v1129
    %v1294 = vunpack.c.l.b16 %v1130
    %v1295 = vunpack.c.h.b16 %v1130
    %v1296 = vunpack.c.l.b16 %v1131
    %v1297 = vunpack.c.h.b16 %v1131
    %v1298 = vunpack.c.l.b16 %v1132
    %v1299 = vunpack.c.h.b16 %v1132
    %v1300 = vunpack.c.l.b16 %v1133
    %v1301 = vunpack.c.h.b16 %v1133
    %v1302 = vunpack.c.l.b16 %v1134
    %v1303 = vunpack.c.h.b16 %v1134
    %v1304 = vunpack.c.l.b16 %v1135
    %v1305 = vunpack.c.h.b16 %v1135
    %v1306 = vunpack.c.l.b16 %v1136
    %v1307 = vunpack.c.h.b16 %v1136
    %v1308 = vunpack.c.l.b16 %v1137
    %v1309 = vunpack.c.h.b16 %v1137
    %v1310 = vunpack.c.l.b16 %v1138
    %v1311 = vunpack.c.h.b16 %v1138
    %v1312 = vunpack.c.l.b16 %v1139
    %v1313 = vunpack.c.h.b16 %v1139
    %v1314 = vunpack.c.l.b16 %v1140
    %v1315 = vunpack.c.h.b16 %v1140
    %v1316 = vunpack.c.l.b16 %v1141
    %v1317 = vunpack.c.h.b16 %v1141
    %v1318 = vunpack.c.l.b16 %v1142
    %v1319 = vunpack.c.h.b16 %v1142
    %v1320 = vunpack.c.l.b16 %v1143
    %v1321 = vunpack.c.h.b16 %v1143
    %v1322 = vunpack.c.l.b16 %v1144
    %v1323 = vunpack.c.h.b16 %v1144
    %v1324 = vunpack.c.l.b16 %v1145
    %v1325 = vunpack.c.h.b16 %v1145
    %v1326 = vunpack.c.l.b16 %v1146
    %v1327 = vunpack.c.h.b16 %v1146
    %v1328 = vunpack.c.l.b16 %v1147
    %v1329 = vunpack.c.h.b16 %v1147
    %v1330 = vunpack.c.l.b16 %v1148
    %v1331 = vunpack.c.h.b16 %v1148
    %v1332 = vunpack.c.l.b16 %v1149
    %v1333 = vunpack.c.h.b16 %v1149
    %v1334 = vunpack.c.l.b16 %v1150
    %v1335 = vunpack.c.h.b16 %v1150
    %v1336 = vunpack.c.l.b16 %v1151
    %v1337 = vunpack.c.h.b16 %v1151
    %v1338 = vunpack.c.l.b16 %v1152
    %v1339 = vunpack.c.h.b16 %v1152
    %v1340 = vunpack.c.l.b16 %v1153
    %v1341 = vunpack.c.h.b16 %v1153
    %v1342 = vunpack.c.l.b16 %v1154
    %v1343 = vunpack.c.h.b16 %v1154
    %v1344 = vunpack.c.l.b16 %v1155
    %v1345 = vunpack.c.h.b16 %v1155
    %v1346 = vunpack.c.l.b16 %v1156
    %v1347 = vunpack.c.h.b16 %v1156
    %v1348 = vunpack.c.l.b16 %v1157
    %v1349 = vunpack.c.h.b16 %v1157
    %v1350 = vunpack.c.l.b16 %v1158
    %v1351 = vunpack.c.h.b16 %v1158
    %v1352 = vunpack.c.l.b16 %v1159
    %v1353 = vunpack.c.h.b16 %v1159
    %v1354 = vunpack.c.l.b16 %v1160
    %v1355 = vunpack.c.h.b16 %v1160
    %v1356 = vunpack.c.l.b16 %v1161
    %v1357 = vunpack.c.h.b16 %v1161
    %v1358 = vunpack.c.l.b16 %v1162
    %v1359 = vunpack.c.h.b16 %v1162
    %v1360 = vunpack.c.l.b16 %v1163
    %v1361 = vunpack.c.h.b16 %v1163
    %v1362 = vunpack.c.l.b16 %v1164
    %v1363 = vunpack.c.h.b16 %v1164
    %v1364 = vunpack.c.l.b16 %v1165
    %v1365 = vunpack.c.h.b16 %v1165
    %v1366 = vunpack.c.l.b16 %v1166
    %v1367 = vunpack.c.h.b16 %v1166
    %v1368 = vunpack.c.l.b16 %v1167
    %v1369 = vunpack.c.h.b16 %v1167
    %v1370 = vpack.c.b16 %v1246, %v1242
    %v1371 = vpack.c.b16 %v1247, %v1243
    %v1372 = vpack.c.b16 %v1248, %v1244
    %v1373 = vpack.c.b16 %v1249, %v1245
    %v1374 = vpack.c.b16 %v1254, %v1250
    %v1375 = vpack.c.b16 %v1255, %v1251
    %v1376 = vpack.c.b16 %v1256, %v1252
    %v1377 = vpack.c.b16 %v1257, %v1253
    %v1378 = vpack.c.b16 %v1262, %v1258
    %v1379 = vpack.c.b16 %v1263, %v1259
    %v1380 = vpack.c.b16 %v1264, %v1260
    %v1381 = vpack.c.b16 %v1265, %v1261
    %v1382 = vpack.c.b16 %v1270, %v1266
    %v1383 = vpack.c.b16 %v1271, %v1267
    %v1384 = vpack.c.b16 %v1272, %v1268
    %v1385 = vpack.c.b16 %v1273, %v1269
    %v1386 = vpack.c.b16 %v1278, %v1274
    %v1387 = vpack.c.b16 %v1279, %v1275
    %v1388 = vpack.c.b16 %v1280, %v1276
    %v1389 = vpack.c.b16 %v1281, %v1277
    %v1390 = vpack.c.b16 %v1286, %v1282
    %v1391 = vpack.c.b16 %v1287, %v1283
    %v1392 = vpack.c.b16 %v1288, %v1284
    %v1393 = vpack.c.b16 %v1289, %v1285
    %v1394 = vpack.c.b16 %v1294, %v1290
    %v1395 = vpack.c.b16 %v1295, %v1291
    %v1396 = vpack.c.b16 %v1296, %v1292
    %v1397 = vpack.c.b16 %v1297, %v1293
    %v1398 = vpack.c.b16 %v1302, %v1298
    %v1399 = vpack.c.b16 %v1303, %v1299
    %v1400 = vpack.c.b16 %v1304, %v1300
    %v1401 = vpack.c.b16 %v1305, %v1301
    %v1402 = vpack.c.b16 %v1310, %v1306
    %v1403 = vpack.c.b16 %v1311, %v1307
    %v1404 = vpack.c.b16 %v1312, %v1308
    %v1405 = vpack.c.b16 %v1313, %v1309
    %v1406 = vpack.c.b16 %v1318, %v1314
    %v1407 = vpack.c.b16 %v1319, %v1315
    %v1408 = vpack.c.b16 %v1320, %v1316
    %v1409 = vpack.c.b16 %v1321, %v1317
    %v1410 = vpack.c.b16 %v1326, %v1322
    %v1411 = vpack.c.b16 %v1327, %v1323
    %v1412 = vpack.c.b16 %v1328, %v1324
    %v1413 = vpack.c.b16 %v1329, %v1325
    %v1414 = vpack.c.b16 %v1334, %v1330
    %v1415 = vpack.c.b16 %v1335, %v1331
    %v1416 = vpack.c.b16 %v1336, %v1332
    %v1417 = vpack.c.b16 %v1337, %v1333
    %v1418 = vpack.c.b16 %v1342, %v1338
    %v1419 = vpack.c.b16 %v1343, %v1339
    %v1420 = vpack.c.b16 %v1344, %v1340
    %v1421 = vpack.c.b16 %v1345, %v1341
    %v1422 = vpack.c.b16 %v1350, %v1346
    %v1423 = vpack.c.b16 %v1351, %v1347
    %v1424 = vpack.c.b16 %v1352, %v1348
    %v1425 = vpack.c.b16 %v1353, %v1349
    %v1426 = vpack.c.b16 %v1358, %v1354
    %v1427 = vpack.c.b16 %v1359, %v1355
    %v1428 = vpack.c.b16 %v1360, %v1356
    %v1429 = vpack.c.b16 %v1361, %v1357
    %v1430 = vpack.c.b16 %v1366, %v1362
    %v1431 = vpack.c.b16 %v1367, %v1363
    %v1432 = vpack.c.b16 %v1368, %v1364
    %v1433 = vpack.c.b16 %v1369, %v1365
    %1498 = vmatpush.bf16.msra.mxu0 %v1398
    %1499 = vmatpush.bf16.msra.mxu0 %v1394
    %1500 = vmatpush.bf16.msra.mxu0 %v1390
    %1501 = vmatpush.bf16.msra.mxu0 %v1386
    %1502 = vmatpush.bf16.msra.mxu0 %v1382
    %1503 = vmatpush.bf16.msra.mxu0 %v1378
    %1504 = vmatpush.bf16.msra.mxu0 %v1374
    %1505 = vmatpush.bf16.msra.mxu0 %v1370
    %1506 = vmatmul.bf16.gmra.mxu0 %v1102
    %v1507 = vpop.f32.mrf.mxu0
    %v1508 = vadd.f32 %v1170, %v1507
    %v1509 = vpop.f32.mrf.mxu0
    %1510 = vdwg.mxu0
    %1511 = vmatpush.bf16.msra.mxu0 %v1430
    %1512 = vmatpush.bf16.msra.mxu0 %v1426
    %1513 = vmatpush.bf16.msra.mxu0 %v1422
    %1514 = vmatpush.bf16.msra.mxu0 %v1418
    %1515 = vmatpush.bf16.msra.mxu0 %v1414
    %1516 = vmatpush.bf16.msra.mxu0 %v1410
    %1517 = vmatpush.bf16.msra.mxu0 %v1406
    %1518 = vmatpush.bf16.msra.mxu0 %v1402
    %1519 = vmatmul.bf16.gmra.mxu0 %v1103
    %v1520 = vpop.f32.mrf.mxu0
    %v1521 = vadd.f32 %v1508, %v1520
    %v1522 = vpop.f32.mrf.mxu0
    %1523 = vdwg.mxu0
    %1524 = vmatpush.bf16.msra.mxu0 %v1399
    %1525 = vmatpush.bf16.msra.mxu0 %v1395
    %1526 = vmatpush.bf16.msra.mxu0 %v1391
    %1527 = vmatpush.bf16.msra.mxu0 %v1387
    %1528 = vmatpush.bf16.msra.mxu0 %v1383
    %1529 = vmatpush.bf16.msra.mxu0 %v1379
    %1530 = vmatpush.bf16.msra.mxu0 %v1375
    %1531 = vmatpush.bf16.msra.mxu0 %v1371
    %1532 = vmatmul.bf16.gmra.mxu0 %v1102
    %v1533 = vpop.f32.mrf.mxu0
    %v1534 = vadd.f32 %v1171, %v1533
    %v1535 = vpop.f32.mrf.mxu0
    %1536 = vdwg.mxu0
    %1537 = vmatpush.bf16.msra.mxu0 %v1431
    %1538 = vmatpush.bf16.msra.mxu0 %v1427
    %1539 = vmatpush.bf16.msra.mxu0 %v1423
    %1540 = vmatpush.bf16.msra.mxu0 %v1419
    %1541 = vmatpush.bf16.msra.mxu0 %v1415
    %1542 = vmatpush.bf16.msra.mxu0 %v1411
    %1543 = vmatpush.bf16.msra.mxu0 %v1407
    %1544 = vmatpush.bf16.msra.mxu0 %v1403
    %1545 = vmatmul.bf16.gmra.mxu0 %v1103
    %v1546 = vpop.f32.mrf.mxu0
    %v1547 = vadd.f32 %v1534, %v1546
    %v1548 = vpop.f32.mrf.mxu0
    %1549 = vdwg.mxu0
    %1550 = vmatpush.bf16.msra.mxu0 %v1400
    %1551 = vmatpush.bf16.msra.mxu0 %v1396
    %1552 = vmatpush.bf16.msra.mxu0 %v1392
    %1553 = vmatpush.bf16.msra.mxu0 %v1388
    %1554 = vmatpush.bf16.msra.mxu0 %v1384
    %1555 = vmatpush.bf16.msra.mxu0 %v1380
    %1556 = vmatpush.bf16.msra.mxu0 %v1376
    %1557 = vmatpush.bf16.msra.mxu0 %v1372
    %1558 = vmatmul.bf16.gmra.mxu0 %v1102
    %v1559 = vpop.f32.mrf.mxu0
    %v1560 = vadd.f32 %v1172, %v1559
    %v1561 = vpop.f32.mrf.mxu0
    %1562 = vdwg.mxu0
    %1563 = vmatpush.bf16.msra.mxu0 %v1432
    %1564 = vmatpush.bf16.msra.mxu0 %v1428
    %1565 = vmatpush.bf16.msra.mxu0 %v1424
    %1566 = vmatpush.bf16.msra.mxu0 %v1420
    %1567 = vmatpush.bf16.msra.mxu0 %v1416
    %1568 = vmatpush.bf16.msra.mxu0 %v1412
    %1569 = vmatpush.bf16.msra.mxu0 %v1408
    %1570 = vmatpush.bf16.msra.mxu0 %v1404
    %1571 = vmatmul.bf16.gmra.mxu0 %v1103
    %v1572 = vpop.f32.mrf.mxu0
    %v1573 = vadd.f32 %v1560, %v1572
    %v1574 = vpop.f32.mrf.mxu0
    %1575 = vdwg.mxu0
    %1576 = vmatpush.bf16.msra.mxu0 %v1401
    %1577 = vmatpush.bf16.msra.mxu0 %v1397
    %1578 = vmatpush.bf16.msra.mxu0 %v1393
    %1579 = vmatpush.bf16.msra.mxu0 %v1389
    %1580 = vmatpush.bf16.msra.mxu0 %v1385
    %1581 = vmatpush.bf16.msra.mxu0 %v1381
    %1582 = vmatpush.bf16.msra.mxu0 %v1377
    %1583 = vmatpush.bf16.msra.mxu0 %v1373
    %1584 = vmatmul.bf16.gmra.mxu0 %v1102
    %v1585 = vpop.f32.mrf.mxu0
    %v1586 = vadd.f32 %v1173, %v1585
    %v1587 = vpop.f32.mrf.mxu0
    %1588 = vdwg.mxu0
    %1589 = vmatpush.bf16.msra.mxu0 %v1433
    %1590 = vmatpush.bf16.msra.mxu0 %v1429
    %1591 = vmatpush.bf16.msra.mxu0 %v1425
    %1592 = vmatpush.bf16.msra.mxu0 %v1421
    %1593 = vmatpush.bf16.msra.mxu0 %v1417
    %1594 = vmatpush.bf16.msra.mxu0 %v1413
    %1595 = vmatpush.bf16.msra.mxu0 %v1409
    %1596 = vmatpush.bf16.msra.mxu0 %v1405
    %1597 = vmatmul.bf16.gmra.mxu0 %v1103
    %v1598 = vpop.f32.mrf.mxu0
    %v1599 = vadd.f32 %v1586, %v1598
    %v1600 = vpop.f32.mrf.mxu0
    %1601 = vdwg.mxu0
    %v1602 = vmax.f32 %v1521, %v1547
    %v1603 = vmax.f32 %v1573, %v1599
    %v1604 = vmax.f32 %v1602, %v1603
    %v1605 = vmax.f32 %v1604, 0.0
    %v1606 = vpack.c.bf16 %v1605, %v1605
    %v1607 = vld [vmem:[%s5] sm:$0xf]
    %v1608 = vld [vmem:[%s5 + $0x4] sm:$0xf]
    %v1609 = vld [vmem:[%s5 + $0x8] sm:$0xf]
    %v1610 = vld [vmem:[%s5 + $0xc] sm:$0xf]
    %v1611 = vld [vmem:[%s5 + $0x10] sm:$0xf]
    %v1612 = vld [vmem:[%s5 + $0x14] sm:$0xf]
    %v1613 = vld [vmem:[%s5 + $0x18] sm:$0xf]
    %v1614 = vld [vmem:[%s5 + $0x1c] sm:$0xf]
    %v1615 = vld [vmem:[%s5 + $0x20] sm:$0xf]
    %v1616 = vld [vmem:[%s5 + $0x24] sm:$0xf]
    %v1617 = vld [vmem:[%s5 + $0x28] sm:$0xf]
    %v1618 = vld [vmem:[%s5 + $0x2c] sm:$0xf]
    %v1619 = vld [vmem:[%s5 + $0x30] sm:$0xf]
    %v1620 = vld [vmem:[%s5 + $0x34] sm:$0xf]
    %v1621 = vld [vmem:[%s5 + $0x38] sm:$0xf]
    %v1622 = vld [vmem:[%s5 + $0x3c] sm:$0xf]
    %v1623 = vld [vmem:[%s6] sm:$0x1]
    %v1625 = vperm.slane %v1623, 0
    %v1643 = vunpack.c.l.b16 %v1607
    %v1644 = vunpack.c.l.b16 %v1608
    %v1645 = vunpack.c.l.b16 %v1609
    %v1646 = vunpack.c.l.b16 %v1610
    %v1647 = vunpack.c.l.b16 %v1611
    %v1648 = vunpack.c.l.b16 %v1612
    %v1649 = vunpack.c.l.b16 %v1613
    %v1650 = vunpack.c.l.b16 %v1614
    %v1651 = vunpack.c.l.b16 %v1615
    %v1652 = vunpack.c.l.b16 %v1616
    %v1653 = vunpack.c.l.b16 %v1617
    %v1654 = vunpack.c.l.b16 %v1618
    %v1655 = vunpack.c.l.b16 %v1619
    %v1656 = vunpack.c.l.b16 %v1620
    %v1657 = vunpack.c.l.b16 %v1621
    %v1658 = vunpack.c.l.b16 %v1622
    %v1659 = vpack.c.b16 %v1644, %v1643
    %v1660 = vpack.c.b16 %v1646, %v1645
    %v1661 = vpack.c.b16 %v1648, %v1647
    %v1662 = vpack.c.b16 %v1650, %v1649
    %v1663 = vpack.c.b16 %v1652, %v1651
    %v1664 = vpack.c.b16 %v1654, %v1653
    %v1665 = vpack.c.b16 %v1656, %v1655
    %v1666 = vpack.c.b16 %v1658, %v1657
    %1675 = vmatpush.bf16.msra.mxu0 %v1666
    %1676 = vmatpush.bf16.msra.mxu0 %v1665
    %1677 = vmatpush.bf16.msra.mxu0 %v1664
    %1678 = vmatpush.bf16.msra.mxu0 %v1663
    %1679 = vmatpush.bf16.msra.mxu0 %v1662
    %1680 = vmatpush.bf16.msra.mxu0 %v1661
    %1681 = vmatpush.bf16.msra.mxu0 %v1660
    %1682 = vmatpush.bf16.msra.mxu0 %v1659
    %1683 = vmatmul.bf16.gmra.mxu0 %v1606
    %v1684 = vpop.f32.mrf.mxu0
    %v1685 = vadd.f32 %v1625, %v1684
    %v1686 = vpop.f32.mrf.mxu0
    %1687 = vdwg.mxu0
    %v1688 = vmax.f32 %v1685, 0.0
    %v1689 = vpack.c.bf16 %v1688, %v1688
    %v1690 = vld [vmem:[#allocation7] sm:$0xff]
    %v1691 = vld [vmem:[#allocation7 + $0x8] sm:$0xff]
    %v1692 = vld [vmem:[#allocation7 + $0x10] sm:$0xff]
    %v1693 = vld [vmem:[#allocation7 + $0x18] sm:$0xff]
    %v1694 = vld [vmem:[#allocation7 + $0x20] sm:$0xff]
    %v1695 = vld [vmem:[#allocation7 + $0x28] sm:$0xff]
    %v1696 = vld [vmem:[#allocation7 + $0x30] sm:$0xff]
    %v1697 = vld [vmem:[#allocation7 + $0x38] sm:$0xff]
    %v1698 = vld [vmem:[#allocation7 + $0x40] sm:$0xff]
    %v1699 = vld [vmem:[#allocation7 + $0x48] sm:$0xff]
    %v1700 = vld [vmem:[#allocation7 + $0x50] sm:$0xff]
    %v1701 = vld [vmem:[#allocation7 + $0x58] sm:$0xff]
    %v1702 = vld [vmem:[#allocation7 + $0x60] sm:$0xff]
    %v1703 = vld [vmem:[#allocation7 + $0x68] sm:$0xff]
    %v1704 = vld [vmem:[#allocation7 + $0x70] sm:$0xff]
    %v1705 = vld [vmem:[#allocation7 + $0x78] sm:$0xff]
    %v1706 = vld [vmem:[%s8] sm:$0x3]
    %v1708 = vperm.slane %v1706, 0
    %v1709 = vperm.slane %v1706, 1
    %v1728 = vunpack.c.l.b16 %v1690
    %v1729 = vunpack.c.h.b16 %v1690
    %v1730 = vunpack.c.l.b16 %v1691
    %v1731 = vunpack.c.h.b16 %v1691
    %v1732 = vunpack.c.l.b16 %v1692
    %v1733 = vunpack.c.h.b16 %v1692
    %v1734 = vunpack.c.l.b16 %v1693
    %v1735 = vunpack.c.h.b16 %v1693
    %v1736 = vunpack.c.l.b16 %v1694
    %v1737 = vunpack.c.h.b16 %v1694
    %v1738 = vunpack.c.l.b16 %v1695
    %v1739 = vunpack.c.h.b16 %v1695
    %v1740 = vunpack.c.l.b16 %v1696
    %v1741 = vunpack.c.h.b16 %v1696
    %v1742 = vunpack.c.l.b16 %v1697
    %v1743 = vunpack.c.h.b16 %v1697
    %v1744 = vunpack.c.l.b16 %v1698
    %v1745 = vunpack.c.h.b16 %v1698
    %v1746 = vunpack.c.l.b16 %v1699
    %v1747 = vunpack.c.h.b16 %v1699
    %v1748 = vunpack.c.l.b16 %v1700
    %v1749 = vunpack.c.h.b16 %v1700
    %v1750 = vunpack.c.l.b16 %v1701
    %v1751 = vunpack.c.h.b16 %v1701
    %v1752 = vunpack.c.l.b16 %v1702
    %v1753 = vunpack.c.h.b16 %v1702
    %v1754 = vunpack.c.l.b16 %v1703
    %v1755 = vunpack.c.h.b16 %v1703
    %v1756 = vunpack.c.l.b16 %v1704
    %v1757 = vunpack.c.h.b16 %v1704
    %v1758 = vunpack.c.l.b16 %v1705
    %v1759 = vunpack.c.h.b16 %v1705
    %v1760 = vpack.c.b16 %v1730, %v1728
    %v1761 = vpack.c.b16 %v1731, %v1729
    %v1762 = vpack.c.b16 %v1734, %v1732
    %v1763 = vpack.c.b16 %v1735, %v1733
    %v1764 = vpack.c.b16 %v1738, %v1736
    %v1765 = vpack.c.b16 %v1739, %v1737
    %v1766 = vpack.c.b16 %v1742, %v1740
    %v1767 = vpack.c.b16 %v1743, %v1741
    %v1768 = vpack.c.b16 %v1746, %v1744
    %v1769 = vpack.c.b16 %v1747, %v1745
    %v1770 = vpack.c.b16 %v1750, %v1748
    %v1771 = vpack.c.b16 %v1751, %v1749
    %v1772 = vpack.c.b16 %v1754, %v1752
    %v1773 = vpack.c.b16 %v1755, %v1753
    %v1774 = vpack.c.b16 %v1758, %v1756
    %v1775 = vpack.c.b16 %v1759, %v1757
    %1792 = vmatpush.bf16.msra.mxu0 %v1774
    %1793 = vmatpush.bf16.msra.mxu0 %v1772
    %1794 = vmatpush.bf16.msra.mxu0 %v1770
    %1795 = vmatpush.bf16.msra.mxu0 %v1768
    %1796 = vmatpush.bf16.msra.mxu0 %v1766
    %1797 = vmatpush.bf16.msra.mxu0 %v1764
    %1798 = vmatpush.bf16.msra.mxu0 %v1762
    %1799 = vmatpush.bf16.msra.mxu0 %v1760
    %1800 = vmatmul.bf16.gmra.mxu0 %v1689
    %v1801 = vpop.f32.mrf.mxu0
    %v1802 = vadd.f32 %v1708, %v1801
    %v1803 = vpop.f32.mrf.mxu0
    %1804 = vdwg.mxu0
    %1805 = vmatpush.bf16.msra.mxu0 %v1775
    %1806 = vmatpush.bf16.msra.mxu0 %v1773
    %1807 = vmatpush.bf16.msra.mxu0 %v1771
    %1808 = vmatpush.bf16.msra.mxu0 %v1769
    %1809 = vmatpush.bf16.msra.mxu0 %v1767
    %1810 = vmatpush.bf16.msra.mxu0 %v1765
    %1811 = vmatpush.bf16.msra.mxu0 %v1763
    %1812 = vmatpush.bf16.msra.mxu0 %v1761
    %1813 = vmatmul.bf16.gmra.mxu0 %v1689
    %v1814 = vpop.f32.mrf.mxu0
    %v1815 = vadd.f32 %v1709, %v1814
    %v1816 = vpop.f32.mrf.mxu0
    %1817 = vdwg.mxu0
    %v1818 = vsub.f32 0.0, %v1802
    %v1819 = vsub.f32 0.0, %v1815
    %v1820 = vmul.f32 %v1818, 1.442695
    %v1821 = vpow.pop %v1820
    %v1822 = vmul.f32 %v1819, 1.442695
    %v1823 = vpow.pop %v1822
    %v1824 = vadd.f32 %v1821, 1.0
    %v1825 = vadd.f32 %v1823, 1.0
    %v1826 = vrcp.pop %v1824
    %v1827 = vrcp.pop %v1825
    %v1830 = vrot.slane %v1827, 6
    %vm1831 = vcmask 1041408
    %v1832 = vsel %vm1831, %v1826, %v1830
    %1834 = vst [vmem:[%s9] sm:$0xf] %v1832
    // Predicated region
    $region54: #{_lambda_.1} parent=1 // pred_check
      _
    $region55: #{_lambda_.1} parent=1 // pred_check_branch
      %1836 = sbr.rel (0) target = $region57
    $region56: #{_lambda_.1} parent=1 // pred_region
      _
    $region57: #{_lambda_.1} parent=1 // pred_fallthru
      _
    // Predicated region
    $region58: #{_lambda_.1} parent=1 // pred_check
      _
    $region59: #{_lambda_.1} parent=1 // pred_check_branch
      %1838 = sbr.rel (0) target = $region61
    $region60: #{_lambda_.1} parent=1 // pred_region
      _
    $region61: #{_lambda_.1} parent=1 // pred_fallthru
      _
    %1839 = vsyncpa [#allocation3], 1
    %1840 = vsyncpa [#allocation5], 1
    %1841 = vsyncpa [#allocation8], 1

</llo_original>
